<compile_context>
chip_gen: v7x
topology: tpu7x:2x2x1
jax: 0.10.0
libtpu: 0.0.40
codegen_flags: <defaults>
</compile_context>

<pallas_src>
import functools
import math

import jax
import jax.numpy as jnp
import numpy as np
from jax.experimental import pallas as pl
from jax.experimental.pallas import tpu as pltpu


# ----------------------------- fused Pallas kernel ------------------------------

def _fused_forward_kernel(x_ref, w1_ref, wr0_ref, b0_ref, wr1_ref, b1_ref,
                          wfc_ref, bfc_ref, out_ref, bufx, bufh, *,
                          K, stride, pad, T_out, TL, leaky_slope, n_blocks):
    """Entire forward pass for one batch element, VMEM-resident.

    x_ref   : (1, stride, Cin, Lg)  stride-de-interleaved, zero-padded input
    w1_ref  : (Cout, K*Cin)         conv1 weight, im2col (tap-major) layout
    wr0_ref : (nb, Cout, K*Cout)    1st conv of each residual block (BN scale folded in)
    b0_ref  : (nb, Cout, 1)         folded BN bias of 1st conv
    wr1_ref : (nb, Cout, K*Cout)    2nd conv of each residual block (BN scale folded in)
    b1_ref  : (nb, Cout, 1)         folded BN bias of 2nd conv
    wfc_ref : (nc, Cout)            final Linear weight
    bfc_ref : (nc, 1)               final Linear bias
    out_ref : (1, nc, TL)           softmax probs; classes on sublanes, time on lanes
    bufx, bufh : VMEM (Cout, TL + 2*pad) ping-pong activation buffers
    """
    # Zero halos every grid step (scratch persists across steps / cores).
    bufx[...] = jnp.zeros_like(bufx)
    bufh[...] = jnp.zeros_like(bufh)

    lane = jax.lax.broadcasted_iota(jnp.int32, (1, TL), 1)
    valid = lane < T_out

    def leaky(v):
        return jnp.where(v >= 0.0, v, leaky_slope * v)

    # ---- conv1: strided valid conv (no bias) + LeakyReLU, one im2col matmul ----
    cols = [x_ref[0, k % stride, :, (k // stride):(k // stride) + TL]
            for k in range(K)]
    xs = jnp.concatenate(cols, axis=0)                              # (K*Cin, TL)
    y = jnp.dot(w1_ref[...], xs, preferred_element_type=jnp.float32)
    bufx[:, pad:pad + TL] = jnp.where(valid, leaky(y), 0.0)

    def conv_same(src_ref, w2d, bias):
        c = [src_ref[:, k:k + TL] for k in range(K)]                # shifted lane slices
        return jnp.dot(w2d, jnp.concatenate(c, axis=0),             # (Cout,K*C)@(K*C,TL)
                       preferred_element_type=jnp.float32) + bias

    # ---- 4 residual blocks: conv+BN+LeakyReLU -> conv+BN, + skip ---------------
    for blk in range(n_blocks):
        h = conv_same(bufx, wr0_ref[blk], b0_ref[blk])
        bufh[:, pad:pad + TL] = jnp.where(valid, leaky(h), 0.0)
        y = conv_same(bufh, wr1_ref[blk], b1_ref[blk]) + bufx[:, pad:pad + TL]
        bufx[:, pad:pad + TL] = jnp.where(valid, y, 0.0)

    # ---- Linear(map -> num_classes) + softmax over classes (sublane axis) ------
    act = bufx[:, pad:pad + TL]                                     # (Cout, TL)
    logits = jnp.dot(wfc_ref[...], act,
                     preferred_element_type=jnp.float32) + bfc_ref[...]
    m = jnp.max(logits, axis=0, keepdims=True)
    e = jnp.exp(logits - m)
    out_ref[0] = e / jnp.sum(e, axis=0, keepdims=True)


# ------------------------------ Python wrapper --------------------------------

def residual_cnn4block_forward(params, x, *, kernel_sz, stride, cmap):
    """Mirrors ResidualCNN4block.forward in eval mode."""
    K = kernel_sz
    # NOTE: nn.LeakyReLU(map) -> negative_slope == map (quirk of the original module).
    leaky_slope = float(cmap)
    if x.ndim == 4:
        # PyTorch does x.squeeze(); squeeze only the singleton channel axis so a
        # batch of size 1 is not squeezed away (review correctness concern).
        x = jnp.squeeze(x, axis=1)
    x = x.astype(jnp.float32)

    N, Cin, T = x.shape
    Cout = params["conv1_w"].shape[0]
    nc = params["fc_w"].shape[0]
    pad = (K - 1) // 2
    T_out = (T - K) // stride + 1
    TL = max(128, ((T_out + 127) // 128) * 128)      # lane-dense compute width
    Lg = (K - 1) // stride + TL                      # de-interleaved input length
    W = TL + 2 * pad                                 # activation buffer width
    # TODO(synk): for long sequences (T in the thousands) add a time-tile grid axis
    # with a K-1 halo instead of one TL-wide block per batch element.

    # Stride-de-interleave the raw input once so every conv1 tap is a contiguous
    # lane slice inside the kernel (only host-side data-prep op before the kernel).
    groups = []
    for r in range(stride):
        xr = x[:, :, r::stride]
        xr = jnp.pad(xr, ((0, 0), (0, 0), (0, max(0, Lg - xr.shape[-1]))))[:, :, :Lg]
        groups.append(xr)
    x_de = jnp.stack(groups, axis=1)                               # (N, stride, Cin, Lg)

    def im2col_w(w, scale=None):
        w2 = jnp.transpose(jnp.asarray(w, jnp.float32), (0, 2, 1)).reshape(w.shape[0], -1)
        if scale is not None:                                      # fold BN scale into weight
            w2 = w2 * jnp.asarray(scale, jnp.float32)[:, None]
        return w2

    blocks = (2, 3, 4, 5)
    w1 = im2col_w(params["conv1_w"])                               # (Cout, K*Cin)
    wr0 = jnp.stack([im2col_w(params[f"res{b}_w0"], params[f"res{b}_scale0"]) for b in blocks])
    wr1 = jnp.stack([im2col_w(params[f"res{b}_w1"], params[f"res{b}_scale1"]) for b in blocks])
    b0 = jnp.stack([jnp.asarray(params[f"res{b}_bias0"], jnp.float32).reshape(Cout, 1)
                    for b in blocks])
    b1 = jnp.stack([jnp.asarray(params[f"res{b}_bias1"], jnp.float32).reshape(Cout, 1)
                    for b in blocks])
    wfc = jnp.asarray(params["fc_w"], jnp.float32)                 # (nc, Cout)
    bfc = jnp.asarray(params["fc_b"], jnp.float32).reshape(nc, 1)

    kernel = functools.partial(
        _fused_forward_kernel, K=K, stride=stride, pad=pad, T_out=T_out, TL=TL,
        leaky_slope=leaky_slope, n_blocks=len(blocks))

    out = pl.pallas_call(
        kernel,
        out_shape=jax.ShapeDtypeStruct((N, nc, TL), jnp.float32),
        grid=(N,),
        in_specs=[
            pl.BlockSpec((1, stride, Cin, Lg), lambda n: (n, 0, 0, 0)),
            pl.BlockSpec((Cout, K * Cin), lambda n: (0, 0)),
            pl.BlockSpec((len(blocks), Cout, K * Cout), lambda n: (0, 0, 0)),
            pl.BlockSpec((len(blocks), Cout, 1), lambda n: (0, 0, 0)),
            pl.BlockSpec((len(blocks), Cout, K * Cout), lambda n: (0, 0, 0)),
            pl.BlockSpec((len(blocks), Cout, 1), lambda n: (0, 0, 0)),
            pl.BlockSpec((nc, Cout), lambda n: (0, 0)),
            pl.BlockSpec((nc, 1), lambda n: (0, 0)),
        ],
        out_specs=pl.BlockSpec((1, nc, TL), lambda n: (n, 0, 0)),
        scratch_shapes=[pltpu.VMEM((Cout, W), jnp.float32),
                        pltpu.VMEM((Cout, W), jnp.float32)],
        compiler_params=pltpu.CompilerParams(
            dimension_semantics=("parallel",)),     # independent batch -> 2nd TC on v7x
    )(x_de, w1, wr0, b0, wr1, b1, wfc, bfc)

    # (N, nc, TL) -> (N, T_out, nc): tiny output reformat (dense stores kept in-kernel).
    return jnp.transpose(out[:, :, :T_out], (0, 2, 1))


# --------------------------- deterministic init -----------------------------

def init_params(key, nFreq, cmap, K, num_classes):
    keys = iter(jax.random.split(key, 64))
    leaky_slope = float(cmap)

    def conv_w(cout, cin):
        # Scaled down by the (unusual) LeakyReLU negative_slope == map so the
        # synthetic activations stay well-conditioned. Deterministic synthetic
        # init; not a checkpoint load.
        bound = 1.0 / (leaky_slope * math.sqrt(cin * K))
        return jax.random.uniform(next(keys), (cout, cin, K), jnp.float32,
                                  -bound, bound)

    def bn_fold():
        # BatchNorm1d(cmap) eval-mode params + running stats, folded to scale/bias.
        gamma = 1.0 + 0.1 * jax.random.normal(next(keys), (cmap,), jnp.float32)
        beta = 0.1 * jax.random.normal(next(keys), (cmap,), jnp.float32)
        mean = 0.1 * jax.random.normal(next(keys), (cmap,), jnp.float32)
        var = 1.0 + 0.1 * jax.random.uniform(next(keys), (cmap,), jnp.float32)
        scale = gamma / jnp.sqrt(var + 1e-5)
        bias = beta - mean * scale
        return scale, bias

    params = {"conv1_w": conv_w(cmap, nFreq)}
    for blk in (2, 3, 4, 5):
        for j in (0, 1):
            params[f"res{blk}_w{j}"] = conv_w(cmap, cmap)
            s, b = bn_fold()
            params[f"res{blk}_scale{j}"] = s
            params[f"res{blk}_bias{j}"] = b
    bound = 1.0 / math.sqrt(cmap)
    params["fc_w"] = jax.random.uniform(next(keys), (num_classes, cmap),
                                        jnp.float32, -bound, bound)
    params["fc_b"] = jax.random.uniform(next(keys), (num_classes,),
                                        jnp.float32, -bound, bound)
    return params


# --------------------------- numpy f64 reference ----------------------------

def reference_forward_np(params, x, *, K, stride, leaky_slope, pad):
    p = {k: np.asarray(v, dtype=np.float64) for k, v in params.items()}
    x = np.asarray(x, dtype=np.float64)
    if x.ndim == 4:
        x = x[:, 0]

    def conv1d(a, w, s, padding):
        if padding:
            a = np.pad(a, ((0, 0), (0, 0), (padding, padding)))
        T_out = (a.shape[-1] - K) // s + 1
        y = np.zeros((a.shape[0], w.shape[0], T_out))
        for k in range(K):
            xs = a[:, :, k::s][:, :, :T_out]
            y += np.einsum("oc,nct->not", w[:, :, k], xs)
        return y

    def leaky(v):
        return np.where(v >= 0, v, leaky_slope * v)

    h = leaky(conv1d(x, p["conv1_w"], stride, 0))
    for blk in (2, 3, 4, 5):
        r = conv1d(h, p[f"res{blk}_w0"], 1, pad)
        r = r * p[f"res{blk}_scale0"][None, :, None] + p[f"res{blk}_bias0"][None, :, None]
        r = leaky(r)
        r = conv1d(r, p[f"res{blk}_w1"], 1, pad)
        r = r * p[f"res{blk}_scale1"][None, :, None] + p[f"res{blk}_bias1"][None, :, None]
        h = r + h
    N, C, T1 = h.shape
    xt = np.transpose(h, (0, 2, 1)).reshape(N * T1, C)
    logits = xt @ p["fc_w"].T + p["fc_b"]
    logits = logits - logits.max(-1, keepdims=True)
    e = np.exp(logits)
    y = e / e.sum(-1, keepdims=True)
    return y.reshape(N, T1, -1)


# ---------------------------------- main ------------------------------------

if __name__ == "__main__":
    # Small config consistent with the module: labels -> num_classes, nFreq input
    # channels, `map` conv channels, kernel_sz, stride=2 (nDownsample=1 => residual
    # blocks use stride=1 with "same" padding).
    labels = "abcdefgh"                 # num_classes = 8
    nFreq, cmap, K, stride = 16, 32, 5, 2
    N, T = 2, 64

    key = jax.random.PRNGKey(0)
    k_param, k_x = jax.random.split(key)
    params = init_params(k_param, nFreq, cmap, K, len(labels))
    x = jax.random.normal(k_x, (N, 1, nFreq, T), dtype=jnp.float32)  # 4D -> squeezed

    fwd = jax.jit(functools.partial(residual_cnn4block_forward,
                                    kernel_sz=K, stride=stride, cmap=cmap))
    out = jax.block_until_ready(fwd(params, x))

    T1 = (T - K) // stride + 1
    out_np = np.asarray(out)
    assert out_np.shape == (N, T1, len(labels)), out_np.shape
    assert np.all(np.isfinite(out_np))
    assert np.allclose(out_np.sum(-1), 1.0, atol=1e-4)

    ref = reference_forward_np(params, x, K=K, stride=stride,
                               leaky_slope=float(cmap), pad=(K - 1) // 2)
    err = np.max(np.abs(out_np - ref))
    assert err < 2e-2, err

    print("KERNEL_OK")
</pallas_src>

<mosaic_0001>
module attributes {stable_mosaic.version = 11 : i64} {
  func.func @_fused_forward_kernel(%arg0: i32, %arg1: memref<1x2x16x130xf32, #tpu.memory_space<vmem>>, %arg2: memref<32x80xf32, #tpu.memory_space<vmem>>, %arg3: memref<4x32x160xf32, #tpu.memory_space<vmem>>, %arg4: memref<4x32x1xf32, #tpu.memory_space<vmem>>, %arg5: memref<4x32x160xf32, #tpu.memory_space<vmem>>, %arg6: memref<4x32x1xf32, #tpu.memory_space<vmem>>, %arg7: memref<8x32xf32, #tpu.memory_space<vmem>>, %arg8: memref<8x1xf32, #tpu.memory_space<vmem>>, %arg9: memref<1x8x128xf32, #tpu.memory_space<vmem>>, %arg10: memref<32x132xf32, #tpu.memory_space<vmem>>, %arg11: memref<32x132xf32, #tpu.memory_space<vmem>>) attributes {dimension_semantics = [#tpu.dimension_semantics<parallel>], iteration_bounds = array<i64: 2>, scalar_prefetch = 0 : i64, scratch_operands = 2 : i64, tpu.core_type = #tpu.core_type<tc>, window_params = [{transform_indices = @transform_0, window_bounds = array<i64: 1, 2, 16, 130>}, {pipeline_mode = #tpu.pipeline_mode<synchronous>, transform_indices = @transform_1, window_bounds = array<i64: 32, 80>}, {pipeline_mode = #tpu.pipeline_mode<synchronous>, transform_indices = @transform_2, window_bounds = array<i64: 4, 32, 160>}, {pipeline_mode = #tpu.pipeline_mode<synchronous>, transform_indices = @transform_3, window_bounds = array<i64: 4, 32, 1>}, {pipeline_mode = #tpu.pipeline_mode<synchronous>, transform_indices = @transform_4, window_bounds = array<i64: 4, 32, 160>}, {pipeline_mode = #tpu.pipeline_mode<synchronous>, transform_indices = @transform_5, window_bounds = array<i64: 4, 32, 1>}, {pipeline_mode = #tpu.pipeline_mode<synchronous>, transform_indices = @transform_6, window_bounds = array<i64: 8, 32>}, {pipeline_mode = #tpu.pipeline_mode<synchronous>, transform_indices = @transform_7, window_bounds = array<i64: 8, 1>}, {transform_indices = @transform_8, window_bounds = array<i64: 1, 8, 128>}]} {
    %cst = arith.constant 0.000000e+00 : f32
    %0 = vector.broadcast %cst : f32 to vector<32x132xf32>
    %c0 = arith.constant 0 : index
    %c0_0 = arith.constant 0 : index
    %1 = vector.load %arg10[%c0, %c0_0] : memref<32x132xf32, #tpu.memory_space<vmem>>, vector<32x132xf32>
    tpu.vector_store %arg10[%c0, %c0_0], %0 {strides = array<i32>} : memref<32x132xf32, #tpu.memory_space<vmem>>, vector<32x132xf32>,
    %cst_1 = arith.constant 0.000000e+00 : f32
    %2 = vector.broadcast %cst_1 : f32 to vector<32x132xf32>
    %c0_2 = arith.constant 0 : index
    %c0_3 = arith.constant 0 : index
    %3 = vector.load %arg11[%c0_2, %c0_3] : memref<32x132xf32, #tpu.memory_space<vmem>>, vector<32x132xf32>
    tpu.vector_store %arg11[%c0_2, %c0_3], %2 {strides = array<i32>} : memref<32x132xf32, #tpu.memory_space<vmem>>, vector<32x132xf32>,
    %4 = tpu.iota {dimensions = array<i32: 1>} : vector<1x128xi32>
    %c30_i32 = arith.constant 30 : i32
    %5 = vector.broadcast %c30_i32 : i32 to vector<1x128xi32>
    %6 = arith.cmpi slt, %4, %5 : vector<1x128xi32>
    %c0_4 = arith.constant 0 : index
    %c0_5 = arith.constant 0 : index
    %c0_6 = arith.constant 0 : index
    %c0_7 = arith.constant 0 : index
    %7 = vector.load %arg1[%c0_4, %c0_5, %c0_6, %c0_7] : memref<1x2x16x130xf32, #tpu.memory_space<vmem>>, vector<1x1x16x128xf32>
    %8 = vector.shape_cast %7 : vector<1x1x16x128xf32> to vector<16x128xf32>
    %c0_8 = arith.constant 0 : index
    %c1 = arith.constant 1 : index
    %c0_9 = arith.constant 0 : index
    %c0_10 = arith.constant 0 : index
    %9 = vector.load %arg1[%c0_8, %c1, %c0_9, %c0_10] : memref<1x2x16x130xf32, #tpu.memory_space<vmem>>, vector<1x1x16x128xf32>
    %10 = vector.shape_cast %9 : vector<1x1x16x128xf32> to vector<16x128xf32>
    %c0_11 = arith.constant 0 : index
    %c0_12 = arith.constant 0 : index
    %c0_13 = arith.constant 0 : index
    %c1_14 = arith.constant 1 : index
    %11 = vector.load %arg1[%c0_11, %c0_12, %c0_13, %c1_14] : memref<1x2x16x130xf32, #tpu.memory_space<vmem>>, vector<1x1x16x128xf32>
    %12 = vector.shape_cast %11 : vector<1x1x16x128xf32> to vector<16x128xf32>
    %c0_15 = arith.constant 0 : index
    %c1_16 = arith.constant 1 : index
    %c0_17 = arith.constant 0 : index
    %c1_18 = arith.constant 1 : index
    %13 = vector.load %arg1[%c0_15, %c1_16, %c0_17, %c1_18] : memref<1x2x16x130xf32, #tpu.memory_space<vmem>>, vector<1x1x16x128xf32>
    %14 = vector.shape_cast %13 : vector<1x1x16x128xf32> to vector<16x128xf32>
    %c0_19 = arith.constant 0 : index
    %c0_20 = arith.constant 0 : index
    %c0_21 = arith.constant 0 : index
    %c2 = arith.constant 2 : index
    %15 = vector.load %arg1[%c0_19, %c0_20, %c0_21, %c2] : memref<1x2x16x130xf32, #tpu.memory_space<vmem>>, vector<1x1x16x128xf32>
    %16 = vector.shape_cast %15 : vector<1x1x16x128xf32> to vector<16x128xf32>
    %17 = tpu.concatenate %8, %10, %12, %14, %16 in 0 : vector<16x128xf32>, vector<16x128xf32>, vector<16x128xf32>, vector<16x128xf32>, vector<16x128xf32> -> vector<80x128xf32>
    %c0_22 = arith.constant 0 : index
    %c0_23 = arith.constant 0 : index
    %18 = vector.load %arg2[%c0_22, %c0_23] : memref<32x80xf32, #tpu.memory_space<vmem>>, vector<32x80xf32>
    %cst_24 = arith.constant dense<0.000000e+00> : vector<32x128xf32>
    %19 = tpu.matmul %18, %17, %cst_24 {dimension_numbers = #tpu.dot_dimension_numbers<[1], [0], [0], [1], [0, 0, 1, 1], [], []>} : vector<32x80xf32>, vector<80x128xf32>, vector<32x128xf32> -> vector<32x128xf32>
    %cst_25 = arith.constant 0.000000e+00 : f32
    %20 = vector.broadcast %cst_25 : f32 to vector<32x128xf32>
    %21 = arith.cmpf oge, %19, %20 : vector<32x128xf32>
    %cst_26 = arith.constant 3.200000e+01 : f32
    %22 = vector.broadcast %cst_26 : f32 to vector<32x128xf32>
    %23 = arith.mulf %22, %19 : vector<32x128xf32>
    %24 = arith.select %21, %19, %23 : vector<32x128xi1>, vector<32x128xf32>
    %cst_27 = arith.constant 0.000000e+00 : f32
    %25 = vector.shape_cast %6 : vector<1x128xi1> to vector<1x128xi1>
    %26 = vector.broadcast %25 : vector<1x128xi1> to vector<32x128xi1>
    %27 = vector.broadcast %cst_27 : f32 to vector<32x128xf32>
    %28 = arith.select %26, %24, %27 : vector<32x128xi1>, vector<32x128xf32>
    %c0_28 = arith.constant 0 : index
    %c2_29 = arith.constant 2 : index
    %29 = vector.load %arg10[%c0_28, %c2_29] : memref<32x132xf32, #tpu.memory_space<vmem>>, vector<32x128xf32>
    tpu.vector_store %arg10[%c0_28, %c2_29], %28 {strides = array<i32>} : memref<32x132xf32, #tpu.memory_space<vmem>>, vector<32x128xf32>,
    %c0_30 = arith.constant 0 : index
    %c0_31 = arith.constant 0 : index
    %c0_32 = arith.constant 0 : index
    %30 = vector.load %arg3[%c0_30, %c0_31, %c0_32] : memref<4x32x160xf32, #tpu.memory_space<vmem>>, vector<1x32x160xf32>
    %31 = vector.shape_cast %30 : vector<1x32x160xf32> to vector<32x160xf32>
    %c0_33 = arith.constant 0 : index
    %c0_34 = arith.constant 0 : index
    %c0_35 = arith.constant 0 : index
    %32 = vector.load %arg4[%c0_33, %c0_34, %c0_35] : memref<4x32x1xf32, #tpu.memory_space<vmem>>, vector<1x32x1xf32>
    %33 = vector.shape_cast %32 : vector<1x32x1xf32> to vector<32x1xf32>
    %c0_36 = arith.constant 0 : index
    %c0_37 = arith.constant 0 : index
    %34 = vector.load %arg10[%c0_36, %c0_37] : memref<32x132xf32, #tpu.memory_space<vmem>>, vector<32x128xf32>
    %c0_38 = arith.constant 0 : index
    %c1_39 = arith.constant 1 : index
    %35 = vector.load %arg10[%c0_38, %c1_39] : memref<32x132xf32, #tpu.memory_space<vmem>>, vector<32x128xf32>
    %c0_40 = arith.constant 0 : index
    %c2_41 = arith.constant 2 : index
    %36 = vector.load %arg10[%c0_40, %c2_41] : memref<32x132xf32, #tpu.memory_space<vmem>>, vector<32x128xf32>
    %c0_42 = arith.constant 0 : index
    %c3 = arith.constant 3 : index
    %37 = vector.load %arg10[%c0_42, %c3] : memref<32x132xf32, #tpu.memory_space<vmem>>, vector<32x128xf32>
    %c0_43 = arith.constant 0 : index
    %c4 = arith.constant 4 : index
    %38 = vector.load %arg10[%c0_43, %c4] : memref<32x132xf32, #tpu.memory_space<vmem>>, vector<32x128xf32>
    %39 = tpu.concatenate %34, %35, %36, %37, %38 in 0 : vector<32x128xf32>, vector<32x128xf32>, vector<32x128xf32>, vector<32x128xf32>, vector<32x128xf32> -> vector<160x128xf32>
    %cst_44 = arith.constant dense<0.000000e+00> : vector<32x128xf32>
    %40 = tpu.matmul %31, %39, %cst_44 {dimension_numbers = #tpu.dot_dimension_numbers<[1], [0], [0], [1], [0, 0, 1, 1], [], []>} : vector<32x160xf32>, vector<160x128xf32>, vector<32x128xf32> -> vector<32x128xf32>
    %41 = vector.broadcast %33 : vector<32x1xf32> to vector<32x128xf32>
    %42 = arith.addf %40, %41 : vector<32x128xf32>
    %cst_45 = arith.constant 0.000000e+00 : f32
    %43 = vector.broadcast %cst_45 : f32 to vector<32x128xf32>
    %44 = arith.cmpf oge, %42, %43 : vector<32x128xf32>
    %cst_46 = arith.constant 3.200000e+01 : f32
    %45 = vector.broadcast %cst_46 : f32 to vector<32x128xf32>
    %46 = arith.mulf %45, %42 : vector<32x128xf32>
    %47 = arith.select %44, %42, %46 : vector<32x128xi1>, vector<32x128xf32>
    %cst_47 = arith.constant 0.000000e+00 : f32
    %48 = vector.shape_cast %6 : vector<1x128xi1> to vector<1x128xi1>
    %49 = vector.broadcast %48 : vector<1x128xi1> to vector<32x128xi1>
    %50 = vector.broadcast %cst_47 : f32 to vector<32x128xf32>
    %51 = arith.select %49, %47, %50 : vector<32x128xi1>, vector<32x128xf32>
    %c0_48 = arith.constant 0 : index
    %c2_49 = arith.constant 2 : index
    %52 = vector.load %arg11[%c0_48, %c2_49] : memref<32x132xf32, #tpu.memory_space<vmem>>, vector<32x128xf32>
    tpu.vector_store %arg11[%c0_48, %c2_49], %51 {strides = array<i32>} : memref<32x132xf32, #tpu.memory_space<vmem>>, vector<32x128xf32>,
    %c0_50 = arith.constant 0 : index
    %c0_51 = arith.constant 0 : index
    %c0_52 = arith.constant 0 : index
    %53 = vector.load %arg5[%c0_50, %c0_51, %c0_52] : memref<4x32x160xf32, #tpu.memory_space<vmem>>, vector<1x32x160xf32>
    %54 = vector.shape_cast %53 : vector<1x32x160xf32> to vector<32x160xf32>
    %c0_53 = arith.constant 0 : index
    %c0_54 = arith.constant 0 : index
    %c0_55 = arith.constant 0 : index
    %55 = vector.load %arg6[%c0_53, %c0_54, %c0_55] : memref<4x32x1xf32, #tpu.memory_space<vmem>>, vector<1x32x1xf32>
    %56 = vector.shape_cast %55 : vector<1x32x1xf32> to vector<32x1xf32>
    %c0_56 = arith.constant 0 : index
    %c0_57 = arith.constant 0 : index
    %57 = vector.load %arg11[%c0_56, %c0_57] : memref<32x132xf32, #tpu.memory_space<vmem>>, vector<32x128xf32>
    %c0_58 = arith.constant 0 : index
    %c1_59 = arith.constant 1 : index
    %58 = vector.load %arg11[%c0_58, %c1_59] : memref<32x132xf32, #tpu.memory_space<vmem>>, vector<32x128xf32>
    %c0_60 = arith.constant 0 : index
    %c2_61 = arith.constant 2 : index
    %59 = vector.load %arg11[%c0_60, %c2_61] : memref<32x132xf32, #tpu.memory_space<vmem>>, vector<32x128xf32>
    %c0_62 = arith.constant 0 : index
    %c3_63 = arith.constant 3 : index
    %60 = vector.load %arg11[%c0_62, %c3_63] : memref<32x132xf32, #tpu.memory_space<vmem>>, vector<32x128xf32>
    %c0_64 = arith.constant 0 : index
    %c4_65 = arith.constant 4 : index
    %61 = vector.load %arg11[%c0_64, %c4_65] : memref<32x132xf32, #tpu.memory_space<vmem>>, vector<32x128xf32>
    %62 = tpu.concatenate %57, %58, %59, %60, %61 in 0 : vector<32x128xf32>, vector<32x128xf32>, vector<32x128xf32>, vector<32x128xf32>, vector<32x128xf32> -> vector<160x128xf32>
    %cst_66 = arith.constant dense<0.000000e+00> : vector<32x128xf32>
    %63 = tpu.matmul %54, %62, %cst_66 {dimension_numbers = #tpu.dot_dimension_numbers<[1], [0], [0], [1], [0, 0, 1, 1], [], []>} : vector<32x160xf32>, vector<160x128xf32>, vector<32x128xf32> -> vector<32x128xf32>
    %64 = vector.broadcast %56 : vector<32x1xf32> to vector<32x128xf32>
    %65 = arith.addf %63, %64 : vector<32x128xf32>
    %c0_67 = arith.constant 0 : index
    %c2_68 = arith.constant 2 : index
    %66 = vector.load %arg10[%c0_67, %c2_68] : memref<32x132xf32, #tpu.memory_space<vmem>>, vector<32x128xf32>
    %67 = arith.addf %65, %66 : vector<32x128xf32>
    %cst_69 = arith.constant 0.000000e+00 : f32
    %68 = vector.shape_cast %6 : vector<1x128xi1> to vector<1x128xi1>
    %69 = vector.broadcast %68 : vector<1x128xi1> to vector<32x128xi1>
    %70 = vector.broadcast %cst_69 : f32 to vector<32x128xf32>
    %71 = arith.select %69, %67, %70 : vector<32x128xi1>, vector<32x128xf32>
    %c0_70 = arith.constant 0 : index
    %c2_71 = arith.constant 2 : index
    %72 = vector.load %arg10[%c0_70, %c2_71] : memref<32x132xf32, #tpu.memory_space<vmem>>, vector<32x128xf32>
    tpu.vector_store %arg10[%c0_70, %c2_71], %71 {strides = array<i32>} : memref<32x132xf32, #tpu.memory_space<vmem>>, vector<32x128xf32>,
    %c1_72 = arith.constant 1 : index
    %c0_73 = arith.constant 0 : index
    %c0_74 = arith.constant 0 : index
    %73 = vector.load %arg3[%c1_72, %c0_73, %c0_74] : memref<4x32x160xf32, #tpu.memory_space<vmem>>, vector<1x32x160xf32>
    %74 = vector.shape_cast %73 : vector<1x32x160xf32> to vector<32x160xf32>
    %c1_75 = arith.constant 1 : index
    %c0_76 = arith.constant 0 : index
    %c0_77 = arith.constant 0 : index
    %75 = vector.load %arg4[%c1_75, %c0_76, %c0_77] : memref<4x32x1xf32, #tpu.memory_space<vmem>>, vector<1x32x1xf32>
    %76 = vector.shape_cast %75 : vector<1x32x1xf32> to vector<32x1xf32>
    %c0_78 = arith.constant 0 : index
    %c0_79 = arith.constant 0 : index
    %77 = vector.load %arg10[%c0_78, %c0_79] : memref<32x132xf32, #tpu.memory_space<vmem>>, vector<32x128xf32>
    %c0_80 = arith.constant 0 : index
    %c1_81 = arith.constant 1 : index
    %78 = vector.load %arg10[%c0_80, %c1_81] : memref<32x132xf32, #tpu.memory_space<vmem>>, vector<32x128xf32>
    %c0_82 = arith.constant 0 : index
    %c2_83 = arith.constant 2 : index
    %79 = vector.load %arg10[%c0_82, %c2_83] : memref<32x132xf32, #tpu.memory_space<vmem>>, vector<32x128xf32>
    %c0_84 = arith.constant 0 : index
    %c3_85 = arith.constant 3 : index
    %80 = vector.load %arg10[%c0_84, %c3_85] : memref<32x132xf32, #tpu.memory_space<vmem>>, vector<32x128xf32>
    %c0_86 = arith.constant 0 : index
    %c4_87 = arith.constant 4 : index
    %81 = vector.load %arg10[%c0_86, %c4_87] : memref<32x132xf32, #tpu.memory_space<vmem>>, vector<32x128xf32>
    %82 = tpu.concatenate %77, %78, %79, %80, %81 in 0 : vector<32x128xf32>, vector<32x128xf32>, vector<32x128xf32>, vector<32x128xf32>, vector<32x128xf32> -> vector<160x128xf32>
    %cst_88 = arith.constant dense<0.000000e+00> : vector<32x128xf32>
    %83 = tpu.matmul %74, %82, %cst_88 {dimension_numbers = #tpu.dot_dimension_numbers<[1], [0], [0], [1], [0, 0, 1, 1], [], []>} : vector<32x160xf32>, vector<160x128xf32>, vector<32x128xf32> -> vector<32x128xf32>
    %84 = vector.broadcast %76 : vector<32x1xf32> to vector<32x128xf32>
    %85 = arith.addf %83, %84 : vector<32x128xf32>
    %cst_89 = arith.constant 0.000000e+00 : f32
    %86 = vector.broadcast %cst_89 : f32 to vector<32x128xf32>
    %87 = arith.cmpf oge, %85, %86 : vector<32x128xf32>
    %cst_90 = arith.constant 3.200000e+01 : f32
    %88 = vector.broadcast %cst_90 : f32 to vector<32x128xf32>
    %89 = arith.mulf %88, %85 : vector<32x128xf32>
    %90 = arith.select %87, %85, %89 : vector<32x128xi1>, vector<32x128xf32>
    %cst_91 = arith.constant 0.000000e+00 : f32
    %91 = vector.shape_cast %6 : vector<1x128xi1> to vector<1x128xi1>
    %92 = vector.broadcast %91 : vector<1x128xi1> to vector<32x128xi1>
    %93 = vector.broadcast %cst_91 : f32 to vector<32x128xf32>
    %94 = arith.select %92, %90, %93 : vector<32x128xi1>, vector<32x128xf32>
    %c0_92 = arith.constant 0 : index
    %c2_93 = arith.constant 2 : index
    %95 = vector.load %arg11[%c0_92, %c2_93] : memref<32x132xf32, #tpu.memory_space<vmem>>, vector<32x128xf32>
    tpu.vector_store %arg11[%c0_92, %c2_93], %94 {strides = array<i32>} : memref<32x132xf32, #tpu.memory_space<vmem>>, vector<32x128xf32>,
    %c1_94 = arith.constant 1 : index
    %c0_95 = arith.constant 0 : index
    %c0_96 = arith.constant 0 : index
    %96 = vector.load %arg5[%c1_94, %c0_95, %c0_96] : memref<4x32x160xf32, #tpu.memory_space<vmem>>, vector<1x32x160xf32>
    %97 = vector.shape_cast %96 : vector<1x32x160xf32> to vector<32x160xf32>
    %c1_97 = arith.constant 1 : index
    %c0_98 = arith.constant 0 : index
    %c0_99 = arith.constant 0 : index
    %98 = vector.load %arg6[%c1_97, %c0_98, %c0_99] : memref<4x32x1xf32, #tpu.memory_space<vmem>>, vector<1x32x1xf32>
    %99 = vector.shape_cast %98 : vector<1x32x1xf32> to vector<32x1xf32>
    %c0_100 = arith.constant 0 : index
    %c0_101 = arith.constant 0 : index
    %100 = vector.load %arg11[%c0_100, %c0_101] : memref<32x132xf32, #tpu.memory_space<vmem>>, vector<32x128xf32>
    %c0_102 = arith.constant 0 : index
    %c1_103 = arith.constant 1 : index
    %101 = vector.load %arg11[%c0_102, %c1_103] : memref<32x132xf32, #tpu.memory_space<vmem>>, vector<32x128xf32>
    %c0_104 = arith.constant 0 : index
    %c2_105 = arith.constant 2 : index
    %102 = vector.load %arg11[%c0_104, %c2_105] : memref<32x132xf32, #tpu.memory_space<vmem>>, vector<32x128xf32>
    %c0_106 = arith.constant 0 : index
    %c3_107 = arith.constant 3 : index
    %103 = vector.load %arg11[%c0_106, %c3_107] : memref<32x132xf32, #tpu.memory_space<vmem>>, vector<32x128xf32>
    %c0_108 = arith.constant 0 : index
    %c4_109 = arith.constant 4 : index
    %104 = vector.load %arg11[%c0_108, %c4_109] : memref<32x132xf32, #tpu.memory_space<vmem>>, vector<32x128xf32>
    %105 = tpu.concatenate %100, %101, %102, %103, %104 in 0 : vector<32x128xf32>, vector<32x128xf32>, vector<32x128xf32>, vector<32x128xf32>, vector<32x128xf32> -> vector<160x128xf32>
    %cst_110 = arith.constant dense<0.000000e+00> : vector<32x128xf32>
    %106 = tpu.matmul %97, %105, %cst_110 {dimension_numbers = #tpu.dot_dimension_numbers<[1], [0], [0], [1], [0, 0, 1, 1], [], []>} : vector<32x160xf32>, vector<160x128xf32>, vector<32x128xf32> -> vector<32x128xf32>
    %107 = vector.broadcast %99 : vector<32x1xf32> to vector<32x128xf32>
    %108 = arith.addf %106, %107 : vector<32x128xf32>
    %c0_111 = arith.constant 0 : index
    %c2_112 = arith.constant 2 : index
    %109 = vector.load %arg10[%c0_111, %c2_112] : memref<32x132xf32, #tpu.memory_space<vmem>>, vector<32x128xf32>
    %110 = arith.addf %108, %109 : vector<32x128xf32>
    %cst_113 = arith.constant 0.000000e+00 : f32
    %111 = vector.shape_cast %6 : vector<1x128xi1> to vector<1x128xi1>
    %112 = vector.broadcast %111 : vector<1x128xi1> to vector<32x128xi1>
    %113 = vector.broadcast %cst_113 : f32 to vector<32x128xf32>
    %114 = arith.select %112, %110, %113 : vector<32x128xi1>, vector<32x128xf32>
    %c0_114 = arith.constant 0 : index
    %c2_115 = arith.constant 2 : index
    %115 = vector.load %arg10[%c0_114, %c2_115] : memref<32x132xf32, #tpu.memory_space<vmem>>, vector<32x128xf32>
    tpu.vector_store %arg10[%c0_114, %c2_115], %114 {strides = array<i32>} : memref<32x132xf32, #tpu.memory_space<vmem>>, vector<32x128xf32>,
    %c2_116 = arith.constant 2 : index
    %c0_117 = arith.constant 0 : index
    %c0_118 = arith.constant 0 : index
    %116 = vector.load %arg3[%c2_116, %c0_117, %c0_118] : memref<4x32x160xf32, #tpu.memory_space<vmem>>, vector<1x32x160xf32>
    %117 = vector.shape_cast %116 : vector<1x32x160xf32> to vector<32x160xf32>
    %c2_119 = arith.constant 2 : index
    %c0_120 = arith.constant 0 : index
    %c0_121 = arith.constant 0 : index
    %118 = vector.load %arg4[%c2_119, %c0_120, %c0_121] : memref<4x32x1xf32, #tpu.memory_space<vmem>>, vector<1x32x1xf32>
    %119 = vector.shape_cast %118 : vector<1x32x1xf32> to vector<32x1xf32>
    %c0_122 = arith.constant 0 : index
    %c0_123 = arith.constant 0 : index
    %120 = vector.load %arg10[%c0_122, %c0_123] : memref<32x132xf32, #tpu.memory_space<vmem>>, vector<32x128xf32>
    %c0_124 = arith.constant 0 : index
    %c1_125 = arith.constant 1 : index
    %121 = vector.load %arg10[%c0_124, %c1_125] : memref<32x132xf32, #tpu.memory_space<vmem>>, vector<32x128xf32>
    %c0_126 = arith.constant 0 : index
    %c2_127 = arith.constant 2 : index
    %122 = vector.load %arg10[%c0_126, %c2_127] : memref<32x132xf32, #tpu.memory_space<vmem>>, vector<32x128xf32>
    %c0_128 = arith.constant 0 : index
    %c3_129 = arith.constant 3 : index
    %123 = vector.load %arg10[%c0_128, %c3_129] : memref<32x132xf32, #tpu.memory_space<vmem>>, vector<32x128xf32>
    %c0_130 = arith.constant 0 : index
    %c4_131 = arith.constant 4 : index
    %124 = vector.load %arg10[%c0_130, %c4_131] : memref<32x132xf32, #tpu.memory_space<vmem>>, vector<32x128xf32>
    %125 = tpu.concatenate %120, %121, %122, %123, %124 in 0 : vector<32x128xf32>, vector<32x128xf32>, vector<32x128xf32>, vector<32x128xf32>, vector<32x128xf32> -> vector<160x128xf32>
    %cst_132 = arith.constant dense<0.000000e+00> : vector<32x128xf32>
    %126 = tpu.matmul %117, %125, %cst_132 {dimension_numbers = #tpu.dot_dimension_numbers<[1], [0], [0], [1], [0, 0, 1, 1], [], []>} : vector<32x160xf32>, vector<160x128xf32>, vector<32x128xf32> -> vector<32x128xf32>
    %127 = vector.broadcast %119 : vector<32x1xf32> to vector<32x128xf32>
    %128 = arith.addf %126, %127 : vector<32x128xf32>
    %cst_133 = arith.constant 0.000000e+00 : f32
    %129 = vector.broadcast %cst_133 : f32 to vector<32x128xf32>
    %130 = arith.cmpf oge, %128, %129 : vector<32x128xf32>
    %cst_134 = arith.constant 3.200000e+01 : f32
    %131 = vector.broadcast %cst_134 : f32 to vector<32x128xf32>
    %132 = arith.mulf %131, %128 : vector<32x128xf32>
    %133 = arith.select %130, %128, %132 : vector<32x128xi1>, vector<32x128xf32>
    %cst_135 = arith.constant 0.000000e+00 : f32
    %134 = vector.shape_cast %6 : vector<1x128xi1> to vector<1x128xi1>
    %135 = vector.broadcast %134 : vector<1x128xi1> to vector<32x128xi1>
    %136 = vector.broadcast %cst_135 : f32 to vector<32x128xf32>
    %137 = arith.select %135, %133, %136 : vector<32x128xi1>, vector<32x128xf32>
    %c0_136 = arith.constant 0 : index
    %c2_137 = arith.constant 2 : index
    %138 = vector.load %arg11[%c0_136, %c2_137] : memref<32x132xf32, #tpu.memory_space<vmem>>, vector<32x128xf32>
    tpu.vector_store %arg11[%c0_136, %c2_137], %137 {strides = array<i32>} : memref<32x132xf32, #tpu.memory_space<vmem>>, vector<32x128xf32>,
    %c2_138 = arith.constant 2 : index
    %c0_139 = arith.constant 0 : index
    %c0_140 = arith.constant 0 : index
    %139 = vector.load %arg5[%c2_138, %c0_139, %c0_140] : memref<4x32x160xf32, #tpu.memory_space<vmem>>, vector<1x32x160xf32>
    %140 = vector.shape_cast %139 : vector<1x32x160xf32> to vector<32x160xf32>
    %c2_141 = arith.constant 2 : index
    %c0_142 = arith.constant 0 : index
    %c0_143 = arith.constant 0 : index
    %141 = vector.load %arg6[%c2_141, %c0_142, %c0_143] : memref<4x32x1xf32, #tpu.memory_space<vmem>>, vector<1x32x1xf32>
    %142 = vector.shape_cast %141 : vector<1x32x1xf32> to vector<32x1xf32>
    %c0_144 = arith.constant 0 : index
    %c0_145 = arith.constant 0 : index
    %143 = vector.load %arg11[%c0_144, %c0_145] : memref<32x132xf32, #tpu.memory_space<vmem>>, vector<32x128xf32>
    %c0_146 = arith.constant 0 : index
    %c1_147 = arith.constant 1 : index
    %144 = vector.load %arg11[%c0_146, %c1_147] : memref<32x132xf32, #tpu.memory_space<vmem>>, vector<32x128xf32>
    %c0_148 = arith.constant 0 : index
    %c2_149 = arith.constant 2 : index
    %145 = vector.load %arg11[%c0_148, %c2_149] : memref<32x132xf32, #tpu.memory_space<vmem>>, vector<32x128xf32>
    %c0_150 = arith.constant 0 : index
    %c3_151 = arith.constant 3 : index
    %146 = vector.load %arg11[%c0_150, %c3_151] : memref<32x132xf32, #tpu.memory_space<vmem>>, vector<32x128xf32>
    %c0_152 = arith.constant 0 : index
    %c4_153 = arith.constant 4 : index
    %147 = vector.load %arg11[%c0_152, %c4_153] : memref<32x132xf32, #tpu.memory_space<vmem>>, vector<32x128xf32>
    %148 = tpu.concatenate %143, %144, %145, %146, %147 in 0 : vector<32x128xf32>, vector<32x128xf32>, vector<32x128xf32>, vector<32x128xf32>, vector<32x128xf32> -> vector<160x128xf32>
    %cst_154 = arith.constant dense<0.000000e+00> : vector<32x128xf32>
    %149 = tpu.matmul %140, %148, %cst_154 {dimension_numbers = #tpu.dot_dimension_numbers<[1], [0], [0], [1], [0, 0, 1, 1], [], []>} : vector<32x160xf32>, vector<160x128xf32>, vector<32x128xf32> -> vector<32x128xf32>
    %150 = vector.broadcast %142 : vector<32x1xf32> to vector<32x128xf32>
    %151 = arith.addf %149, %150 : vector<32x128xf32>
    %c0_155 = arith.constant 0 : index
    %c2_156 = arith.constant 2 : index
    %152 = vector.load %arg10[%c0_155, %c2_156] : memref<32x132xf32, #tpu.memory_space<vmem>>, vector<32x128xf32>
    %153 = arith.addf %151, %152 : vector<32x128xf32>
    %cst_157 = arith.constant 0.000000e+00 : f32
    %154 = vector.shape_cast %6 : vector<1x128xi1> to vector<1x128xi1>
    %155 = vector.broadcast %154 : vector<1x128xi1> to vector<32x128xi1>
    %156 = vector.broadcast %cst_157 : f32 to vector<32x128xf32>
    %157 = arith.select %155, %153, %156 : vector<32x128xi1>, vector<32x128xf32>
    %c0_158 = arith.constant 0 : index
    %c2_159 = arith.constant 2 : index
    %158 = vector.load %arg10[%c0_158, %c2_159] : memref<32x132xf32, #tpu.memory_space<vmem>>, vector<32x128xf32>
    tpu.vector_store %arg10[%c0_158, %c2_159], %157 {strides = array<i32>} : memref<32x132xf32, #tpu.memory_space<vmem>>, vector<32x128xf32>,
    %c3_160 = arith.constant 3 : index
    %c0_161 = arith.constant 0 : index
    %c0_162 = arith.constant 0 : index
    %159 = vector.load %arg3[%c3_160, %c0_161, %c0_162] : memref<4x32x160xf32, #tpu.memory_space<vmem>>, vector<1x32x160xf32>
    %160 = vector.shape_cast %159 : vector<1x32x160xf32> to vector<32x160xf32>
    %c3_163 = arith.constant 3 : index
    %c0_164 = arith.constant 0 : index
    %c0_165 = arith.constant 0 : index
    %161 = vector.load %arg4[%c3_163, %c0_164, %c0_165] : memref<4x32x1xf32, #tpu.memory_space<vmem>>, vector<1x32x1xf32>
    %162 = vector.shape_cast %161 : vector<1x32x1xf32> to vector<32x1xf32>
    %c0_166 = arith.constant 0 : index
    %c0_167 = arith.constant 0 : index
    %163 = vector.load %arg10[%c0_166, %c0_167] : memref<32x132xf32, #tpu.memory_space<vmem>>, vector<32x128xf32>
    %c0_168 = arith.constant 0 : index
    %c1_169 = arith.constant 1 : index
    %164 = vector.load %arg10[%c0_168, %c1_169] : memref<32x132xf32, #tpu.memory_space<vmem>>, vector<32x128xf32>
    %c0_170 = arith.constant 0 : index
    %c2_171 = arith.constant 2 : index
    %165 = vector.load %arg10[%c0_170, %c2_171] : memref<32x132xf32, #tpu.memory_space<vmem>>, vector<32x128xf32>
    %c0_172 = arith.constant 0 : index
    %c3_173 = arith.constant 3 : index
    %166 = vector.load %arg10[%c0_172, %c3_173] : memref<32x132xf32, #tpu.memory_space<vmem>>, vector<32x128xf32>
    %c0_174 = arith.constant 0 : index
    %c4_175 = arith.constant 4 : index
    %167 = vector.load %arg10[%c0_174, %c4_175] : memref<32x132xf32, #tpu.memory_space<vmem>>, vector<32x128xf32>
    %168 = tpu.concatenate %163, %164, %165, %166, %167 in 0 : vector<32x128xf32>, vector<32x128xf32>, vector<32x128xf32>, vector<32x128xf32>, vector<32x128xf32> -> vector<160x128xf32>
    %cst_176 = arith.constant dense<0.000000e+00> : vector<32x128xf32>
    %169 = tpu.matmul %160, %168, %cst_176 {dimension_numbers = #tpu.dot_dimension_numbers<[1], [0], [0], [1], [0, 0, 1, 1], [], []>} : vector<32x160xf32>, vector<160x128xf32>, vector<32x128xf32> -> vector<32x128xf32>
    %170 = vector.broadcast %162 : vector<32x1xf32> to vector<32x128xf32>
    %171 = arith.addf %169, %170 : vector<32x128xf32>
    %cst_177 = arith.constant 0.000000e+00 : f32
    %172 = vector.broadcast %cst_177 : f32 to vector<32x128xf32>
    %173 = arith.cmpf oge, %171, %172 : vector<32x128xf32>
    %cst_178 = arith.constant 3.200000e+01 : f32
    %174 = vector.broadcast %cst_178 : f32 to vector<32x128xf32>
    %175 = arith.mulf %174, %171 : vector<32x128xf32>
    %176 = arith.select %173, %171, %175 : vector<32x128xi1>, vector<32x128xf32>
    %cst_179 = arith.constant 0.000000e+00 : f32
    %177 = vector.shape_cast %6 : vector<1x128xi1> to vector<1x128xi1>
    %178 = vector.broadcast %177 : vector<1x128xi1> to vector<32x128xi1>
    %179 = vector.broadcast %cst_179 : f32 to vector<32x128xf32>
    %180 = arith.select %178, %176, %179 : vector<32x128xi1>, vector<32x128xf32>
    %c0_180 = arith.constant 0 : index
    %c2_181 = arith.constant 2 : index
    %181 = vector.load %arg11[%c0_180, %c2_181] : memref<32x132xf32, #tpu.memory_space<vmem>>, vector<32x128xf32>
    tpu.vector_store %arg11[%c0_180, %c2_181], %180 {strides = array<i32>} : memref<32x132xf32, #tpu.memory_space<vmem>>, vector<32x128xf32>,
    %c3_182 = arith.constant 3 : index
    %c0_183 = arith.constant 0 : index
    %c0_184 = arith.constant 0 : index
    %182 = vector.load %arg5[%c3_182, %c0_183, %c0_184] : memref<4x32x160xf32, #tpu.memory_space<vmem>>, vector<1x32x160xf32>
    %183 = vector.shape_cast %182 : vector<1x32x160xf32> to vector<32x160xf32>
    %c3_185 = arith.constant 3 : index
    %c0_186 = arith.constant 0 : index
    %c0_187 = arith.constant 0 : index
    %184 = vector.load %arg6[%c3_185, %c0_186, %c0_187] : memref<4x32x1xf32, #tpu.memory_space<vmem>>, vector<1x32x1xf32>
    %185 = vector.shape_cast %184 : vector<1x32x1xf32> to vector<32x1xf32>
    %c0_188 = arith.constant 0 : index
    %c0_189 = arith.constant 0 : index
    %186 = vector.load %arg11[%c0_188, %c0_189] : memref<32x132xf32, #tpu.memory_space<vmem>>, vector<32x128xf32>
    %c0_190 = arith.constant 0 : index
    %c1_191 = arith.constant 1 : index
    %187 = vector.load %arg11[%c0_190, %c1_191] : memref<32x132xf32, #tpu.memory_space<vmem>>, vector<32x128xf32>
    %c0_192 = arith.constant 0 : index
    %c2_193 = arith.constant 2 : index
    %188 = vector.load %arg11[%c0_192, %c2_193] : memref<32x132xf32, #tpu.memory_space<vmem>>, vector<32x128xf32>
    %c0_194 = arith.constant 0 : index
    %c3_195 = arith.constant 3 : index
    %189 = vector.load %arg11[%c0_194, %c3_195] : memref<32x132xf32, #tpu.memory_space<vmem>>, vector<32x128xf32>
    %c0_196 = arith.constant 0 : index
    %c4_197 = arith.constant 4 : index
    %190 = vector.load %arg11[%c0_196, %c4_197] : memref<32x132xf32, #tpu.memory_space<vmem>>, vector<32x128xf32>
    %191 = tpu.concatenate %186, %187, %188, %189, %190 in 0 : vector<32x128xf32>, vector<32x128xf32>, vector<32x128xf32>, vector<32x128xf32>, vector<32x128xf32> -> vector<160x128xf32>
    %cst_198 = arith.constant dense<0.000000e+00> : vector<32x128xf32>
    %192 = tpu.matmul %183, %191, %cst_198 {dimension_numbers = #tpu.dot_dimension_numbers<[1], [0], [0], [1], [0, 0, 1, 1], [], []>} : vector<32x160xf32>, vector<160x128xf32>, vector<32x128xf32> -> vector<32x128xf32>
    %193 = vector.broadcast %185 : vector<32x1xf32> to vector<32x128xf32>
    %194 = arith.addf %192, %193 : vector<32x128xf32>
    %c0_199 = arith.constant 0 : index
    %c2_200 = arith.constant 2 : index
    %195 = vector.load %arg10[%c0_199, %c2_200] : memref<32x132xf32, #tpu.memory_space<vmem>>, vector<32x128xf32>
    %196 = arith.addf %194, %195 : vector<32x128xf32>
    %cst_201 = arith.constant 0.000000e+00 : f32
    %197 = vector.shape_cast %6 : vector<1x128xi1> to vector<1x128xi1>
    %198 = vector.broadcast %197 : vector<1x128xi1> to vector<32x128xi1>
    %199 = vector.broadcast %cst_201 : f32 to vector<32x128xf32>
    %200 = arith.select %198, %196, %199 : vector<32x128xi1>, vector<32x128xf32>
    %c0_202 = arith.constant 0 : index
    %c2_203 = arith.constant 2 : index
    %201 = vector.load %arg10[%c0_202, %c2_203] : memref<32x132xf32, #tpu.memory_space<vmem>>, vector<32x128xf32>
    tpu.vector_store %arg10[%c0_202, %c2_203], %200 {strides = array<i32>} : memref<32x132xf32, #tpu.memory_space<vmem>>, vector<32x128xf32>,
    %c0_204 = arith.constant 0 : index
    %c2_205 = arith.constant 2 : index
    %202 = vector.load %arg10[%c0_204, %c2_205] : memref<32x132xf32, #tpu.memory_space<vmem>>, vector<32x128xf32>
    %c0_206 = arith.constant 0 : index
    %c0_207 = arith.constant 0 : index
    %203 = vector.load %arg7[%c0_206, %c0_207] : memref<8x32xf32, #tpu.memory_space<vmem>>, vector<8x32xf32>
    %cst_208 = arith.constant dense<0.000000e+00> : vector<8x128xf32>
    %204 = tpu.matmul %203, %202, %cst_208 {dimension_numbers = #tpu.dot_dimension_numbers<[1], [0], [0], [1], [0, 0, 1, 1], [], []>} : vector<8x32xf32>, vector<32x128xf32>, vector<8x128xf32> -> vector<8x128xf32>
    %c0_209 = arith.constant 0 : index
    %c0_210 = arith.constant 0 : index
    %205 = vector.load %arg8[%c0_209, %c0_210] : memref<8x1xf32, #tpu.memory_space<vmem>>, vector<8x1xf32>
    %206 = vector.broadcast %205 : vector<8x1xf32> to vector<8x128xf32>
    %207 = arith.addf %204, %206 : vector<8x128xf32>
    %cst_211 = arith.constant dense<0xFF800000> : vector<128xf32>
    %208 = vector.multi_reduction <maximumf>, %207, %cst_211 [0] : vector<8x128xf32> to vector<128xf32>
    %209 = vector.shape_cast %208 : vector<128xf32> to vector<1x128xf32>
    %210 = vector.broadcast %209 : vector<1x128xf32> to vector<8x128xf32>
    %211 = arith.subf %207, %210 : vector<8x128xf32>
    %212 = math.exp %211 : vector<8x128xf32>
    %cst_212 = arith.constant dense<0.000000e+00> : vector<128xf32>
    %213 = vector.multi_reduction <add>, %212, %cst_212 [0] : vector<8x128xf32> to vector<128xf32>
    %214 = vector.shape_cast %213 : vector<128xf32> to vector<1x128xf32>
    %215 = vector.broadcast %214 : vector<1x128xf32> to vector<8x128xf32>
    %216 = arith.divf %212, %215 : vector<8x128xf32>
    %c0_213 = arith.constant 0 : index
    %c0_214 = arith.constant 0 : index
    %c0_215 = arith.constant 0 : index
    %217 = vector.load %arg9[%c0_213, %c0_214, %c0_215] : memref<1x8x128xf32, #tpu.memory_space<vmem>>, vector<1x8x128xf32>
    %218 = vector.shape_cast %217 : vector<1x8x128xf32> to vector<8x128xf32>
    %219 = vector.shape_cast %216 : vector<8x128xf32> to vector<1x8x128xf32>
    tpu.vector_store %arg9[%c0_213, %c0_214, %c0_215], %219 {strides = array<i32>} : memref<1x8x128xf32, #tpu.memory_space<vmem>>, vector<1x8x128xf32>,
    return
  }
  func.func @transform_0(%arg0: i32) -> (i32, i32, i32, i32) {
    %c0_i32 = arith.constant 0 : i32
    %c0_i32_0 = arith.constant 0 : i32
    %c0_i32_1 = arith.constant 0 : i32
    %c0_i32_2 = arith.constant 0 : i32
    return %arg0, %c0_i32, %c0_i32_0, %c0_i32_1 : i32, i32, i32, i32
  }
  func.func @transform_1(%arg0: i32) -> (i32, i32) {
    %c0_i32 = arith.constant 0 : i32
    %c0_i32_0 = arith.constant 0 : i32
    %c0_i32_1 = arith.constant 0 : i32
    return %c0_i32, %c0_i32_0 : i32, i32
  }
  func.func @transform_2(%arg0: i32) -> (i32, i32, i32) {
    %c0_i32 = arith.constant 0 : i32
    %c0_i32_0 = arith.constant 0 : i32
    %c0_i32_1 = arith.constant 0 : i32
    %c0_i32_2 = arith.constant 0 : i32
    return %c0_i32, %c0_i32_0, %c0_i32_1 : i32, i32, i32
  }
  func.func @transform_3(%arg0: i32) -> (i32, i32, i32) {
    %c0_i32 = arith.constant 0 : i32
    %c0_i32_0 = arith.constant 0 : i32
    %c0_i32_1 = arith.constant 0 : i32
    %c0_i32_2 = arith.constant 0 : i32
    return %c0_i32, %c0_i32_0, %c0_i32_1 : i32, i32, i32
  }
  func.func @transform_4(%arg0: i32) -> (i32, i32, i32) {
    %c0_i32 = arith.constant 0 : i32
    %c0_i32_0 = arith.constant 0 : i32
    %c0_i32_1 = arith.constant 0 : i32
    %c0_i32_2 = arith.constant 0 : i32
    return %c0_i32, %c0_i32_0, %c0_i32_1 : i32, i32, i32
  }
  func.func @transform_5(%arg0: i32) -> (i32, i32, i32) {
    %c0_i32 = arith.constant 0 : i32
    %c0_i32_0 = arith.constant 0 : i32
    %c0_i32_1 = arith.constant 0 : i32
    %c0_i32_2 = arith.constant 0 : i32
    return %c0_i32, %c0_i32_0, %c0_i32_1 : i32, i32, i32
  }
  func.func @transform_6(%arg0: i32) -> (i32, i32) {
    %c0_i32 = arith.constant 0 : i32
    %c0_i32_0 = arith.constant 0 : i32
    %c0_i32_1 = arith.constant 0 : i32
    return %c0_i32, %c0_i32_0 : i32, i32
  }
  func.func @transform_7(%arg0: i32) -> (i32, i32) {
    %c0_i32 = arith.constant 0 : i32
    %c0_i32_0 = arith.constant 0 : i32
    %c0_i32_1 = arith.constant 0 : i32
    return %c0_i32, %c0_i32_0 : i32, i32
  }
  func.func @transform_8(%arg0: i32) -> (i32, i32, i32) {
    %c0_i32 = arith.constant 0 : i32
    %c0_i32_0 = arith.constant 0 : i32
    %c0_i32_1 = arith.constant 0 : i32
    return %arg0, %c0_i32, %c0_i32_0 : i32, i32, i32
  }
}

</mosaic_0001>

<llo_original>
// kernel: residual_cnn4block_forward.1
$region0: #{residual_cnn4block_forward.1}
  #allocation0 [shape = 'u32[]', space=smem, size = 0x4, offset = 0x4, fixed_abs, tag = 'smem constant byte address 0x4 - core index']
  #allocation1 [shape = 'u32[144,128]{1,0:T(1,128)}', space=vmem, size = 0x12000, scoped, tag = 'internal scratch']
  #allocation2 [shape = 'f32[32,132]{1,0:T(8,128)}', space=vmem, size = 0x8000, scoped, tag = 'scratch operand']
  #allocation3 [shape = 'f32[32,132]{1,0:T(8,128)}', space=vmem, size = 0x8000, scoped, tag = 'scratch operand']
  %s0 = inlined_call_operand.vmem [shape: f32[2,2,16,130], index: 0, kind: input, shape index: {}]
  %s1 = inlined_call_operand.vmem [shape: f32[32,80], index: 1, kind: input, shape index: {}]
  %s2 = inlined_call_operand.vmem [shape: f32[4,32,160], index: 2, kind: input, shape index: {}]
  %s3 = inlined_call_operand.vmem [shape: f32[4,32,1], index: 3, kind: input, shape index: {}]
  %s4 = inlined_call_operand.vmem [shape: f32[4,32,160], index: 4, kind: input, shape index: {}]
  %s5 = inlined_call_operand.vmem [shape: f32[4,32,1], index: 5, kind: input, shape index: {}]
  %s6 = inlined_call_operand.vmem [shape: f32[8,32], index: 6, kind: input, shape index: {}]
  %s7 = inlined_call_operand.vmem [shape: f32[8,1], index: 7, kind: input, shape index: {}]
  %s8 = inlined_call_operand.vmem [shape: f32[2,8,128], index: 8, kind: output, shape index: {}]
  %s9 = sld [smem:[#allocation0]]
  $region65: #{residual_cnn4block_forward.1} parent=0
    _
  %s11 = ssub.s32 1, %s9
  %s12 = scalar_select 0, %s11, %s9
  loop: start=0, step=1, limit=4
  $region2: #{residual_cnn4block_forward.1} parent=0 // loop_pre_header
    _
  $region3: #{residual_cnn4block_forward.1} parent=0 // loop_header
    %s14 = sphi 0, %s18
    %p15 = scmp.ge.s32.totalorder %s14, 4
    %s24 = sphi 0, %s26
    %s27 = sphi 0, %s24
    %s28 = sphi 0, %s27
    %s44 = sphi 0, %s28
    %s48 = sphi 0, %s48
    %s50 = sphi 0, %s48
    %s51 = sphi 0, %s50
    %s65 = sphi 0, %s51
    %s69 = sphi 0, %s69
    %s71 = sphi 0, %s69
    %s72 = sphi 0, %s71
    %s86 = sphi 0, %s72
    %s90 = sphi 0, %s90
    %s92 = sphi 0, %s90
    %s93 = sphi 0, %s92
    %s107 = sphi 0, %s93
    %s111 = sphi 0, %s111
    %s113 = sphi 0, %s111
    %s114 = sphi 0, %s113
    %s128 = sphi 0, %s114
    %s132 = sphi 0, %s132
    %s134 = sphi 0, %s132
    %s135 = sphi 0, %s134
    %s149 = sphi 0, %s135
    %s153 = sphi 0, %s153
    %s155 = sphi 0, %s153
    %s156 = sphi 0, %s155
    %s170 = sphi 0, %s156
    %s174 = sphi 0, %s174
    %s176 = sphi 0, %s174
    %s177 = sphi 0, %s176
    %s191 = sphi 0, %s177
    %s197 = sphi 0, %s199
    %s200 = sphi 0, %s197
    %s201 = sphi 0, %s200
    %s217 = sphi 0, %s201
  $region4: #{residual_cnn4block_forward.1} parent=0 // loop_header_branch
    %17 = sbr.rel (%p15) target = $region8
  $region5: #{residual_cnn4block_forward.1} parent=0 // loop_body
    %s19 = ssub.s32 %s14, 1
    %s20 = ssub.s32 %s14, 2
    %s21 = sadd.s32 %s14, 1
    %s22 = ssub.s32 %s14, %s21
    %p23 = scmp.eq.s32.totalorder %s22, 0
    %s25 = sadd.s32 %s24, 1
    %s26 = scalar_select %p23, %s24, %s25
    %p29 = pneg %p23
    %p30 = scmp.eq.s32.totalorder %s14, 1
    %p31 = por %p29, %p30
    %p32 = scmp.ne.s32.totalorder %s24, %s27
    %p33 = scmp.eq.s32.totalorder %s14, 0
    %p34 = por %p32, %p33
    %p35 = scmp.ne.s32.totalorder %s24, %s27
    %p36 = scmp.eq.s32.totalorder %s19, 1
    %p37 = por %p35, %p36
    %p38 = scmp.ne.s32.totalorder %s27, %s28
    %p39 = scmp.eq.s32.totalorder %s19, 0
    %p40 = por %p38, %p39
    %p41 = scmp.ne.s32.totalorder %s27, %s28
    %p42 = scmp.eq.s32.totalorder %s20, 1
    %p43 = por %p41, %p42
    %p45 = scmp.ne.s32.totalorder %s28, %s44
    %p46 = scmp.eq.s32.totalorder %s20, 0
    %p47 = por %p45, %p46
    %s49 = sadd.s32 %s48, 1
    %p52 = scmp.eq.s32.totalorder %s14, 1
    %p53 = scmp.ne.s32.totalorder %s48, %s50
    %p54 = scmp.eq.s32.totalorder %s14, 0
    %p55 = por %p53, %p54
    %p56 = scmp.ne.s32.totalorder %s48, %s50
    %p57 = scmp.eq.s32.totalorder %s19, 1
    %p58 = por %p56, %p57
    %p59 = scmp.ne.s32.totalorder %s50, %s51
    %p60 = scmp.eq.s32.totalorder %s19, 0
    %p61 = por %p59, %p60
    %p62 = scmp.ne.s32.totalorder %s50, %s51
    %p63 = scmp.eq.s32.totalorder %s20, 1
    %p64 = por %p62, %p63
    %p66 = scmp.ne.s32.totalorder %s51, %s65
    %p67 = scmp.eq.s32.totalorder %s20, 0
    %p68 = por %p66, %p67
    %s70 = sadd.s32 %s69, 1
    %p73 = scmp.eq.s32.totalorder %s14, 1
    %p74 = scmp.ne.s32.totalorder %s69, %s71
    %p75 = scmp.eq.s32.totalorder %s14, 0
    %p76 = por %p74, %p75
    %p77 = scmp.ne.s32.totalorder %s69, %s71
    %p78 = scmp.eq.s32.totalorder %s19, 1
    %p79 = por %p77, %p78
    %p80 = scmp.ne.s32.totalorder %s71, %s72
    %p81 = scmp.eq.s32.totalorder %s19, 0
    %p82 = por %p80, %p81
    %p83 = scmp.ne.s32.totalorder %s71, %s72
    %p84 = scmp.eq.s32.totalorder %s20, 1
    %p85 = por %p83, %p84
    %p87 = scmp.ne.s32.totalorder %s72, %s86
    %p88 = scmp.eq.s32.totalorder %s20, 0
    %p89 = por %p87, %p88
    %s91 = sadd.s32 %s90, 1
    %p94 = scmp.eq.s32.totalorder %s14, 1
    %p95 = scmp.ne.s32.totalorder %s90, %s92
    %p96 = scmp.eq.s32.totalorder %s14, 0
    %p97 = por %p95, %p96
    %p98 = scmp.ne.s32.totalorder %s90, %s92
    %p99 = scmp.eq.s32.totalorder %s19, 1
    %p100 = por %p98, %p99
    %p101 = scmp.ne.s32.totalorder %s92, %s93
    %p102 = scmp.eq.s32.totalorder %s19, 0
    %p103 = por %p101, %p102
    %p104 = scmp.ne.s32.totalorder %s92, %s93
    %p105 = scmp.eq.s32.totalorder %s20, 1
    %p106 = por %p104, %p105
    %p108 = scmp.ne.s32.totalorder %s93, %s107
    %p109 = scmp.eq.s32.totalorder %s20, 0
    %p110 = por %p108, %p109
    %s112 = sadd.s32 %s111, 1
    %p115 = scmp.eq.s32.totalorder %s14, 1
    %p116 = scmp.ne.s32.totalorder %s111, %s113
    %p117 = scmp.eq.s32.totalorder %s14, 0
    %p118 = por %p116, %p117
    %p119 = scmp.ne.s32.totalorder %s111, %s113
    %p120 = scmp.eq.s32.totalorder %s19, 1
    %p121 = por %p119, %p120
    %p122 = scmp.ne.s32.totalorder %s113, %s114
    %p123 = scmp.eq.s32.totalorder %s19, 0
    %p124 = por %p122, %p123
    %p125 = scmp.ne.s32.totalorder %s113, %s114
    %p126 = scmp.eq.s32.totalorder %s20, 1
    %p127 = por %p125, %p126
    %p129 = scmp.ne.s32.totalorder %s114, %s128
    %p130 = scmp.eq.s32.totalorder %s20, 0
    %p131 = por %p129, %p130
    %s133 = sadd.s32 %s132, 1
    %p136 = scmp.eq.s32.totalorder %s14, 1
    %p137 = scmp.ne.s32.totalorder %s132, %s134
    %p138 = scmp.eq.s32.totalorder %s14, 0
    %p139 = por %p137, %p138
    %p140 = scmp.ne.s32.totalorder %s132, %s134
    %p141 = scmp.eq.s32.totalorder %s19, 1
    %p142 = por %p140, %p141
    %p143 = scmp.ne.s32.totalorder %s134, %s135
    %p144 = scmp.eq.s32.totalorder %s19, 0
    %p145 = por %p143, %p144
    %p146 = scmp.ne.s32.totalorder %s134, %s135
    %p147 = scmp.eq.s32.totalorder %s20, 1
    %p148 = por %p146, %p147
    %p150 = scmp.ne.s32.totalorder %s135, %s149
    %p151 = scmp.eq.s32.totalorder %s20, 0
    %p152 = por %p150, %p151
    %s154 = sadd.s32 %s153, 1
    %p157 = scmp.eq.s32.totalorder %s14, 1
    %p158 = scmp.ne.s32.totalorder %s153, %s155
    %p159 = scmp.eq.s32.totalorder %s14, 0
    %p160 = por %p158, %p159
    %p161 = scmp.ne.s32.totalorder %s153, %s155
    %p162 = scmp.eq.s32.totalorder %s19, 1
    %p163 = por %p161, %p162
    %p164 = scmp.ne.s32.totalorder %s155, %s156
    %p165 = scmp.eq.s32.totalorder %s19, 0
    %p166 = por %p164, %p165
    %p167 = scmp.ne.s32.totalorder %s155, %s156
    %p168 = scmp.eq.s32.totalorder %s20, 1
    %p169 = por %p167, %p168
    %p171 = scmp.ne.s32.totalorder %s156, %s170
    %p172 = scmp.eq.s32.totalorder %s20, 0
    %p173 = por %p171, %p172
    %s175 = sadd.s32 %s174, 1
    %p178 = scmp.eq.s32.totalorder %s14, 1
    %p179 = scmp.ne.s32.totalorder %s174, %s176
    %p180 = scmp.eq.s32.totalorder %s14, 0
    %p181 = por %p179, %p180
    %p182 = scmp.ne.s32.totalorder %s174, %s176
    %p183 = scmp.eq.s32.totalorder %s19, 1
    %p184 = por %p182, %p183
    %p185 = scmp.ne.s32.totalorder %s176, %s177
    %p186 = scmp.eq.s32.totalorder %s19, 0
    %p187 = por %p185, %p186
    %p188 = scmp.ne.s32.totalorder %s176, %s177
    %p189 = scmp.eq.s32.totalorder %s20, 1
    %p190 = por %p188, %p189
    %p192 = scmp.ne.s32.totalorder %s177, %s191
    %p193 = scmp.eq.s32.totalorder %s20, 0
    %p194 = por %p192, %p193
    %s195 = ssub.s32 %s14, %s21
    %p196 = scmp.eq.s32.totalorder %s195, 0
    %s198 = sadd.s32 %s197, 1
    %s199 = scalar_select %p196, %s197, %s198
    %p202 = pneg %p196
    %p203 = scmp.eq.s32.totalorder %s14, 1
    %p204 = por %p202, %p203
    %p205 = scmp.ne.s32.totalorder %s197, %s200
    %p206 = scmp.eq.s32.totalorder %s14, 0
    %p207 = por %p205, %p206
    %p208 = scmp.ne.s32.totalorder %s197, %s200
    %p209 = scmp.eq.s32.totalorder %s19, 1
    %p210 = por %p208, %p209
    %p211 = scmp.ne.s32.totalorder %s200, %s201
    %p212 = scmp.eq.s32.totalorder %s19, 0
    %p213 = por %p211, %p212
    %p214 = scmp.ne.s32.totalorder %s200, %s201
    %p215 = scmp.eq.s32.totalorder %s20, 1
    %p216 = por %p214, %p215
    %p218 = scmp.ne.s32.totalorder %s201, %s217
    %p219 = scmp.eq.s32.totalorder %s20, 0
    %p220 = por %p218, %p219
    %p221 = scmp.le.s32.totalorder 1, %s14
    %p222 = scmp.lt.s32.totalorder %s14, 3
    %p223 = pnand %p221, %p222
    %p224 = pneg %p223
    // Predicated region
    $region9: #{residual_cnn4block_forward.1} parent=5 // pred_check
      _
    $region10: #{residual_cnn4block_forward.1} parent=5 // pred_check_branch
      %226 = sbr.rel (%p223) target = $region12
    $region11: #{residual_cnn4block_forward.1} parent=5 // pred_region
      %s227 = ssub.s32 %s14, 1
      // Predicated region
      $region13: #{residual_cnn4block_forward.1} parent=11 // pred_check
        %p228 = pneg %p61
      $region14: #{residual_cnn4block_forward.1} parent=11 // pred_check_branch
        %230 = sbr.rel (%p228) target = $region16
      $region15: #{residual_cnn4block_forward.1} parent=11 // pred_region
        _
      $region16: #{residual_cnn4block_forward.1} parent=11 // pred_fallthru
        _
      // Predicated region
      $region17: #{residual_cnn4block_forward.1} parent=11 // pred_check
        %p231 = pneg %p82
      $region18: #{residual_cnn4block_forward.1} parent=11 // pred_check_branch
        %233 = sbr.rel (%p231) target = $region20
      $region19: #{residual_cnn4block_forward.1} parent=11 // pred_region
        _
      $region20: #{residual_cnn4block_forward.1} parent=11 // pred_fallthru
        _
      // Predicated region
      $region21: #{residual_cnn4block_forward.1} parent=11 // pred_check
        %p234 = pneg %p103
      $region22: #{residual_cnn4block_forward.1} parent=11 // pred_check_branch
        %236 = sbr.rel (%p234) target = $region24
      $region23: #{residual_cnn4block_forward.1} parent=11 // pred_region
        _
      $region24: #{residual_cnn4block_forward.1} parent=11 // pred_fallthru
        _
      // Predicated region
      $region25: #{residual_cnn4block_forward.1} parent=11 // pred_check
        %p237 = pneg %p124
      $region26: #{residual_cnn4block_forward.1} parent=11 // pred_check_branch
        %239 = sbr.rel (%p237) target = $region28
      $region27: #{residual_cnn4block_forward.1} parent=11 // pred_region
        _
      $region28: #{residual_cnn4block_forward.1} parent=11 // pred_fallthru
        _
      // Predicated region
      $region29: #{residual_cnn4block_forward.1} parent=11 // pred_check
        %p240 = pneg %p145
      $region30: #{residual_cnn4block_forward.1} parent=11 // pred_check_branch
        %242 = sbr.rel (%p240) target = $region32
      $region31: #{residual_cnn4block_forward.1} parent=11 // pred_region
        _
      $region32: #{residual_cnn4block_forward.1} parent=11 // pred_fallthru
        _
      // Predicated region
      $region33: #{residual_cnn4block_forward.1} parent=11 // pred_check
        %p243 = pneg %p166
      $region34: #{residual_cnn4block_forward.1} parent=11 // pred_check_branch
        %245 = sbr.rel (%p243) target = $region36
      $region35: #{residual_cnn4block_forward.1} parent=11 // pred_region
        _
      $region36: #{residual_cnn4block_forward.1} parent=11 // pred_fallthru
        _
      // Predicated region
      $region37: #{residual_cnn4block_forward.1} parent=11 // pred_check
        %p246 = pneg %p187
      $region38: #{residual_cnn4block_forward.1} parent=11 // pred_check_branch
        %248 = sbr.rel (%p246) target = $region40
      $region39: #{residual_cnn4block_forward.1} parent=11 // pred_region
        _
      $region40: #{residual_cnn4block_forward.1} parent=11 // pred_fallthru
        _
    $region12: #{residual_cnn4block_forward.1} parent=5 // pred_fallthru
      _
    %p249 = scmp.lt.s32.totalorder %s14, 2
    // Predicated region
    $region41: #{residual_cnn4block_forward.1} parent=5 // pred_check
      %p250 = pneg %p249
    $region42: #{residual_cnn4block_forward.1} parent=5 // pred_check_branch
      %252 = sbr.rel (%p250) target = $region44
    $region43: #{residual_cnn4block_forward.1} parent=5 // pred_region
      // Predicated region
      $region45: #{residual_cnn4block_forward.1} parent=43 // pred_check
        %p253 = pneg %p34
      $region46: #{residual_cnn4block_forward.1} parent=43 // pred_check_branch
        %255 = sbr.rel (%p253) target = $region48
      $region47: #{residual_cnn4block_forward.1} parent=43 // pred_region
        %p256 = scmp.lt.s32.totalorder %s14, 1
        %s257 = scalar_select %p256, %s14, 1
        %s258 = smul.addr %s257, 8
        %s259 = smul.addr %s258, 8
        %s260 = scalar_lea.vmem %s0, %s259
      $region48: #{residual_cnn4block_forward.1} parent=43 // pred_fallthru
        _
    $region44: #{residual_cnn4block_forward.1} parent=5 // pred_fallthru
      _
    %p261 = scmp.le.s32.totalorder 1, %s14
    %p262 = scmp.lt.s32.totalorder %s14, 3
    %p263 = pnand %p261, %p262
    %p264 = pneg %p263
    // Predicated region
    $region49: #{residual_cnn4block_forward.1} parent=5 // pred_check
      _
    $region50: #{residual_cnn4block_forward.1} parent=5 // pred_check_branch
      %266 = sbr.rel (%p263) target = $region52
    $region51: #{residual_cnn4block_forward.1} parent=5 // pred_region
      %s267 = ssub.s32 %s14, 1
      %p268 = scmp.lt.s32.totalorder %s19, 1
      %s269 = scalar_select %p268, %s19, 1
      %s270 = smul.addr %s269, 8
      %s271 = smul.addr %s270, 8
      %s272 = scalar_lea.vmem %s0, %s271
      %p273 = pneg %p40
      %p274 = pneg %p37
      %p275 = pneg %p61
      %p276 = pneg %p58
      %p277 = pneg %p82
      %p278 = pneg %p79
      %p279 = pneg %p103
      %p280 = pneg %p100
      %p281 = pneg %p124
      %p282 = pneg %p121
      %p283 = pneg %p145
      %p284 = pneg %p142
      %p285 = pneg %p166
      %p286 = pneg %p163
      %p287 = pneg %p187
      %p288 = pneg %p184
      %p289 = pneg %p213
      %p290 = pneg %p210
      %p291 = scmp.lt.s32.totalorder %s19, 1
      %s292 = scalar_select %p291, %s19, 1
      %s293 = smul.addr %s292, 8
      %s294 = scalar_lea.vmem %s8, %s293
      %p295 = scmp.lt.s32.totalorder %s19, 1
      %s296 = scalar_select %p295, %s19, 1
      %s297 = smul.addr %s296, 8
      %s298 = smul.addr %s297, 8
      %s299 = scalar_lea.vmem %s0, %s298
      %p300 = scmp.lt.s32.totalorder %s19, 1
      %s301 = scalar_select %p300, %s19, 1
      %s302 = smul.addr %s301, 8
      %s303 = scalar_lea.vmem %s8, %s302
      %304 = vst [vmem:[#allocation2] sm:$0xff] 0.0
      %vm305 = vcmask 31744
      %306 = vst.msk [vmem:[#allocation2 + $0x8] sm:$0xff] %vm305, 0.0
      %307 = vst [vmem:[#allocation2 + $0x10] sm:$0xff] 0.0
      %308 = vst.msk [vmem:[#allocation2 + $0x18] sm:$0xff] %vm305, 0.0
      %309 = vst [vmem:[#allocation2 + $0x20] sm:$0xff] 0.0
      %310 = vst.msk [vmem:[#allocation2 + $0x28] sm:$0xff] %vm305, 0.0
      %311 = vst [vmem:[#allocation2 + $0x30] sm:$0xff] 0.0
      %312 = vst.msk [vmem:[#allocation2 + $0x38] sm:$0xff] %vm305, 0.0
      %313 = vst [vmem:[#allocation3] sm:$0xff] 0.0
      %314 = vst.msk [vmem:[#allocation3 + $0x8] sm:$0xff] %vm305, 0.0
      %315 = vst [vmem:[#allocation3 + $0x10] sm:$0xff] 0.0
      %316 = vst.msk [vmem:[#allocation3 + $0x18] sm:$0xff] %vm305, 0.0
      %317 = vst [vmem:[#allocation3 + $0x20] sm:$0xff] 0.0
      %318 = vst.msk [vmem:[#allocation3 + $0x28] sm:$0xff] %vm305, 0.0
      %319 = vst [vmem:[#allocation3 + $0x30] sm:$0xff] 0.0
      %320 = vst.msk [vmem:[#allocation3 + $0x38] sm:$0xff] %vm305, 0.0
      %v321 = vlaneseq
      %v322 = vand.u32 %v321, 127
      %vm323 = vcmp.lt.s32.totalorder %v322, 30
      %v324 = vld [vmem:[%s299] sm:$0xff]
      %v325 = vld [vmem:[%s299 + $0x10] sm:$0xff]
      %s326 = scalar_lea.vmem %s299, 32
      %v327 = vld [vmem:[%s326] sm:$0xff]
      %v328 = vld [vmem:[%s326 + $0x10] sm:$0xff]
      %v329 = vld [vmem:[%s299 + $0x8] sm:$0xff]
      %v330 = vld [vmem:[%s299 + $0x18] sm:$0xff]
      %v331 = vld [vmem:[%s326 + $0x8] sm:$0xff]
      %v332 = vld [vmem:[%s326 + $0x18] sm:$0xff]
      %337 = vrot.lane.b32.xlu0 %v324, 127
      %v338 = vpop.permute.xlu0 %337
      %339 = vrot.lane.b32.xlu0 %v329, 127
      %v340 = vpop.permute.xlu0 %339
      %341 = vrot.lane.b32.xlu0 %v325, 127
      %v342 = vpop.permute.xlu0 %341
      %343 = vrot.lane.b32.xlu0 %v330, 127
      %v344 = vpop.permute.xlu0 %343
      %vm345 = vcmask 1039360
      %v346 = vsel %vm345, %v338, %v340
      %v347 = vsel %vm345, %v342, %v344
      %354 = vrot.lane.b32.xlu0 %v327, 127
      %v355 = vpop.permute.xlu0 %354
      %356 = vrot.lane.b32.xlu0 %v331, 127
      %v357 = vpop.permute.xlu0 %356
      %358 = vrot.lane.b32.xlu0 %v328, 127
      %v359 = vpop.permute.xlu0 %358
      %360 = vrot.lane.b32.xlu0 %v332, 127
      %v361 = vpop.permute.xlu0 %360
      %v362 = vsel %vm345, %v355, %v357
      %v363 = vsel %vm345, %v359, %v361
      %366 = vrot.lane.b32.xlu0 %v324, 126
      %v367 = vpop.permute.xlu0 %366
      %368 = vrot.lane.b32.xlu0 %v329, 126
      %v369 = vpop.permute.xlu0 %368
      %370 = vrot.lane.b32.xlu0 %v325, 126
      %v371 = vpop.permute.xlu0 %370
      %372 = vrot.lane.b32.xlu0 %v330, 126
      %v373 = vpop.permute.xlu0 %372
      %vm374 = vcmask 1031168
      %v375 = vsel %vm374, %v367, %v369
      %v376 = vsel %vm374, %v371, %v373
      %v379 = vld [vmem:[%s1] sm:$0xff]
      %v380 = vld [vmem:[%s1 + $0x8] sm:$0xff]
      %v381 = vld [vmem:[%s1 + $0x10] sm:$0xff]
      %v382 = vld [vmem:[%s1 + $0x18] sm:$0xff]
      %vm383 = vcmask 654336
      %v385 = vsel %vm383, %v379, 0
      %v388 = vsel %vm383, %v380, 0
      %v391 = vsel %vm383, %v381, 0
      %v394 = vsel %vm383, %v382, 0
      %396 = vmatprep.subr.mxu0 0.0
      %397 = vmatpush1.msra.mxu0 %v324
      %398 = vmatprep.subr.mxu0 0.0
      %399 = vmatpush1.msra.mxu0 %v325
      %400 = vmatprep.subr.mxu0 0.0
      %401 = vmatpush1.msra.mxu0 %v327
      %402 = vmatprep.subr.mxu0 0.0
      %403 = vmatpush1.msra.mxu0 %v328
      %404 = vmatprep.subr.mxu0 0.0
      %405 = vmatpush1.msra.mxu0 %v346
      %406 = vmatprep.subr.mxu0 0.0
      %407 = vmatpush1.msra.mxu0 %v347
      %408 = vmatprep.subr.mxu0 0.0
      %409 = vmatpush1.msra.mxu0 %v362
      %410 = vmatprep.subr.mxu0 0.0
      %411 = vmatpush1.msra.mxu0 %v363
      %412 = vmatprep.subr.mxu0 0.0
      %413 = vmatpush1.msra.mxu0 %v375
      %414 = vmatprep.subr.mxu0 0.0
      %415 = vmatpush1.msra.mxu0 %v376
      %416 = vmatprep.subr.mxu0 0.0
      %417 = vmatpush1.msra.mxu0 0.0
      %418 = vmatprep.subr.mxu0 0.0
      %419 = vmatpush1.msra.mxu0 0.0
      %420 = vmatprep.subr.mxu0 0.0
      %421 = vmatpush1.msra.mxu0 0.0
      %422 = vmatprep.subr.mxu0 0.0
      %423 = vmatpush1.msra.mxu0 0.0
      %424 = vmatprep.subr.mxu0 0.0
      %425 = vmatpush1.msra.mxu0 0.0
      %426 = vmatprep.subr.mxu0 0.0
      %427 = vmatpush1.msra.mxu0 0.0
      %428 = vmatprep.subr.mxu0 0.0
      %429 = vmatpush1.msra.mxu0 0.0
      %430 = vmatprep.subr.mxu0 0.0
      %431 = vmatpush1.msra.mxu0 0.0
      %432 = vmatprep.subr.mxu0 0.0
      %433 = vmatpush1.msra.mxu0 0.0
      %434 = vmatprep.subr.mxu0 0.0
      %435 = vmatpush1.msra.mxu0 0.0
      %436 = vmatprep.subr.mxu0 0.0
      %437 = vmatpush1.msra.mxu0 0.0
      %438 = vmatprep.subr.mxu0 0.0
      %439 = vmatpush1.msra.mxu0 0.0
      %440 = vmatprep.subr.mxu0 0.0
      %441 = vmatpush1.msra.mxu0 0.0
      %442 = vmatprep.subr.mxu0 0.0
      %443 = vmatpush1.msra.mxu0 0.0
      %444 = vmatprep.subr.mxu0 0.0
      %445 = vmatpush1.msra.mxu0 0.0
      %446 = vmatprep.subr.mxu0 0.0
      %447 = vmatpush1.msra.mxu0 0.0
      %448 = vmatprep.subr.mxu0 0.0
      %449 = vmatpush1.msra.mxu0 0.0
      %450 = vmatprep.subr.mxu0 0.0
      %451 = vmatpush1.msra.mxu0 0.0
      %452 = vmatprep.subr.mxu0 0.0
      %453 = vmatpush1.msra.mxu0 0.0
      %454 = vmatprep.subr.mxu0 0.0
      %455 = vmatpush1.msra.mxu0 0.0
      %456 = vmatprep.subr.mxu0 0.0
      %457 = vmatpush1.msra.mxu0 0.0
      %458 = vmatprep.subr.mxu0 0.0
      %459 = vmatpush1.msra.mxu0 0.0
      %460 = vmatprep.mubr.f32.mxu0 0.0
      %461 = vmatmul.mubr.f32.gmra.mrb[0].mxu0 %v385
      %v462 = vpop.f32.mrb[0].mxu0
      %v463 = vadd.f32 0.0, %v462
      %v464 = vpop.f32.mrb[0].mxu0
      %465 = vmatprep.mubr.f32.mxu0 0.0
      %466 = vmatmul.mubr.f32.gmra.mrb[0].mxu0 %v388
      %v467 = vpop.f32.mrb[0].mxu0
      %v468 = vadd.f32 0.0, %v467
      %v469 = vpop.f32.mrb[0].mxu0
      %470 = vmatprep.mubr.f32.mxu0 0.0
      %471 = vmatmul.mubr.f32.gmra.mrb[0].mxu0 %v391
      %v472 = vpop.f32.mrb[0].mxu0
      %v473 = vadd.f32 0.0, %v472
      %v474 = vpop.f32.mrb[0].mxu0
      %475 = vmatprep.mubr.f32.mxu0 0.0
      %476 = vmatmul.mubr.f32.gmra.mrb[0].mxu0 %v394
      %v477 = vpop.f32.mrb[0].mxu0
      %v478 = vadd.f32 0.0, %v477
      %v479 = vpop.f32.mrb[0].mxu0
      %480 = vdwg.mxu0
      %vm481 = vcmp.ge.f32.partialorder %v463, 0.0
      %vm482 = vcmp.ge.f32.partialorder %v468, 0.0
      %vm483 = vcmp.ge.f32.partialorder %v473, 0.0
      %vm484 = vcmp.ge.f32.partialorder %v478, 0.0
      %v485 = vmul.f32 %v463, 32.0
      %v486 = vmul.f32 %v468, 32.0
      %v487 = vmul.f32 %v473, 32.0
      %v488 = vmul.f32 %v478, 32.0
      %v489 = vsel %vm481, %v463, %v485
      %v490 = vsel %vm482, %v468, %v486
      %v491 = vsel %vm483, %v473, %v487
      %v492 = vsel %vm484, %v478, %v488
      %v493 = vsel %vm323, 1, 0
      %vm494 = vcmp.eq.s32.totalorder %v493, 1
      %v495 = vsel %vm494, %v489, 0.0
      %v496 = vsel %vm494, %v490, 0.0
      %v497 = vsel %vm494, %v491, 0.0
      %v498 = vsel %vm494, %v492, 0.0
      %503 = vrot.lane.b32.xlu0 %v495, 2
      %v504 = vpop.permute.xlu0 %503
      %505 = vrot.lane.b32.xlu0 %v496, 2
      %v506 = vpop.permute.xlu0 %505
      %507 = vrot.lane.b32.xlu0 %v497, 2
      %v508 = vpop.permute.xlu0 %507
      %509 = vrot.lane.b32.xlu0 %v498, 2
      %v510 = vpop.permute.xlu0 %509
      %vm515 = vcmask 1047568
      %516 = vst.msk [vmem:[#allocation2] sm:$0xff] %vm515, %v504
      %vm517 = vcmask 15360
      %518 = vst.msk [vmem:[#allocation2 + $0x8] sm:$0xff] %vm517, %v504
      %519 = vst.msk [vmem:[#allocation2 + $0x10] sm:$0xff] %vm515, %v506
      %520 = vst.msk [vmem:[#allocation2 + $0x18] sm:$0xff] %vm517, %v506
      %521 = vst.msk [vmem:[#allocation2 + $0x20] sm:$0xff] %vm515, %v508
      %522 = vst.msk [vmem:[#allocation2 + $0x28] sm:$0xff] %vm517, %v508
      %523 = vst.msk [vmem:[#allocation2 + $0x30] sm:$0xff] %vm515, %v510
      %524 = vst.msk [vmem:[#allocation2 + $0x38] sm:$0xff] %vm517, %v510
      %v525 = vld [vmem:[%s2] sm:$0xff]
      %v526 = vld [vmem:[%s2 + $0x8] sm:$0xff]
      %v527 = vld [vmem:[%s2 + $0x10] sm:$0xff]
      %v528 = vld [vmem:[%s2 + $0x18] sm:$0xff]
      %v529 = vld [vmem:[%s2 + $0x20] sm:$0xff]
      %v530 = vld [vmem:[%s2 + $0x28] sm:$0xff]
      %v531 = vld [vmem:[%s2 + $0x30] sm:$0xff]
      %v532 = vld [vmem:[%s2 + $0x38] sm:$0xff]
      %v533 = vld [vmem:[%s3] sm:$0xff]
      %v534 = vld [vmem:[%s3 + $0x8] sm:$0xff]
      %v535 = vld [vmem:[%s3 + $0x10] sm:$0xff]
      %v536 = vld [vmem:[%s3 + $0x18] sm:$0xff]
      %v537 = vld [vmem:[#allocation2] sm:$0xff]
      %v538 = vld [vmem:[#allocation2 + $0x10] sm:$0xff]
      %v539 = vld [vmem:[#allocation2 + $0x20] sm:$0xff]
      %v540 = vld [vmem:[#allocation2 + $0x30] sm:$0xff]
      %v541 = vld [vmem:[#allocation2 + $0x8] sm:$0xff]
      %v542 = vld [vmem:[#allocation2 + $0x18] sm:$0xff]
      %v543 = vld [vmem:[#allocation2 + $0x28] sm:$0xff]
      %v544 = vld [vmem:[#allocation2 + $0x38] sm:$0xff]
      %553 = vrot.lane.b32.xlu0 %v537, 127
      %v554 = vpop.permute.xlu0 %553
      %555 = vrot.lane.b32.xlu0 %v541, 127
      %v556 = vpop.permute.xlu0 %555
      %557 = vrot.lane.b32.xlu0 %v538, 127
      %v558 = vpop.permute.xlu0 %557
      %559 = vrot.lane.b32.xlu0 %v542, 127
      %v560 = vpop.permute.xlu0 %559
      %561 = vrot.lane.b32.xlu0 %v539, 127
      %v562 = vpop.permute.xlu0 %561
      %563 = vrot.lane.b32.xlu0 %v543, 127
      %v564 = vpop.permute.xlu0 %563
      %565 = vrot.lane.b32.xlu0 %v540, 127
      %v566 = vpop.permute.xlu0 %565
      %567 = vrot.lane.b32.xlu0 %v544, 127
      %v568 = vpop.permute.xlu0 %567
      %v569 = vsel %vm345, %v554, %v556
      %v570 = vsel %vm345, %v558, %v560
      %v571 = vsel %vm345, %v562, %v564
      %v572 = vsel %vm345, %v566, %v568
      %577 = vrot.lane.b32.xlu0 %v537, 126
      %v578 = vpop.permute.xlu0 %577
      %579 = vrot.lane.b32.xlu0 %v541, 126
      %v580 = vpop.permute.xlu0 %579
      %581 = vrot.lane.b32.xlu0 %v538, 126
      %v582 = vpop.permute.xlu0 %581
      %583 = vrot.lane.b32.xlu0 %v542, 126
      %v584 = vpop.permute.xlu0 %583
      %585 = vrot.lane.b32.xlu0 %v539, 126
      %v586 = vpop.permute.xlu0 %585
      %587 = vrot.lane.b32.xlu0 %v543, 126
      %v588 = vpop.permute.xlu0 %587
      %589 = vrot.lane.b32.xlu0 %v540, 126
      %v590 = vpop.permute.xlu0 %589
      %591 = vrot.lane.b32.xlu0 %v544, 126
      %v592 = vpop.permute.xlu0 %591
      %v593 = vsel %vm374, %v578, %v580
      %v594 = vsel %vm374, %v582, %v584
      %v595 = vsel %vm374, %v586, %v588
      %v596 = vsel %vm374, %v590, %v592
      %601 = vrot.lane.b32.xlu0 %v537, 125
      %v602 = vpop.permute.xlu0 %601
      %603 = vrot.lane.b32.xlu0 %v541, 125
      %v604 = vpop.permute.xlu0 %603
      %605 = vrot.lane.b32.xlu0 %v538, 125
      %v606 = vpop.permute.xlu0 %605
      %607 = vrot.lane.b32.xlu0 %v542, 125
      %v608 = vpop.permute.xlu0 %607
      %609 = vrot.lane.b32.xlu0 %v539, 125
      %v610 = vpop.permute.xlu0 %609
      %611 = vrot.lane.b32.xlu0 %v543, 125
      %v612 = vpop.permute.xlu0 %611
      %613 = vrot.lane.b32.xlu0 %v540, 125
      %v614 = vpop.permute.xlu0 %613
      %615 = vrot.lane.b32.xlu0 %v544, 125
      %v616 = vpop.permute.xlu0 %615
      %vm617 = vcmask 1022976
      %v618 = vsel %vm617, %v602, %v604
      %v619 = vsel %vm617, %v606, %v608
      %v620 = vsel %vm617, %v610, %v612
      %v621 = vsel %vm617, %v614, %v616
      %626 = vrot.lane.b32.xlu0 %v537, 124
      %v627 = vpop.permute.xlu0 %626
      %628 = vrot.lane.b32.xlu0 %v541, 124
      %v629 = vpop.permute.xlu0 %628
      %630 = vrot.lane.b32.xlu0 %v538, 124
      %v631 = vpop.permute.xlu0 %630
      %632 = vrot.lane.b32.xlu0 %v542, 124
      %v633 = vpop.permute.xlu0 %632
      %634 = vrot.lane.b32.xlu0 %v539, 124
      %v635 = vpop.permute.xlu0 %634
      %636 = vrot.lane.b32.xlu0 %v543, 124
      %v637 = vpop.permute.xlu0 %636
      %638 = vrot.lane.b32.xlu0 %v540, 124
      %v639 = vpop.permute.xlu0 %638
      %640 = vrot.lane.b32.xlu0 %v544, 124
      %v641 = vpop.permute.xlu0 %640
      %vm642 = vcmask 1014784
      %v643 = vsel %vm642, %v627, %v629
      %v644 = vsel %vm642, %v631, %v633
      %v645 = vsel %vm642, %v635, %v637
      %v646 = vsel %vm642, %v639, %v641
      %652 = vset.pattern.permute.xlu0 0
      %653 = vperm.xlu0 %652, %v533
      %v654 = vpop.permute.xlu0 %653
      %657 = vset.pattern.permute.xlu0 0
      %658 = vperm.xlu0 %657, %v534
      %v659 = vpop.permute.xlu0 %658
      %662 = vset.pattern.permute.xlu0 0
      %663 = vperm.xlu0 %662, %v535
      %v664 = vpop.permute.xlu0 %663
      %667 = vset.pattern.permute.xlu0 0
      %668 = vperm.xlu0 %667, %v536
      %v669 = vpop.permute.xlu0 %668
      %vm671 = vcmask 261120
      %v673 = vsel %vm671, %v526, 0
      %v676 = vsel %vm671, %v528, 0
      %v679 = vsel %vm671, %v530, 0
      %v682 = vsel %vm671, %v532, 0
      %684 = vmatprep.subr.mxu0 0.0
      %685 = vmatpush1.msra.mxu0 %v537
      %686 = vmatprep.subr.mxu0 0.0
      %687 = vmatpush1.msra.mxu0 %v538
      %688 = vmatprep.subr.mxu0 0.0
      %689 = vmatpush1.msra.mxu0 %v539
      %690 = vmatprep.subr.mxu0 0.0
      %691 = vmatpush1.msra.mxu0 %v540
      %692 = vmatprep.subr.mxu0 0.0
      %693 = vmatpush1.msra.mxu0 %v569
      %694 = vmatprep.subr.mxu0 0.0
      %695 = vmatpush1.msra.mxu0 %v570
      %696 = vmatprep.subr.mxu0 0.0
      %697 = vmatpush1.msra.mxu0 %v571
      %698 = vmatprep.subr.mxu0 0.0
      %699 = vmatpush1.msra.mxu0 %v572
      %700 = vmatprep.subr.mxu0 0.0
      %701 = vmatpush1.msra.mxu0 %v593
      %702 = vmatprep.subr.mxu0 0.0
      %703 = vmatpush1.msra.mxu0 %v594
      %704 = vmatprep.subr.mxu0 0.0
      %705 = vmatpush1.msra.mxu0 %v595
      %706 = vmatprep.subr.mxu0 0.0
      %707 = vmatpush1.msra.mxu0 %v596
      %708 = vmatprep.subr.mxu0 0.0
      %709 = vmatpush1.msra.mxu0 %v618
      %710 = vmatprep.subr.mxu0 0.0
      %711 = vmatpush1.msra.mxu0 %v619
      %712 = vmatprep.subr.mxu0 0.0
      %713 = vmatpush1.msra.mxu0 %v620
      %714 = vmatprep.subr.mxu0 0.0
      %715 = vmatpush1.msra.mxu0 %v621
      %716 = vmatprep.subr.mxu0 0.0
      %717 = vmatpush1.msra.mxu0 %v643
      %718 = vmatprep.subr.mxu0 0.0
      %719 = vmatpush1.msra.mxu0 %v644
      %720 = vmatprep.subr.mxu0 0.0
      %721 = vmatpush1.msra.mxu0 %v645
      %722 = vmatprep.subr.mxu0 0.0
      %723 = vmatpush1.msra.mxu0 %v646
      %724 = vmatprep.subr.mxu0 0.0
      %725 = vmatpush1.msra.mxu0 0.0
      %726 = vmatprep.subr.mxu0 0.0
      %727 = vmatpush1.msra.mxu0 0.0
      %728 = vmatprep.subr.mxu0 0.0
      %729 = vmatpush1.msra.mxu0 0.0
      %730 = vmatprep.subr.mxu0 0.0
      %731 = vmatpush1.msra.mxu0 0.0
      %732 = vmatprep.subr.mxu0 0.0
      %733 = vmatpush1.msra.mxu0 0.0
      %734 = vmatprep.subr.mxu0 0.0
      %735 = vmatpush1.msra.mxu0 0.0
      %736 = vmatprep.subr.mxu0 0.0
      %737 = vmatpush1.msra.mxu0 0.0
      %738 = vmatprep.subr.mxu0 0.0
      %739 = vmatpush1.msra.mxu0 0.0
      %740 = vmatprep.subr.mxu0 0.0
      %741 = vmatpush1.msra.mxu0 0.0
      %742 = vmatprep.subr.mxu0 0.0
      %743 = vmatpush1.msra.mxu0 0.0
      %744 = vmatprep.subr.mxu0 0.0
      %745 = vmatpush1.msra.mxu0 0.0
      %746 = vmatprep.subr.mxu0 0.0
      %747 = vmatpush1.msra.mxu0 0.0
      %748 = vmatprep.mubr.f32.mxu0 %v673
      %749 = vmatmul.mubr.f32.gmra.mrb[0].mxu0 %v525
      %v750 = vpop.f32.mrb[0].mxu0
      %v751 = vadd.f32 %v654, %v750
      %v752 = vpop.f32.mrb[0].mxu0
      %753 = vmatprep.mubr.f32.mxu0 %v676
      %754 = vmatmul.mubr.f32.gmra.mrb[0].mxu0 %v527
      %v755 = vpop.f32.mrb[0].mxu0
      %v756 = vadd.f32 %v659, %v755
      %v757 = vpop.f32.mrb[0].mxu0
      %758 = vmatprep.mubr.f32.mxu0 %v679
      %759 = vmatmul.mubr.f32.gmra.mrb[0].mxu0 %v529
      %v760 = vpop.f32.mrb[0].mxu0
      %v761 = vadd.f32 %v664, %v760
      %v762 = vpop.f32.mrb[0].mxu0
      %763 = vmatprep.mubr.f32.mxu0 %v682
      %764 = vmatmul.mubr.f32.gmra.mrb[0].mxu0 %v531
      %v765 = vpop.f32.mrb[0].mxu0
      %v766 = vadd.f32 %v669, %v765
      %v767 = vpop.f32.mrb[0].mxu0
      %768 = vdwg.mxu0
      %vm769 = vcmp.ge.f32.partialorder %v751, 0.0
      %vm770 = vcmp.ge.f32.partialorder %v756, 0.0
      %vm771 = vcmp.ge.f32.partialorder %v761, 0.0
      %vm772 = vcmp.ge.f32.partialorder %v766, 0.0
      %v773 = vmul.f32 %v751, 32.0
      %v774 = vmul.f32 %v756, 32.0
      %v775 = vmul.f32 %v761, 32.0
      %v776 = vmul.f32 %v766, 32.0
      %v777 = vsel %vm769, %v751, %v773
      %v778 = vsel %vm770, %v756, %v774
      %v779 = vsel %vm771, %v761, %v775
      %v780 = vsel %vm772, %v766, %v776
      %v781 = vsel %vm494, %v777, 0.0
      %v782 = vsel %vm494, %v778, 0.0
      %v783 = vsel %vm494, %v779, 0.0
      %v784 = vsel %vm494, %v780, 0.0
      %789 = vrot.lane.b32.xlu0 %v781, 2
      %v790 = vpop.permute.xlu0 %789
      %791 = vrot.lane.b32.xlu0 %v782, 2
      %v792 = vpop.permute.xlu0 %791
      %793 = vrot.lane.b32.xlu0 %v783, 2
      %v794 = vpop.permute.xlu0 %793
      %795 = vrot.lane.b32.xlu0 %v784, 2
      %v796 = vpop.permute.xlu0 %795
      %801 = vst.msk [vmem:[#allocation3] sm:$0xff] %vm515, %v790
      %802 = vst.msk [vmem:[#allocation3 + $0x8] sm:$0xff] %vm517, %v790
      %803 = vst.msk [vmem:[#allocation3 + $0x10] sm:$0xff] %vm515, %v792
      %804 = vst.msk [vmem:[#allocation3 + $0x18] sm:$0xff] %vm517, %v792
      %805 = vst.msk [vmem:[#allocation3 + $0x20] sm:$0xff] %vm515, %v794
      %806 = vst.msk [vmem:[#allocation3 + $0x28] sm:$0xff] %vm517, %v794
      %807 = vst.msk [vmem:[#allocation3 + $0x30] sm:$0xff] %vm515, %v796
      %808 = vst.msk [vmem:[#allocation3 + $0x38] sm:$0xff] %vm517, %v796
      %v809 = vld [vmem:[%s4] sm:$0xff]
      %v810 = vld [vmem:[%s4 + $0x8] sm:$0xff]
      %v811 = vld [vmem:[%s4 + $0x10] sm:$0xff]
      %v812 = vld [vmem:[%s4 + $0x18] sm:$0xff]
      %v813 = vld [vmem:[%s4 + $0x20] sm:$0xff]
      %v814 = vld [vmem:[%s4 + $0x28] sm:$0xff]
      %v815 = vld [vmem:[%s4 + $0x30] sm:$0xff]
      %v816 = vld [vmem:[%s4 + $0x38] sm:$0xff]
      %v817 = vld [vmem:[%s5] sm:$0xff]
      %v818 = vld [vmem:[%s5 + $0x8] sm:$0xff]
      %v819 = vld [vmem:[%s5 + $0x10] sm:$0xff]
      %v820 = vld [vmem:[%s5 + $0x18] sm:$0xff]
      %v821 = vld [vmem:[#allocation3] sm:$0xff]
      %v822 = vld [vmem:[#allocation3 + $0x10] sm:$0xff]
      %v823 = vld [vmem:[#allocation3 + $0x20] sm:$0xff]
      %v824 = vld [vmem:[#allocation3 + $0x30] sm:$0xff]
      %v825 = vld [vmem:[#allocation3 + $0x8] sm:$0xff]
      %v826 = vld [vmem:[#allocation3 + $0x18] sm:$0xff]
      %v827 = vld [vmem:[#allocation3 + $0x28] sm:$0xff]
      %v828 = vld [vmem:[#allocation3 + $0x38] sm:$0xff]
      %837 = vrot.lane.b32.xlu0 %v821, 127
      %v838 = vpop.permute.xlu0 %837
      %839 = vrot.lane.b32.xlu0 %v825, 127
      %v840 = vpop.permute.xlu0 %839
      %841 = vrot.lane.b32.xlu0 %v822, 127
      %v842 = vpop.permute.xlu0 %841
      %843 = vrot.lane.b32.xlu0 %v826, 127
      %v844 = vpop.permute.xlu0 %843
      %845 = vrot.lane.b32.xlu0 %v823, 127
      %v846 = vpop.permute.xlu0 %845
      %847 = vrot.lane.b32.xlu0 %v827, 127
      %v848 = vpop.permute.xlu0 %847
      %849 = vrot.lane.b32.xlu0 %v824, 127
      %v850 = vpop.permute.xlu0 %849
      %851 = vrot.lane.b32.xlu0 %v828, 127
      %v852 = vpop.permute.xlu0 %851
      %v853 = vsel %vm345, %v838, %v840
      %v854 = vsel %vm345, %v842, %v844
      %v855 = vsel %vm345, %v846, %v848
      %v856 = vsel %vm345, %v850, %v852
      %861 = vrot.lane.b32.xlu0 %v821, 126
      %v862 = vpop.permute.xlu0 %861
      %863 = vrot.lane.b32.xlu0 %v825, 126
      %v864 = vpop.permute.xlu0 %863
      %865 = vrot.lane.b32.xlu0 %v822, 126
      %v866 = vpop.permute.xlu0 %865
      %867 = vrot.lane.b32.xlu0 %v826, 126
      %v868 = vpop.permute.xlu0 %867
      %869 = vrot.lane.b32.xlu0 %v823, 126
      %v870 = vpop.permute.xlu0 %869
      %871 = vrot.lane.b32.xlu0 %v827, 126
      %v872 = vpop.permute.xlu0 %871
      %873 = vrot.lane.b32.xlu0 %v824, 126
      %v874 = vpop.permute.xlu0 %873
      %875 = vrot.lane.b32.xlu0 %v828, 126
      %v876 = vpop.permute.xlu0 %875
      %v877 = vsel %vm374, %v862, %v864
      %v878 = vsel %vm374, %v866, %v868
      %v879 = vsel %vm374, %v870, %v872
      %v880 = vsel %vm374, %v874, %v876
      %885 = vrot.lane.b32.xlu0 %v821, 125
      %v886 = vpop.permute.xlu0 %885
      %887 = vrot.lane.b32.xlu0 %v825, 125
      %v888 = vpop.permute.xlu0 %887
      %889 = vrot.lane.b32.xlu0 %v822, 125
      %v890 = vpop.permute.xlu0 %889
      %891 = vrot.lane.b32.xlu0 %v826, 125
      %v892 = vpop.permute.xlu0 %891
      %893 = vrot.lane.b32.xlu0 %v823, 125
      %v894 = vpop.permute.xlu0 %893
      %895 = vrot.lane.b32.xlu0 %v827, 125
      %v896 = vpop.permute.xlu0 %895
      %897 = vrot.lane.b32.xlu0 %v824, 125
      %v898 = vpop.permute.xlu0 %897
      %899 = vrot.lane.b32.xlu0 %v828, 125
      %v900 = vpop.permute.xlu0 %899
      %v901 = vsel %vm617, %v886, %v888
      %v902 = vsel %vm617, %v890, %v892
      %v903 = vsel %vm617, %v894, %v896
      %v904 = vsel %vm617, %v898, %v900
      %909 = vrot.lane.b32.xlu0 %v821, 124
      %v910 = vpop.permute.xlu0 %909
      %911 = vrot.lane.b32.xlu0 %v825, 124
      %v912 = vpop.permute.xlu0 %911
      %913 = vrot.lane.b32.xlu0 %v822, 124
      %v914 = vpop.permute.xlu0 %913
      %915 = vrot.lane.b32.xlu0 %v826, 124
      %v916 = vpop.permute.xlu0 %915
      %917 = vrot.lane.b32.xlu0 %v823, 124
      %v918 = vpop.permute.xlu0 %917
      %919 = vrot.lane.b32.xlu0 %v827, 124
      %v920 = vpop.permute.xlu0 %919
      %921 = vrot.lane.b32.xlu0 %v824, 124
      %v922 = vpop.permute.xlu0 %921
      %923 = vrot.lane.b32.xlu0 %v828, 124
      %v924 = vpop.permute.xlu0 %923
      %v925 = vsel %vm642, %v910, %v912
      %v926 = vsel %vm642, %v914, %v916
      %v927 = vsel %vm642, %v918, %v920
      %v928 = vsel %vm642, %v922, %v924
      %934 = vset.pattern.permute.xlu0 0
      %935 = vperm.xlu0 %934, %v817
      %v936 = vpop.permute.xlu0 %935
      %939 = vset.pattern.permute.xlu0 0
      %940 = vperm.xlu0 %939, %v818
      %v941 = vpop.permute.xlu0 %940
      %944 = vset.pattern.permute.xlu0 0
      %945 = vperm.xlu0 %944, %v819
      %v946 = vpop.permute.xlu0 %945
      %949 = vset.pattern.permute.xlu0 0
      %950 = vperm.xlu0 %949, %v820
      %v951 = vpop.permute.xlu0 %950
      %v954 = vsel %vm671, %v810, 0
      %v957 = vsel %vm671, %v812, 0
      %v960 = vsel %vm671, %v814, 0
      %v963 = vsel %vm671, %v816, 0
      %965 = vmatprep.subr.mxu0 0.0
      %966 = vmatpush1.msra.mxu0 %v821
      %967 = vmatprep.subr.mxu0 0.0
      %968 = vmatpush1.msra.mxu0 %v822
      %969 = vmatprep.subr.mxu0 0.0
      %970 = vmatpush1.msra.mxu0 %v823
      %971 = vmatprep.subr.mxu0 0.0
      %972 = vmatpush1.msra.mxu0 %v824
      %973 = vmatprep.subr.mxu0 0.0
      %974 = vmatpush1.msra.mxu0 %v853
      %975 = vmatprep.subr.mxu0 0.0
      %976 = vmatpush1.msra.mxu0 %v854
      %977 = vmatprep.subr.mxu0 0.0
      %978 = vmatpush1.msra.mxu0 %v855
      %979 = vmatprep.subr.mxu0 0.0
      %980 = vmatpush1.msra.mxu0 %v856
      %981 = vmatprep.subr.mxu0 0.0
      %982 = vmatpush1.msra.mxu0 %v877
      %983 = vmatprep.subr.mxu0 0.0
      %984 = vmatpush1.msra.mxu0 %v878
      %985 = vmatprep.subr.mxu0 0.0
      %986 = vmatpush1.msra.mxu0 %v879
      %987 = vmatprep.subr.mxu0 0.0
      %988 = vmatpush1.msra.mxu0 %v880
      %989 = vmatprep.subr.mxu0 0.0
      %990 = vmatpush1.msra.mxu0 %v901
      %991 = vmatprep.subr.mxu0 0.0
      %992 = vmatpush1.msra.mxu0 %v902
      %993 = vmatprep.subr.mxu0 0.0
      %994 = vmatpush1.msra.mxu0 %v903
      %995 = vmatprep.subr.mxu0 0.0
      %996 = vmatpush1.msra.mxu0 %v904
      %997 = vmatprep.subr.mxu0 0.0
      %998 = vmatpush1.msra.mxu0 %v925
      %999 = vmatprep.subr.mxu0 0.0
      %1000 = vmatpush1.msra.mxu0 %v926
      %1001 = vmatprep.subr.mxu0 0.0
      %1002 = vmatpush1.msra.mxu0 %v927
      %1003 = vmatprep.subr.mxu0 0.0
      %1004 = vmatpush1.msra.mxu0 %v928
      %1005 = vmatprep.subr.mxu0 0.0
      %1006 = vmatpush1.msra.mxu0 0.0
      %1007 = vmatprep.subr.mxu0 0.0
      %1008 = vmatpush1.msra.mxu0 0.0
      %1009 = vmatprep.subr.mxu0 0.0
      %1010 = vmatpush1.msra.mxu0 0.0
      %1011 = vmatprep.subr.mxu0 0.0
      %1012 = vmatpush1.msra.mxu0 0.0
      %1013 = vmatprep.subr.mxu0 0.0
      %1014 = vmatpush1.msra.mxu0 0.0
      %1015 = vmatprep.subr.mxu0 0.0
      %1016 = vmatpush1.msra.mxu0 0.0
      %1017 = vmatprep.subr.mxu0 0.0
      %1018 = vmatpush1.msra.mxu0 0.0
      %1019 = vmatprep.subr.mxu0 0.0
      %1020 = vmatpush1.msra.mxu0 0.0
      %1021 = vmatprep.subr.mxu0 0.0
      %1022 = vmatpush1.msra.mxu0 0.0
      %1023 = vmatprep.subr.mxu0 0.0
      %1024 = vmatpush1.msra.mxu0 0.0
      %1025 = vmatprep.subr.mxu0 0.0
      %1026 = vmatpush1.msra.mxu0 0.0
      %1027 = vmatprep.subr.mxu0 0.0
      %1028 = vmatpush1.msra.mxu0 0.0
      %1029 = vmatprep.mubr.f32.mxu0 %v954
      %1030 = vmatmul.mubr.f32.gmra.mrb[0].mxu0 %v809
      %v1031 = vpop.f32.mrb[0].mxu0
      %v1032 = vadd.f32 %v936, %v1031
      %v1033 = vpop.f32.mrb[0].mxu0
      %1034 = vmatprep.mubr.f32.mxu0 %v957
      %1035 = vmatmul.mubr.f32.gmra.mrb[0].mxu0 %v811
      %v1036 = vpop.f32.mrb[0].mxu0
      %v1037 = vadd.f32 %v941, %v1036
      %v1038 = vpop.f32.mrb[0].mxu0
      %1039 = vmatprep.mubr.f32.mxu0 %v960
      %1040 = vmatmul.mubr.f32.gmra.mrb[0].mxu0 %v813
      %v1041 = vpop.f32.mrb[0].mxu0
      %v1042 = vadd.f32 %v946, %v1041
      %v1043 = vpop.f32.mrb[0].mxu0
      %1044 = vmatprep.mubr.f32.mxu0 %v963
      %1045 = vmatmul.mubr.f32.gmra.mrb[0].mxu0 %v815
      %v1046 = vpop.f32.mrb[0].mxu0
      %v1047 = vadd.f32 %v951, %v1046
      %v1048 = vpop.f32.mrb[0].mxu0
      %1049 = vdwg.mxu0
      %v1050 = vld [vmem:[#allocation2] sm:$0xff]
      %v1051 = vld [vmem:[#allocation2 + $0x8] sm:$0xff]
      %v1052 = vld [vmem:[#allocation2 + $0x10] sm:$0xff]
      %v1053 = vld [vmem:[#allocation2 + $0x18] sm:$0xff]
      %v1054 = vld [vmem:[#allocation2 + $0x20] sm:$0xff]
      %v1055 = vld [vmem:[#allocation2 + $0x28] sm:$0xff]
      %v1056 = vld [vmem:[#allocation2 + $0x30] sm:$0xff]
      %v1057 = vld [vmem:[#allocation2 + $0x38] sm:$0xff]
      %1066 = vrot.lane.b32.xlu0 %v1050, 126
      %v1067 = vpop.permute.xlu0 %1066
      %1068 = vrot.lane.b32.xlu0 %v1051, 126
      %v1069 = vpop.permute.xlu0 %1068
      %1070 = vrot.lane.b32.xlu0 %v1052, 126
      %v1071 = vpop.permute.xlu0 %1070
      %1072 = vrot.lane.b32.xlu0 %v1053, 126
      %v1073 = vpop.permute.xlu0 %1072
      %1074 = vrot.lane.b32.xlu0 %v1054, 126
      %v1075 = vpop.permute.xlu0 %1074
      %1076 = vrot.lane.b32.xlu0 %v1055, 126
      %v1077 = vpop.permute.xlu0 %1076
      %1078 = vrot.lane.b32.xlu0 %v1056, 126
      %v1079 = vpop.permute.xlu0 %1078
      %1080 = vrot.lane.b32.xlu0 %v1057, 126
      %v1081 = vpop.permute.xlu0 %1080
      %v1082 = vsel %vm374, %v1067, %v1069
      %v1083 = vsel %vm374, %v1071, %v1073
      %v1084 = vsel %vm374, %v1075, %v1077
      %v1085 = vsel %vm374, %v1079, %v1081
      %v1090 = vadd.f32 %v1032, %v1082
      %v1091 = vadd.f32 %v1037, %v1083
      %v1092 = vadd.f32 %v1042, %v1084
      %v1093 = vadd.f32 %v1047, %v1085
      %v1094 = vsel %vm494, %v1090, 0.0
      %v1095 = vsel %vm494, %v1091, 0.0
      %v1096 = vsel %vm494, %v1092, 0.0
      %v1097 = vsel %vm494, %v1093, 0.0
      %1102 = vrot.lane.b32.xlu0 %v1094, 2
      %v1103 = vpop.permute.xlu0 %1102
      %1104 = vrot.lane.b32.xlu0 %v1095, 2
      %v1105 = vpop.permute.xlu0 %1104
      %1106 = vrot.lane.b32.xlu0 %v1096, 2
      %v1107 = vpop.permute.xlu0 %1106
      %1108 = vrot.lane.b32.xlu0 %v1097, 2
      %v1109 = vpop.permute.xlu0 %1108
      %1114 = vst.msk [vmem:[#allocation2] sm:$0xff] %vm515, %v1103
      %1115 = vst.msk [vmem:[#allocation2 + $0x8] sm:$0xff] %vm517, %v1103
      %1116 = vst.msk [vmem:[#allocation2 + $0x10] sm:$0xff] %vm515, %v1105
      %1117 = vst.msk [vmem:[#allocation2 + $0x18] sm:$0xff] %vm517, %v1105
      %1118 = vst.msk [vmem:[#allocation2 + $0x20] sm:$0xff] %vm515, %v1107
      %1119 = vst.msk [vmem:[#allocation2 + $0x28] sm:$0xff] %vm517, %v1107
      %1120 = vst.msk [vmem:[#allocation2 + $0x30] sm:$0xff] %vm515, %v1109
      %1121 = vst.msk [vmem:[#allocation2 + $0x38] sm:$0xff] %vm517, %v1109
      %s1122 = scalar_lea.vmem %s2, 64
      %v1123 = vld [vmem:[%s1122] sm:$0xff]
      %v1124 = vld [vmem:[%s1122 + $0x8] sm:$0xff]
      %v1125 = vld [vmem:[%s1122 + $0x10] sm:$0xff]
      %v1126 = vld [vmem:[%s1122 + $0x18] sm:$0xff]
      %v1127 = vld [vmem:[%s1122 + $0x20] sm:$0xff]
      %v1128 = vld [vmem:[%s1122 + $0x28] sm:$0xff]
      %v1129 = vld [vmem:[%s1122 + $0x30] sm:$0xff]
      %v1130 = vld [vmem:[%s1122 + $0x38] sm:$0xff]
      %s1131 = scalar_lea.vmem %s3, 32
      %v1132 = vld [vmem:[%s1131] sm:$0xff]
      %v1133 = vld [vmem:[%s1131 + $0x8] sm:$0xff]
      %v1134 = vld [vmem:[%s1131 + $0x10] sm:$0xff]
      %v1135 = vld [vmem:[%s1131 + $0x18] sm:$0xff]
      %v1136 = vld [vmem:[#allocation2] sm:$0xff]
      %v1137 = vld [vmem:[#allocation2 + $0x10] sm:$0xff]
      %v1138 = vld [vmem:[#allocation2 + $0x20] sm:$0xff]
      %v1139 = vld [vmem:[#allocation2 + $0x30] sm:$0xff]
      %v1140 = vld [vmem:[#allocation2 + $0x8] sm:$0xff]
      %v1141 = vld [vmem:[#allocation2 + $0x18] sm:$0xff]
      %v1142 = vld [vmem:[#allocation2 + $0x28] sm:$0xff]
      %v1143 = vld [vmem:[#allocation2 + $0x38] sm:$0xff]
      %1152 = vrot.lane.b32.xlu0 %v1136, 127
      %v1153 = vpop.permute.xlu0 %1152
      %1154 = vrot.lane.b32.xlu0 %v1140, 127
      %v1155 = vpop.permute.xlu0 %1154
      %1156 = vrot.lane.b32.xlu0 %v1137, 127
      %v1157 = vpop.permute.xlu0 %1156
      %1158 = vrot.lane.b32.xlu0 %v1141, 127
      %v1159 = vpop.permute.xlu0 %1158
      %1160 = vrot.lane.b32.xlu0 %v1138, 127
      %v1161 = vpop.permute.xlu0 %1160
      %1162 = vrot.lane.b32.xlu0 %v1142, 127
      %v1163 = vpop.permute.xlu0 %1162
      %1164 = vrot.lane.b32.xlu0 %v1139, 127
      %v1165 = vpop.permute.xlu0 %1164
      %1166 = vrot.lane.b32.xlu0 %v1143, 127
      %v1167 = vpop.permute.xlu0 %1166
      %v1168 = vsel %vm345, %v1153, %v1155
      %v1169 = vsel %vm345, %v1157, %v1159
      %v1170 = vsel %vm345, %v1161, %v1163
      %v1171 = vsel %vm345, %v1165, %v1167
      %1176 = vrot.lane.b32.xlu0 %v1136, 126
      %v1177 = vpop.permute.xlu0 %1176
      %1178 = vrot.lane.b32.xlu0 %v1140, 126
      %v1179 = vpop.permute.xlu0 %1178
      %1180 = vrot.lane.b32.xlu0 %v1137, 126
      %v1181 = vpop.permute.xlu0 %1180
      %1182 = vrot.lane.b32.xlu0 %v1141, 126
      %v1183 = vpop.permute.xlu0 %1182
      %1184 = vrot.lane.b32.xlu0 %v1138, 126
      %v1185 = vpop.permute.xlu0 %1184
      %1186 = vrot.lane.b32.xlu0 %v1142, 126
      %v1187 = vpop.permute.xlu0 %1186
      %1188 = vrot.lane.b32.xlu0 %v1139, 126
      %v1189 = vpop.permute.xlu0 %1188
      %1190 = vrot.lane.b32.xlu0 %v1143, 126
      %v1191 = vpop.permute.xlu0 %1190
      %v1192 = vsel %vm374, %v1177, %v1179
      %v1193 = vsel %vm374, %v1181, %v1183
      %v1194 = vsel %vm374, %v1185, %v1187
      %v1195 = vsel %vm374, %v1189, %v1191
      %1200 = vrot.lane.b32.xlu0 %v1136, 125
      %v1201 = vpop.permute.xlu0 %1200
      %1202 = vrot.lane.b32.xlu0 %v1140, 125
      %v1203 = vpop.permute.xlu0 %1202
      %1204 = vrot.lane.b32.xlu0 %v1137, 125
      %v1205 = vpop.permute.xlu0 %1204
      %1206 = vrot.lane.b32.xlu0 %v1141, 125
      %v1207 = vpop.permute.xlu0 %1206
      %1208 = vrot.lane.b32.xlu0 %v1138, 125
      %v1209 = vpop.permute.xlu0 %1208
      %1210 = vrot.lane.b32.xlu0 %v1142, 125
      %v1211 = vpop.permute.xlu0 %1210
      %1212 = vrot.lane.b32.xlu0 %v1139, 125
      %v1213 = vpop.permute.xlu0 %1212
      %1214 = vrot.lane.b32.xlu0 %v1143, 125
      %v1215 = vpop.permute.xlu0 %1214
      %v1216 = vsel %vm617, %v1201, %v1203
      %v1217 = vsel %vm617, %v1205, %v1207
      %v1218 = vsel %vm617, %v1209, %v1211
      %v1219 = vsel %vm617, %v1213, %v1215
      %1224 = vrot.lane.b32.xlu0 %v1136, 124
      %v1225 = vpop.permute.xlu0 %1224
      %1226 = vrot.lane.b32.xlu0 %v1140, 124
      %v1227 = vpop.permute.xlu0 %1226
      %1228 = vrot.lane.b32.xlu0 %v1137, 124
      %v1229 = vpop.permute.xlu0 %1228
      %1230 = vrot.lane.b32.xlu0 %v1141, 124
      %v1231 = vpop.permute.xlu0 %1230
      %1232 = vrot.lane.b32.xlu0 %v1138, 124
      %v1233 = vpop.permute.xlu0 %1232
      %1234 = vrot.lane.b32.xlu0 %v1142, 124
      %v1235 = vpop.permute.xlu0 %1234
      %1236 = vrot.lane.b32.xlu0 %v1139, 124
      %v1237 = vpop.permute.xlu0 %1236
      %1238 = vrot.lane.b32.xlu0 %v1143, 124
      %v1239 = vpop.permute.xlu0 %1238
      %v1240 = vsel %vm642, %v1225, %v1227
      %v1241 = vsel %vm642, %v1229, %v1231
      %v1242 = vsel %vm642, %v1233, %v1235
      %v1243 = vsel %vm642, %v1237, %v1239
      %1249 = vset.pattern.permute.xlu0 0
      %1250 = vperm.xlu0 %1249, %v1132
      %v1251 = vpop.permute.xlu0 %1250
      %1254 = vset.pattern.permute.xlu0 0
      %1255 = vperm.xlu0 %1254, %v1133
      %v1256 = vpop.permute.xlu0 %1255
      %1259 = vset.pattern.permute.xlu0 0
      %1260 = vperm.xlu0 %1259, %v1134
      %v1261 = vpop.permute.xlu0 %1260
      %1264 = vset.pattern.permute.xlu0 0
      %1265 = vperm.xlu0 %1264, %v1135
      %v1266 = vpop.permute.xlu0 %1265
      %v1269 = vsel %vm671, %v1124, 0
      %v1272 = vsel %vm671, %v1126, 0
      %v1275 = vsel %vm671, %v1128, 0
      %v1278 = vsel %vm671, %v1130, 0
      %1280 = vmatprep.subr.mxu0 0.0
      %1281 = vmatpush1.msra.mxu0 %v1136
      %1282 = vmatprep.subr.mxu0 0.0
      %1283 = vmatpush1.msra.mxu0 %v1137
      %1284 = vmatprep.subr.mxu0 0.0
      %1285 = vmatpush1.msra.mxu0 %v1138
      %1286 = vmatprep.subr.mxu0 0.0
      %1287 = vmatpush1.msra.mxu0 %v1139
      %1288 = vmatprep.subr.mxu0 0.0
      %1289 = vmatpush1.msra.mxu0 %v1168
      %1290 = vmatprep.subr.mxu0 0.0
      %1291 = vmatpush1.msra.mxu0 %v1169
      %1292 = vmatprep.subr.mxu0 0.0
      %1293 = vmatpush1.msra.mxu0 %v1170
      %1294 = vmatprep.subr.mxu0 0.0
      %1295 = vmatpush1.msra.mxu0 %v1171
      %1296 = vmatprep.subr.mxu0 0.0
      %1297 = vmatpush1.msra.mxu0 %v1192
      %1298 = vmatprep.subr.mxu0 0.0
      %1299 = vmatpush1.msra.mxu0 %v1193
      %1300 = vmatprep.subr.mxu0 0.0
      %1301 = vmatpush1.msra.mxu0 %v1194
      %1302 = vmatprep.subr.mxu0 0.0
      %1303 = vmatpush1.msra.mxu0 %v1195
      %1304 = vmatprep.subr.mxu0 0.0
      %1305 = vmatpush1.msra.mxu0 %v1216
      %1306 = vmatprep.subr.mxu0 0.0
      %1307 = vmatpush1.msra.mxu0 %v1217
      %1308 = vmatprep.subr.mxu0 0.0
      %1309 = vmatpush1.msra.mxu0 %v1218
      %1310 = vmatprep.subr.mxu0 0.0
      %1311 = vmatpush1.msra.mxu0 %v1219
      %1312 = vmatprep.subr.mxu0 0.0
      %1313 = vmatpush1.msra.mxu0 %v1240
      %1314 = vmatprep.subr.mxu0 0.0
      %1315 = vmatpush1.msra.mxu0 %v1241
      %1316 = vmatprep.subr.mxu0 0.0
      %1317 = vmatpush1.msra.mxu0 %v1242
      %1318 = vmatprep.subr.mxu0 0.0
      %1319 = vmatpush1.msra.mxu0 %v1243
      %1320 = vmatprep.subr.mxu0 0.0
      %1321 = vmatpush1.msra.mxu0 0.0
      %1322 = vmatprep.subr.mxu0 0.0
      %1323 = vmatpush1.msra.mxu0 0.0
      %1324 = vmatprep.subr.mxu0 0.0
      %1325 = vmatpush1.msra.mxu0 0.0
      %1326 = vmatprep.subr.mxu0 0.0
      %1327 = vmatpush1.msra.mxu0 0.0
      %1328 = vmatprep.subr.mxu0 0.0
      %1329 = vmatpush1.msra.mxu0 0.0
      %1330 = vmatprep.subr.mxu0 0.0
      %1331 = vmatpush1.msra.mxu0 0.0
      %1332 = vmatprep.subr.mxu0 0.0
      %1333 = vmatpush1.msra.mxu0 0.0
      %1334 = vmatprep.subr.mxu0 0.0
      %1335 = vmatpush1.msra.mxu0 0.0
      %1336 = vmatprep.subr.mxu0 0.0
      %1337 = vmatpush1.msra.mxu0 0.0
      %1338 = vmatprep.subr.mxu0 0.0
      %1339 = vmatpush1.msra.mxu0 0.0
      %1340 = vmatprep.subr.mxu0 0.0
      %1341 = vmatpush1.msra.mxu0 0.0
      %1342 = vmatprep.subr.mxu0 0.0
      %1343 = vmatpush1.msra.mxu0 0.0
      %1344 = vmatprep.mubr.f32.mxu0 %v1269
      %1345 = vmatmul.mubr.f32.gmra.mrb[0].mxu0 %v1123
      %v1346 = vpop.f32.mrb[0].mxu0
      %v1347 = vadd.f32 %v1251, %v1346
      %v1348 = vpop.f32.mrb[0].mxu0
      %1349 = vmatprep.mubr.f32.mxu0 %v1272
      %1350 = vmatmul.mubr.f32.gmra.mrb[0].mxu0 %v1125
      %v1351 = vpop.f32.mrb[0].mxu0
      %v1352 = vadd.f32 %v1256, %v1351
      %v1353 = vpop.f32.mrb[0].mxu0
      %1354 = vmatprep.mubr.f32.mxu0 %v1275
      %1355 = vmatmul.mubr.f32.gmra.mrb[0].mxu0 %v1127
      %v1356 = vpop.f32.mrb[0].mxu0
      %v1357 = vadd.f32 %v1261, %v1356
      %v1358 = vpop.f32.mrb[0].mxu0
      %1359 = vmatprep.mubr.f32.mxu0 %v1278
      %1360 = vmatmul.mubr.f32.gmra.mrb[0].mxu0 %v1129
      %v1361 = vpop.f32.mrb[0].mxu0
      %v1362 = vadd.f32 %v1266, %v1361
      %v1363 = vpop.f32.mrb[0].mxu0
      %1364 = vdwg.mxu0
      %vm1365 = vcmp.ge.f32.partialorder %v1347, 0.0
      %vm1366 = vcmp.ge.f32.partialorder %v1352, 0.0
      %vm1367 = vcmp.ge.f32.partialorder %v1357, 0.0
      %vm1368 = vcmp.ge.f32.partialorder %v1362, 0.0
      %v1369 = vmul.f32 %v1347, 32.0
      %v1370 = vmul.f32 %v1352, 32.0
      %v1371 = vmul.f32 %v1357, 32.0
      %v1372 = vmul.f32 %v1362, 32.0
      %v1373 = vsel %vm1365, %v1347, %v1369
      %v1374 = vsel %vm1366, %v1352, %v1370
      %v1375 = vsel %vm1367, %v1357, %v1371
      %v1376 = vsel %vm1368, %v1362, %v1372
      %v1377 = vsel %vm494, %v1373, 0.0
      %v1378 = vsel %vm494, %v1374, 0.0
      %v1379 = vsel %vm494, %v1375, 0.0
      %v1380 = vsel %vm494, %v1376, 0.0
      %1385 = vrot.lane.b32.xlu0 %v1377, 2
      %v1386 = vpop.permute.xlu0 %1385
      %1387 = vrot.lane.b32.xlu0 %v1378, 2
      %v1388 = vpop.permute.xlu0 %1387
      %1389 = vrot.lane.b32.xlu0 %v1379, 2
      %v1390 = vpop.permute.xlu0 %1389
      %1391 = vrot.lane.b32.xlu0 %v1380, 2
      %v1392 = vpop.permute.xlu0 %1391
      %1397 = vst.msk [vmem:[#allocation3] sm:$0xff] %vm515, %v1386
      %1398 = vst.msk [vmem:[#allocation3 + $0x8] sm:$0xff] %vm517, %v1386
      %1399 = vst.msk [vmem:[#allocation3 + $0x10] sm:$0xff] %vm515, %v1388
      %1400 = vst.msk [vmem:[#allocation3 + $0x18] sm:$0xff] %vm517, %v1388
      %1401 = vst.msk [vmem:[#allocation3 + $0x20] sm:$0xff] %vm515, %v1390
      %1402 = vst.msk [vmem:[#allocation3 + $0x28] sm:$0xff] %vm517, %v1390
      %1403 = vst.msk [vmem:[#allocation3 + $0x30] sm:$0xff] %vm515, %v1392
      %1404 = vst.msk [vmem:[#allocation3 + $0x38] sm:$0xff] %vm517, %v1392
      %s1405 = scalar_lea.vmem %s4, 64
      %v1406 = vld [vmem:[%s1405] sm:$0xff]
      %v1407 = vld [vmem:[%s1405 + $0x8] sm:$0xff]
      %v1408 = vld [vmem:[%s1405 + $0x10] sm:$0xff]
      %v1409 = vld [vmem:[%s1405 + $0x18] sm:$0xff]
      %v1410 = vld [vmem:[%s1405 + $0x20] sm:$0xff]
      %v1411 = vld [vmem:[%s1405 + $0x28] sm:$0xff]
      %v1412 = vld [vmem:[%s1405 + $0x30] sm:$0xff]
      %v1413 = vld [vmem:[%s1405 + $0x38] sm:$0xff]
      %s1414 = scalar_lea.vmem %s5, 32
      %v1415 = vld [vmem:[%s1414] sm:$0xff]
      %v1416 = vld [vmem:[%s1414 + $0x8] sm:$0xff]
      %v1417 = vld [vmem:[%s1414 + $0x10] sm:$0xff]
      %v1418 = vld [vmem:[%s1414 + $0x18] sm:$0xff]
      %v1419 = vld [vmem:[#allocation3] sm:$0xff]
      %v1420 = vld [vmem:[#allocation3 + $0x10] sm:$0xff]
      %v1421 = vld [vmem:[#allocation3 + $0x20] sm:$0xff]
      %v1422 = vld [vmem:[#allocation3 + $0x30] sm:$0xff]
      %v1423 = vld [vmem:[#allocation3 + $0x8] sm:$0xff]
      %v1424 = vld [vmem:[#allocation3 + $0x18] sm:$0xff]
      %v1425 = vld [vmem:[#allocation3 + $0x28] sm:$0xff]
      %v1426 = vld [vmem:[#allocation3 + $0x38] sm:$0xff]
      %1435 = vrot.lane.b32.xlu0 %v1419, 127
      %v1436 = vpop.permute.xlu0 %1435
      %1437 = vrot.lane.b32.xlu0 %v1423, 127
      %v1438 = vpop.permute.xlu0 %1437
      %1439 = vrot.lane.b32.xlu0 %v1420, 127
      %v1440 = vpop.permute.xlu0 %1439
      %1441 = vrot.lane.b32.xlu0 %v1424, 127
      %v1442 = vpop.permute.xlu0 %1441
      %1443 = vrot.lane.b32.xlu0 %v1421, 127
      %v1444 = vpop.permute.xlu0 %1443
      %1445 = vrot.lane.b32.xlu0 %v1425, 127
      %v1446 = vpop.permute.xlu0 %1445
      %1447 = vrot.lane.b32.xlu0 %v1422, 127
      %v1448 = vpop.permute.xlu0 %1447
      %1449 = vrot.lane.b32.xlu0 %v1426, 127
      %v1450 = vpop.permute.xlu0 %1449
      %v1451 = vsel %vm345, %v1436, %v1438
      %v1452 = vsel %vm345, %v1440, %v1442
      %v1453 = vsel %vm345, %v1444, %v1446
      %v1454 = vsel %vm345, %v1448, %v1450
      %1459 = vrot.lane.b32.xlu0 %v1419, 126
      %v1460 = vpop.permute.xlu0 %1459
      %1461 = vrot.lane.b32.xlu0 %v1423, 126
      %v1462 = vpop.permute.xlu0 %1461
      %1463 = vrot.lane.b32.xlu0 %v1420, 126
      %v1464 = vpop.permute.xlu0 %1463
      %1465 = vrot.lane.b32.xlu0 %v1424, 126
      %v1466 = vpop.permute.xlu0 %1465
      %1467 = vrot.lane.b32.xlu0 %v1421, 126
      %v1468 = vpop.permute.xlu0 %1467
      %1469 = vrot.lane.b32.xlu0 %v1425, 126
      %v1470 = vpop.permute.xlu0 %1469
      %1471 = vrot.lane.b32.xlu0 %v1422, 126
      %v1472 = vpop.permute.xlu0 %1471
      %1473 = vrot.lane.b32.xlu0 %v1426, 126
      %v1474 = vpop.permute.xlu0 %1473
      %v1475 = vsel %vm374, %v1460, %v1462
      %v1476 = vsel %vm374, %v1464, %v1466
      %v1477 = vsel %vm374, %v1468, %v1470
      %v1478 = vsel %vm374, %v1472, %v1474
      %1483 = vrot.lane.b32.xlu0 %v1419, 125
      %v1484 = vpop.permute.xlu0 %1483
      %1485 = vrot.lane.b32.xlu0 %v1423, 125
      %v1486 = vpop.permute.xlu0 %1485
      %1487 = vrot.lane.b32.xlu0 %v1420, 125
      %v1488 = vpop.permute.xlu0 %1487
      %1489 = vrot.lane.b32.xlu0 %v1424, 125
      %v1490 = vpop.permute.xlu0 %1489
      %1491 = vrot.lane.b32.xlu0 %v1421, 125
      %v1492 = vpop.permute.xlu0 %1491
      %1493 = vrot.lane.b32.xlu0 %v1425, 125
      %v1494 = vpop.permute.xlu0 %1493
      %1495 = vrot.lane.b32.xlu0 %v1422, 125
      %v1496 = vpop.permute.xlu0 %1495
      %1497 = vrot.lane.b32.xlu0 %v1426, 125
      %v1498 = vpop.permute.xlu0 %1497
      %v1499 = vsel %vm617, %v1484, %v1486
      %v1500 = vsel %vm617, %v1488, %v1490
      %v1501 = vsel %vm617, %v1492, %v1494
      %v1502 = vsel %vm617, %v1496, %v1498
      %1507 = vrot.lane.b32.xlu0 %v1419, 124
      %v1508 = vpop.permute.xlu0 %1507
      %1509 = vrot.lane.b32.xlu0 %v1423, 124
      %v1510 = vpop.permute.xlu0 %1509
      %1511 = vrot.lane.b32.xlu0 %v1420, 124
      %v1512 = vpop.permute.xlu0 %1511
      %1513 = vrot.lane.b32.xlu0 %v1424, 124
      %v1514 = vpop.permute.xlu0 %1513
      %1515 = vrot.lane.b32.xlu0 %v1421, 124
      %v1516 = vpop.permute.xlu0 %1515
      %1517 = vrot.lane.b32.xlu0 %v1425, 124
      %v1518 = vpop.permute.xlu0 %1517
      %1519 = vrot.lane.b32.xlu0 %v1422, 124
      %v1520 = vpop.permute.xlu0 %1519
      %1521 = vrot.lane.b32.xlu0 %v1426, 124
      %v1522 = vpop.permute.xlu0 %1521
      %v1523 = vsel %vm642, %v1508, %v1510
      %v1524 = vsel %vm642, %v1512, %v1514
      %v1525 = vsel %vm642, %v1516, %v1518
      %v1526 = vsel %vm642, %v1520, %v1522
      %1532 = vset.pattern.permute.xlu0 0
      %1533 = vperm.xlu0 %1532, %v1415
      %v1534 = vpop.permute.xlu0 %1533
      %1537 = vset.pattern.permute.xlu0 0
      %1538 = vperm.xlu0 %1537, %v1416
      %v1539 = vpop.permute.xlu0 %1538
      %1542 = vset.pattern.permute.xlu0 0
      %1543 = vperm.xlu0 %1542, %v1417
      %v1544 = vpop.permute.xlu0 %1543
      %1547 = vset.pattern.permute.xlu0 0
      %1548 = vperm.xlu0 %1547, %v1418
      %v1549 = vpop.permute.xlu0 %1548
      %v1552 = vsel %vm671, %v1407, 0
      %v1555 = vsel %vm671, %v1409, 0
      %v1558 = vsel %vm671, %v1411, 0
      %v1561 = vsel %vm671, %v1413, 0
      %1563 = vmatprep.subr.mxu0 0.0
      %1564 = vmatpush1.msra.mxu0 %v1419
      %1565 = vmatprep.subr.mxu0 0.0
      %1566 = vmatpush1.msra.mxu0 %v1420
      %1567 = vmatprep.subr.mxu0 0.0
      %1568 = vmatpush1.msra.mxu0 %v1421
      %1569 = vmatprep.subr.mxu0 0.0
      %1570 = vmatpush1.msra.mxu0 %v1422
      %1571 = vmatprep.subr.mxu0 0.0
      %1572 = vmatpush1.msra.mxu0 %v1451
      %1573 = vmatprep.subr.mxu0 0.0
      %1574 = vmatpush1.msra.mxu0 %v1452
      %1575 = vmatprep.subr.mxu0 0.0
      %1576 = vmatpush1.msra.mxu0 %v1453
      %1577 = vmatprep.subr.mxu0 0.0
      %1578 = vmatpush1.msra.mxu0 %v1454
      %1579 = vmatprep.subr.mxu0 0.0
      %1580 = vmatpush1.msra.mxu0 %v1475
      %1581 = vmatprep.subr.mxu0 0.0
      %1582 = vmatpush1.msra.mxu0 %v1476
      %1583 = vmatprep.subr.mxu0 0.0
      %1584 = vmatpush1.msra.mxu0 %v1477
      %1585 = vmatprep.subr.mxu0 0.0
      %1586 = vmatpush1.msra.mxu0 %v1478
      %1587 = vmatprep.subr.mxu0 0.0
      %1588 = vmatpush1.msra.mxu0 %v1499
      %1589 = vmatprep.subr.mxu0 0.0
      %1590 = vmatpush1.msra.mxu0 %v1500
      %1591 = vmatprep.subr.mxu0 0.0
      %1592 = vmatpush1.msra.mxu0 %v1501
      %1593 = vmatprep.subr.mxu0 0.0
      %1594 = vmatpush1.msra.mxu0 %v1502
      %1595 = vmatprep.subr.mxu0 0.0
      %1596 = vmatpush1.msra.mxu0 %v1523
      %1597 = vmatprep.subr.mxu0 0.0
      %1598 = vmatpush1.msra.mxu0 %v1524
      %1599 = vmatprep.subr.mxu0 0.0
      %1600 = vmatpush1.msra.mxu0 %v1525
      %1601 = vmatprep.subr.mxu0 0.0
      %1602 = vmatpush1.msra.mxu0 %v1526
      %1603 = vmatprep.subr.mxu0 0.0
      %1604 = vmatpush1.msra.mxu0 0.0
      %1605 = vmatprep.subr.mxu0 0.0
      %1606 = vmatpush1.msra.mxu0 0.0
      %1607 = vmatprep.subr.mxu0 0.0
      %1608 = vmatpush1.msra.mxu0 0.0
      %1609 = vmatprep.subr.mxu0 0.0
      %1610 = vmatpush1.msra.mxu0 0.0
      %1611 = vmatprep.subr.mxu0 0.0
      %1612 = vmatpush1.msra.mxu0 0.0
      %1613 = vmatprep.subr.mxu0 0.0
      %1614 = vmatpush1.msra.mxu0 0.0
      %1615 = vmatprep.subr.mxu0 0.0
      %1616 = vmatpush1.msra.mxu0 0.0
      %1617 = vmatprep.subr.mxu0 0.0
      %1618 = vmatpush1.msra.mxu0 0.0
      %1619 = vmatprep.subr.mxu0 0.0
      %1620 = vmatpush1.msra.mxu0 0.0
      %1621 = vmatprep.subr.mxu0 0.0
      %1622 = vmatpush1.msra.mxu0 0.0
      %1623 = vmatprep.subr.mxu0 0.0
      %1624 = vmatpush1.msra.mxu0 0.0
      %1625 = vmatprep.subr.mxu0 0.0
      %1626 = vmatpush1.msra.mxu0 0.0
      %1627 = vmatprep.mubr.f32.mxu0 %v1552
      %1628 = vmatmul.mubr.f32.gmra.mrb[0].mxu0 %v1406
      %v1629 = vpop.f32.mrb[0].mxu0
      %v1630 = vadd.f32 %v1534, %v1629
      %v1631 = vpop.f32.mrb[0].mxu0
      %1632 = vmatprep.mubr.f32.mxu0 %v1555
      %1633 = vmatmul.mubr.f32.gmra.mrb[0].mxu0 %v1408
      %v1634 = vpop.f32.mrb[0].mxu0
      %v1635 = vadd.f32 %v1539, %v1634
      %v1636 = vpop.f32.mrb[0].mxu0
      %1637 = vmatprep.mubr.f32.mxu0 %v1558
      %1638 = vmatmul.mubr.f32.gmra.mrb[0].mxu0 %v1410
      %v1639 = vpop.f32.mrb[0].mxu0
      %v1640 = vadd.f32 %v1544, %v1639
      %v1641 = vpop.f32.mrb[0].mxu0
      %1642 = vmatprep.mubr.f32.mxu0 %v1561
      %1643 = vmatmul.mubr.f32.gmra.mrb[0].mxu0 %v1412
      %v1644 = vpop.f32.mrb[0].mxu0
      %v1645 = vadd.f32 %v1549, %v1644
      %v1646 = vpop.f32.mrb[0].mxu0
      %1647 = vdwg.mxu0
      %v1648 = vld [vmem:[#allocation2] sm:$0xff]
      %v1649 = vld [vmem:[#allocation2 + $0x8] sm:$0xff]
      %v1650 = vld [vmem:[#allocation2 + $0x10] sm:$0xff]
      %v1651 = vld [vmem:[#allocation2 + $0x18] sm:$0xff]
      %v1652 = vld [vmem:[#allocation2 + $0x20] sm:$0xff]
      %v1653 = vld [vmem:[#allocation2 + $0x28] sm:$0xff]
      %v1654 = vld [vmem:[#allocation2 + $0x30] sm:$0xff]
      %v1655 = vld [vmem:[#allocation2 + $0x38] sm:$0xff]
      %1664 = vrot.lane.b32.xlu0 %v1648, 126
      %v1665 = vpop.permute.xlu0 %1664
      %1666 = vrot.lane.b32.xlu0 %v1649, 126
      %v1667 = vpop.permute.xlu0 %1666
      %1668 = vrot.lane.b32.xlu0 %v1650, 126
      %v1669 = vpop.permute.xlu0 %1668
      %1670 = vrot.lane.b32.xlu0 %v1651, 126
      %v1671 = vpop.permute.xlu0 %1670
      %1672 = vrot.lane.b32.xlu0 %v1652, 126
      %v1673 = vpop.permute.xlu0 %1672
      %1674 = vrot.lane.b32.xlu0 %v1653, 126
      %v1675 = vpop.permute.xlu0 %1674
      %1676 = vrot.lane.b32.xlu0 %v1654, 126
      %v1677 = vpop.permute.xlu0 %1676
      %1678 = vrot.lane.b32.xlu0 %v1655, 126
      %v1679 = vpop.permute.xlu0 %1678
      %v1680 = vsel %vm374, %v1665, %v1667
      %v1681 = vsel %vm374, %v1669, %v1671
      %v1682 = vsel %vm374, %v1673, %v1675
      %v1683 = vsel %vm374, %v1677, %v1679
      %v1688 = vadd.f32 %v1630, %v1680
      %v1689 = vadd.f32 %v1635, %v1681
      %v1690 = vadd.f32 %v1640, %v1682
      %v1691 = vadd.f32 %v1645, %v1683
      %v1692 = vsel %vm494, %v1688, 0.0
      %v1693 = vsel %vm494, %v1689, 0.0
      %v1694 = vsel %vm494, %v1690, 0.0
      %v1695 = vsel %vm494, %v1691, 0.0
      %1700 = vrot.lane.b32.xlu0 %v1692, 2
      %v1701 = vpop.permute.xlu0 %1700
      %1702 = vrot.lane.b32.xlu0 %v1693, 2
      %v1703 = vpop.permute.xlu0 %1702
      %1704 = vrot.lane.b32.xlu0 %v1694, 2
      %v1705 = vpop.permute.xlu0 %1704
      %1706 = vrot.lane.b32.xlu0 %v1695, 2
      %v1707 = vpop.permute.xlu0 %1706
      %1712 = vst.msk [vmem:[#allocation2] sm:$0xff] %vm515, %v1701
      %1713 = vst.msk [vmem:[#allocation2 + $0x8] sm:$0xff] %vm517, %v1701
      %1714 = vst.msk [vmem:[#allocation2 + $0x10] sm:$0xff] %vm515, %v1703
      %1715 = vst.msk [vmem:[#allocation2 + $0x18] sm:$0xff] %vm517, %v1703
      %1716 = vst.msk [vmem:[#allocation2 + $0x20] sm:$0xff] %vm515, %v1705
      %1717 = vst.msk [vmem:[#allocation2 + $0x28] sm:$0xff] %vm517, %v1705
      %1718 = vst.msk [vmem:[#allocation2 + $0x30] sm:$0xff] %vm515, %v1707
      %1719 = vst.msk [vmem:[#allocation2 + $0x38] sm:$0xff] %vm517, %v1707
      %s1720 = scalar_lea.vmem %s2, 128
      %v1721 = vld [vmem:[%s1720] sm:$0xff]
      %v1722 = vld [vmem:[%s1720 + $0x8] sm:$0xff]
      %v1723 = vld [vmem:[%s1720 + $0x10] sm:$0xff]
      %v1724 = vld [vmem:[%s1720 + $0x18] sm:$0xff]
      %v1725 = vld [vmem:[%s1720 + $0x20] sm:$0xff]
      %v1726 = vld [vmem:[%s1720 + $0x28] sm:$0xff]
      %v1727 = vld [vmem:[%s1720 + $0x30] sm:$0xff]
      %v1728 = vld [vmem:[%s1720 + $0x38] sm:$0xff]
      %s1729 = scalar_lea.vmem %s3, 64
      %v1730 = vld [vmem:[%s1729] sm:$0xff]
      %v1731 = vld [vmem:[%s1729 + $0x8] sm:$0xff]
      %v1732 = vld [vmem:[%s1729 + $0x10] sm:$0xff]
      %v1733 = vld [vmem:[%s1729 + $0x18] sm:$0xff]
      %v1734 = vld [vmem:[#allocation2] sm:$0xff]
      %v1735 = vld [vmem:[#allocation2 + $0x10] sm:$0xff]
      %v1736 = vld [vmem:[#allocation2 + $0x20] sm:$0xff]
      %v1737 = vld [vmem:[#allocation2 + $0x30] sm:$0xff]
      %v1738 = vld [vmem:[#allocation2 + $0x8] sm:$0xff]
      %v1739 = vld [vmem:[#allocation2 + $0x18] sm:$0xff]
      %v1740 = vld [vmem:[#allocation2 + $0x28] sm:$0xff]
      %v1741 = vld [vmem:[#allocation2 + $0x38] sm:$0xff]
      %1750 = vrot.lane.b32.xlu0 %v1734, 127
      %v1751 = vpop.permute.xlu0 %1750
      %1752 = vrot.lane.b32.xlu0 %v1738, 127
      %v1753 = vpop.permute.xlu0 %1752
      %1754 = vrot.lane.b32.xlu0 %v1735, 127
      %v1755 = vpop.permute.xlu0 %1754
      %1756 = vrot.lane.b32.xlu0 %v1739, 127
      %v1757 = vpop.permute.xlu0 %1756
      %1758 = vrot.lane.b32.xlu0 %v1736, 127
      %v1759 = vpop.permute.xlu0 %1758
      %1760 = vrot.lane.b32.xlu0 %v1740, 127
      %v1761 = vpop.permute.xlu0 %1760
      %1762 = vrot.lane.b32.xlu0 %v1737, 127
      %v1763 = vpop.permute.xlu0 %1762
      %1764 = vrot.lane.b32.xlu0 %v1741, 127
      %v1765 = vpop.permute.xlu0 %1764
      %v1766 = vsel %vm345, %v1751, %v1753
      %v1767 = vsel %vm345, %v1755, %v1757
      %v1768 = vsel %vm345, %v1759, %v1761
      %v1769 = vsel %vm345, %v1763, %v1765
      %1774 = vrot.lane.b32.xlu0 %v1734, 126
      %v1775 = vpop.permute.xlu0 %1774
      %1776 = vrot.lane.b32.xlu0 %v1738, 126
      %v1777 = vpop.permute.xlu0 %1776
      %1778 = vrot.lane.b32.xlu0 %v1735, 126
      %v1779 = vpop.permute.xlu0 %1778
      %1780 = vrot.lane.b32.xlu0 %v1739, 126
      %v1781 = vpop.permute.xlu0 %1780
      %1782 = vrot.lane.b32.xlu0 %v1736, 126
      %v1783 = vpop.permute.xlu0 %1782
      %1784 = vrot.lane.b32.xlu0 %v1740, 126
      %v1785 = vpop.permute.xlu0 %1784
      %1786 = vrot.lane.b32.xlu0 %v1737, 126
      %v1787 = vpop.permute.xlu0 %1786
      %1788 = vrot.lane.b32.xlu0 %v1741, 126
      %v1789 = vpop.permute.xlu0 %1788
      %v1790 = vsel %vm374, %v1775, %v1777
      %v1791 = vsel %vm374, %v1779, %v1781
      %v1792 = vsel %vm374, %v1783, %v1785
      %v1793 = vsel %vm374, %v1787, %v1789
      %1798 = vrot.lane.b32.xlu0 %v1734, 125
      %v1799 = vpop.permute.xlu0 %1798
      %1800 = vrot.lane.b32.xlu0 %v1738, 125
      %v1801 = vpop.permute.xlu0 %1800
      %1802 = vrot.lane.b32.xlu0 %v1735, 125
      %v1803 = vpop.permute.xlu0 %1802
      %1804 = vrot.lane.b32.xlu0 %v1739, 125
      %v1805 = vpop.permute.xlu0 %1804
      %1806 = vrot.lane.b32.xlu0 %v1736, 125
      %v1807 = vpop.permute.xlu0 %1806
      %1808 = vrot.lane.b32.xlu0 %v1740, 125
      %v1809 = vpop.permute.xlu0 %1808
      %1810 = vrot.lane.b32.xlu0 %v1737, 125
      %v1811 = vpop.permute.xlu0 %1810
      %1812 = vrot.lane.b32.xlu0 %v1741, 125
      %v1813 = vpop.permute.xlu0 %1812
      %v1814 = vsel %vm617, %v1799, %v1801
      %v1815 = vsel %vm617, %v1803, %v1805
      %v1816 = vsel %vm617, %v1807, %v1809
      %v1817 = vsel %vm617, %v1811, %v1813
      %1822 = vrot.lane.b32.xlu0 %v1734, 124
      %v1823 = vpop.permute.xlu0 %1822
      %1824 = vrot.lane.b32.xlu0 %v1738, 124
      %v1825 = vpop.permute.xlu0 %1824
      %1826 = vrot.lane.b32.xlu0 %v1735, 124
      %v1827 = vpop.permute.xlu0 %1826
      %1828 = vrot.lane.b32.xlu0 %v1739, 124
      %v1829 = vpop.permute.xlu0 %1828
      %1830 = vrot.lane.b32.xlu0 %v1736, 124
      %v1831 = vpop.permute.xlu0 %1830
      %1832 = vrot.lane.b32.xlu0 %v1740, 124
      %v1833 = vpop.permute.xlu0 %1832
      %1834 = vrot.lane.b32.xlu0 %v1737, 124
      %v1835 = vpop.permute.xlu0 %1834
      %1836 = vrot.lane.b32.xlu0 %v1741, 124
      %v1837 = vpop.permute.xlu0 %1836
      %v1838 = vsel %vm642, %v1823, %v1825
      %v1839 = vsel %vm642, %v1827, %v1829
      %v1840 = vsel %vm642, %v1831, %v1833
      %v1841 = vsel %vm642, %v1835, %v1837
      %1847 = vset.pattern.permute.xlu0 0
      %1848 = vperm.xlu0 %1847, %v1730
      %v1849 = vpop.permute.xlu0 %1848
      %1852 = vset.pattern.permute.xlu0 0
      %1853 = vperm.xlu0 %1852, %v1731
      %v1854 = vpop.permute.xlu0 %1853
      %1857 = vset.pattern.permute.xlu0 0
      %1858 = vperm.xlu0 %1857, %v1732
      %v1859 = vpop.permute.xlu0 %1858
      %1862 = vset.pattern.permute.xlu0 0
      %1863 = vperm.xlu0 %1862, %v1733
      %v1864 = vpop.permute.xlu0 %1863
      %v1867 = vsel %vm671, %v1722, 0
      %v1870 = vsel %vm671, %v1724, 0
      %v1873 = vsel %vm671, %v1726, 0
      %v1876 = vsel %vm671, %v1728, 0
      %1878 = vmatprep.subr.mxu0 0.0
      %1879 = vmatpush1.msra.mxu0 %v1734
      %1880 = vmatprep.subr.mxu0 0.0
      %1881 = vmatpush1.msra.mxu0 %v1735
      %1882 = vmatprep.subr.mxu0 0.0
      %1883 = vmatpush1.msra.mxu0 %v1736
      %1884 = vmatprep.subr.mxu0 0.0
      %1885 = vmatpush1.msra.mxu0 %v1737
      %1886 = vmatprep.subr.mxu0 0.0
      %1887 = vmatpush1.msra.mxu0 %v1766
      %1888 = vmatprep.subr.mxu0 0.0
      %1889 = vmatpush1.msra.mxu0 %v1767
      %1890 = vmatprep.subr.mxu0 0.0
      %1891 = vmatpush1.msra.mxu0 %v1768
      %1892 = vmatprep.subr.mxu0 0.0
      %1893 = vmatpush1.msra.mxu0 %v1769
      %1894 = vmatprep.subr.mxu0 0.0
      %1895 = vmatpush1.msra.mxu0 %v1790
      %1896 = vmatprep.subr.mxu0 0.0
      %1897 = vmatpush1.msra.mxu0 %v1791
      %1898 = vmatprep.subr.mxu0 0.0
      %1899 = vmatpush1.msra.mxu0 %v1792
      %1900 = vmatprep.subr.mxu0 0.0
      %1901 = vmatpush1.msra.mxu0 %v1793
      %1902 = vmatprep.subr.mxu0 0.0
      %1903 = vmatpush1.msra.mxu0 %v1814
      %1904 = vmatprep.subr.mxu0 0.0
      %1905 = vmatpush1.msra.mxu0 %v1815
      %1906 = vmatprep.subr.mxu0 0.0
      %1907 = vmatpush1.msra.mxu0 %v1816
      %1908 = vmatprep.subr.mxu0 0.0
      %1909 = vmatpush1.msra.mxu0 %v1817
      %1910 = vmatprep.subr.mxu0 0.0
      %1911 = vmatpush1.msra.mxu0 %v1838
      %1912 = vmatprep.subr.mxu0 0.0
      %1913 = vmatpush1.msra.mxu0 %v1839
      %1914 = vmatprep.subr.mxu0 0.0
      %1915 = vmatpush1.msra.mxu0 %v1840
      %1916 = vmatprep.subr.mxu0 0.0
      %1917 = vmatpush1.msra.mxu0 %v1841
      %1918 = vmatprep.subr.mxu0 0.0
      %1919 = vmatpush1.msra.mxu0 0.0
      %1920 = vmatprep.subr.mxu0 0.0
      %1921 = vmatpush1.msra.mxu0 0.0
      %1922 = vmatprep.subr.mxu0 0.0
      %1923 = vmatpush1.msra.mxu0 0.0
      %1924 = vmatprep.subr.mxu0 0.0
      %1925 = vmatpush1.msra.mxu0 0.0
      %1926 = vmatprep.subr.mxu0 0.0
      %1927 = vmatpush1.msra.mxu0 0.0
      %1928 = vmatprep.subr.mxu0 0.0
      %1929 = vmatpush1.msra.mxu0 0.0
      %1930 = vmatprep.subr.mxu0 0.0
      %1931 = vmatpush1.msra.mxu0 0.0
      %1932 = vmatprep.subr.mxu0 0.0
      %1933 = vmatpush1.msra.mxu0 0.0
      %1934 = vmatprep.subr.mxu0 0.0
      %1935 = vmatpush1.msra.mxu0 0.0
      %1936 = vmatprep.subr.mxu0 0.0
      %1937 = vmatpush1.msra.mxu0 0.0
      %1938 = vmatprep.subr.mxu0 0.0
      %1939 = vmatpush1.msra.mxu0 0.0
      %1940 = vmatprep.subr.mxu0 0.0
      %1941 = vmatpush1.msra.mxu0 0.0
      %1942 = vmatprep.mubr.f32.mxu0 %v1867
      %1943 = vmatmul.mubr.f32.gmra.mrb[0].mxu0 %v1721
      %v1944 = vpop.f32.mrb[0].mxu0
      %v1945 = vadd.f32 %v1849, %v1944
      %v1946 = vpop.f32.mrb[0].mxu0
      %1947 = vmatprep.mubr.f32.mxu0 %v1870
      %1948 = vmatmul.mubr.f32.gmra.mrb[0].mxu0 %v1723
      %v1949 = vpop.f32.mrb[0].mxu0
      %v1950 = vadd.f32 %v1854, %v1949
      %v1951 = vpop.f32.mrb[0].mxu0
      %1952 = vmatprep.mubr.f32.mxu0 %v1873
      %1953 = vmatmul.mubr.f32.gmra.mrb[0].mxu0 %v1725
      %v1954 = vpop.f32.mrb[0].mxu0
      %v1955 = vadd.f32 %v1859, %v1954
      %v1956 = vpop.f32.mrb[0].mxu0
      %1957 = vmatprep.mubr.f32.mxu0 %v1876
      %1958 = vmatmul.mubr.f32.gmra.mrb[0].mxu0 %v1727
      %v1959 = vpop.f32.mrb[0].mxu0
      %v1960 = vadd.f32 %v1864, %v1959
      %v1961 = vpop.f32.mrb[0].mxu0
      %1962 = vdwg.mxu0
      %vm1963 = vcmp.ge.f32.partialorder %v1945, 0.0
      %vm1964 = vcmp.ge.f32.partialorder %v1950, 0.0
      %vm1965 = vcmp.ge.f32.partialorder %v1955, 0.0
      %vm1966 = vcmp.ge.f32.partialorder %v1960, 0.0
      %v1967 = vmul.f32 %v1945, 32.0
      %v1968 = vmul.f32 %v1950, 32.0
      %v1969 = vmul.f32 %v1955, 32.0
      %v1970 = vmul.f32 %v1960, 32.0
      %v1971 = vsel %vm1963, %v1945, %v1967
      %v1972 = vsel %vm1964, %v1950, %v1968
      %v1973 = vsel %vm1965, %v1955, %v1969
      %v1974 = vsel %vm1966, %v1960, %v1970
      %v1975 = vsel %vm494, %v1971, 0.0
      %v1976 = vsel %vm494, %v1972, 0.0
      %v1977 = vsel %vm494, %v1973, 0.0
      %v1978 = vsel %vm494, %v1974, 0.0
      %1983 = vrot.lane.b32.xlu0 %v1975, 2
      %v1984 = vpop.permute.xlu0 %1983
      %1985 = vrot.lane.b32.xlu0 %v1976, 2
      %v1986 = vpop.permute.xlu0 %1985
      %1987 = vrot.lane.b32.xlu0 %v1977, 2
      %v1988 = vpop.permute.xlu0 %1987
      %1989 = vrot.lane.b32.xlu0 %v1978, 2
      %v1990 = vpop.permute.xlu0 %1989
      %1995 = vst.msk [vmem:[#allocation3] sm:$0xff] %vm515, %v1984
      %1996 = vst.msk [vmem:[#allocation3 + $0x8] sm:$0xff] %vm517, %v1984
      %1997 = vst.msk [vmem:[#allocation3 + $0x10] sm:$0xff] %vm515, %v1986
      %1998 = vst.msk [vmem:[#allocation3 + $0x18] sm:$0xff] %vm517, %v1986
      %1999 = vst.msk [vmem:[#allocation3 + $0x20] sm:$0xff] %vm515, %v1988
      %2000 = vst.msk [vmem:[#allocation3 + $0x28] sm:$0xff] %vm517, %v1988
      %2001 = vst.msk [vmem:[#allocation3 + $0x30] sm:$0xff] %vm515, %v1990
      %2002 = vst.msk [vmem:[#allocation3 + $0x38] sm:$0xff] %vm517, %v1990
      %s2003 = scalar_lea.vmem %s4, 128
      %v2004 = vld [vmem:[%s2003] sm:$0xff]
      %v2005 = vld [vmem:[%s2003 + $0x8] sm:$0xff]
      %v2006 = vld [vmem:[%s2003 + $0x10] sm:$0xff]
      %v2007 = vld [vmem:[%s2003 + $0x18] sm:$0xff]
      %v2008 = vld [vmem:[%s2003 + $0x20] sm:$0xff]
      %v2009 = vld [vmem:[%s2003 + $0x28] sm:$0xff]
      %v2010 = vld [vmem:[%s2003 + $0x30] sm:$0xff]
      %v2011 = vld [vmem:[%s2003 + $0x38] sm:$0xff]
      %s2012 = scalar_lea.vmem %s5, 64
      %v2013 = vld [vmem:[%s2012] sm:$0xff]
      %v2014 = vld [vmem:[%s2012 + $0x8] sm:$0xff]
      %v2015 = vld [vmem:[%s2012 + $0x10] sm:$0xff]
      %v2016 = vld [vmem:[%s2012 + $0x18] sm:$0xff]
      %v2017 = vld [vmem:[#allocation3] sm:$0xff]
      %v2018 = vld [vmem:[#allocation3 + $0x10] sm:$0xff]
      %v2019 = vld [vmem:[#allocation3 + $0x20] sm:$0xff]
      %v2020 = vld [vmem:[#allocation3 + $0x30] sm:$0xff]
      %v2021 = vld [vmem:[#allocation3 + $0x8] sm:$0xff]
      %v2022 = vld [vmem:[#allocation3 + $0x18] sm:$0xff]
      %v2023 = vld [vmem:[#allocation3 + $0x28] sm:$0xff]
      %v2024 = vld [vmem:[#allocation3 + $0x38] sm:$0xff]
      %2033 = vrot.lane.b32.xlu0 %v2017, 127
      %v2034 = vpop.permute.xlu0 %2033
      %2035 = vrot.lane.b32.xlu0 %v2021, 127
      %v2036 = vpop.permute.xlu0 %2035
      %2037 = vrot.lane.b32.xlu0 %v2018, 127
      %v2038 = vpop.permute.xlu0 %2037
      %2039 = vrot.lane.b32.xlu0 %v2022, 127
      %v2040 = vpop.permute.xlu0 %2039
      %2041 = vrot.lane.b32.xlu0 %v2019, 127
      %v2042 = vpop.permute.xlu0 %2041
      %2043 = vrot.lane.b32.xlu0 %v2023, 127
      %v2044 = vpop.permute.xlu0 %2043
      %2045 = vrot.lane.b32.xlu0 %v2020, 127
      %v2046 = vpop.permute.xlu0 %2045
      %2047 = vrot.lane.b32.xlu0 %v2024, 127
      %v2048 = vpop.permute.xlu0 %2047
      %v2049 = vsel %vm345, %v2034, %v2036
      %v2050 = vsel %vm345, %v2038, %v2040
      %v2051 = vsel %vm345, %v2042, %v2044
      %v2052 = vsel %vm345, %v2046, %v2048
      %2057 = vrot.lane.b32.xlu0 %v2017, 126
      %v2058 = vpop.permute.xlu0 %2057
      %2059 = vrot.lane.b32.xlu0 %v2021, 126
      %v2060 = vpop.permute.xlu0 %2059
      %2061 = vrot.lane.b32.xlu0 %v2018, 126
      %v2062 = vpop.permute.xlu0 %2061
      %2063 = vrot.lane.b32.xlu0 %v2022, 126
      %v2064 = vpop.permute.xlu0 %2063
      %2065 = vrot.lane.b32.xlu0 %v2019, 126
      %v2066 = vpop.permute.xlu0 %2065
      %2067 = vrot.lane.b32.xlu0 %v2023, 126
      %v2068 = vpop.permute.xlu0 %2067
      %2069 = vrot.lane.b32.xlu0 %v2020, 126
      %v2070 = vpop.permute.xlu0 %2069
      %2071 = vrot.lane.b32.xlu0 %v2024, 126
      %v2072 = vpop.permute.xlu0 %2071
      %v2073 = vsel %vm374, %v2058, %v2060
      %v2074 = vsel %vm374, %v2062, %v2064
      %v2075 = vsel %vm374, %v2066, %v2068
      %v2076 = vsel %vm374, %v2070, %v2072
      %2081 = vrot.lane.b32.xlu0 %v2017, 125
      %v2082 = vpop.permute.xlu0 %2081
      %2083 = vrot.lane.b32.xlu0 %v2021, 125
      %v2084 = vpop.permute.xlu0 %2083
      %2085 = vrot.lane.b32.xlu0 %v2018, 125
      %v2086 = vpop.permute.xlu0 %2085
      %2087 = vrot.lane.b32.xlu0 %v2022, 125
      %v2088 = vpop.permute.xlu0 %2087
      %2089 = vrot.lane.b32.xlu0 %v2019, 125
      %v2090 = vpop.permute.xlu0 %2089
      %2091 = vrot.lane.b32.xlu0 %v2023, 125
      %v2092 = vpop.permute.xlu0 %2091
      %2093 = vrot.lane.b32.xlu0 %v2020, 125
      %v2094 = vpop.permute.xlu0 %2093
      %2095 = vrot.lane.b32.xlu0 %v2024, 125
      %v2096 = vpop.permute.xlu0 %2095
      %v2097 = vsel %vm617, %v2082, %v2084
      %v2098 = vsel %vm617, %v2086, %v2088
      %v2099 = vsel %vm617, %v2090, %v2092
      %v2100 = vsel %vm617, %v2094, %v2096
      %2105 = vrot.lane.b32.xlu0 %v2017, 124
      %v2106 = vpop.permute.xlu0 %2105
      %2107 = vrot.lane.b32.xlu0 %v2021, 124
      %v2108 = vpop.permute.xlu0 %2107
      %2109 = vrot.lane.b32.xlu0 %v2018, 124
      %v2110 = vpop.permute.xlu0 %2109
      %2111 = vrot.lane.b32.xlu0 %v2022, 124
      %v2112 = vpop.permute.xlu0 %2111
      %2113 = vrot.lane.b32.xlu0 %v2019, 124
      %v2114 = vpop.permute.xlu0 %2113
      %2115 = vrot.lane.b32.xlu0 %v2023, 124
      %v2116 = vpop.permute.xlu0 %2115
      %2117 = vrot.lane.b32.xlu0 %v2020, 124
      %v2118 = vpop.permute.xlu0 %2117
      %2119 = vrot.lane.b32.xlu0 %v2024, 124
      %v2120 = vpop.permute.xlu0 %2119
      %v2121 = vsel %vm642, %v2106, %v2108
      %v2122 = vsel %vm642, %v2110, %v2112
      %v2123 = vsel %vm642, %v2114, %v2116
      %v2124 = vsel %vm642, %v2118, %v2120
      %2130 = vset.pattern.permute.xlu0 0
      %2131 = vperm.xlu0 %2130, %v2013
      %v2132 = vpop.permute.xlu0 %2131
      %2135 = vset.pattern.permute.xlu0 0
      %2136 = vperm.xlu0 %2135, %v2014
      %v2137 = vpop.permute.xlu0 %2136
      %2140 = vset.pattern.permute.xlu0 0
      %2141 = vperm.xlu0 %2140, %v2015
      %v2142 = vpop.permute.xlu0 %2141
      %2145 = vset.pattern.permute.xlu0 0
      %2146 = vperm.xlu0 %2145, %v2016
      %v2147 = vpop.permute.xlu0 %2146
      %v2150 = vsel %vm671, %v2005, 0
      %v2153 = vsel %vm671, %v2007, 0
      %v2156 = vsel %vm671, %v2009, 0
      %v2159 = vsel %vm671, %v2011, 0
      %2161 = vmatprep.subr.mxu0 0.0
      %2162 = vmatpush1.msra.mxu0 %v2017
      %2163 = vmatprep.subr.mxu0 0.0
      %2164 = vmatpush1.msra.mxu0 %v2018
      %2165 = vmatprep.subr.mxu0 0.0
      %2166 = vmatpush1.msra.mxu0 %v2019
      %2167 = vmatprep.subr.mxu0 0.0
      %2168 = vmatpush1.msra.mxu0 %v2020
      %2169 = vmatprep.subr.mxu0 0.0
      %2170 = vmatpush1.msra.mxu0 %v2049
      %2171 = vmatprep.subr.mxu0 0.0
      %2172 = vmatpush1.msra.mxu0 %v2050
      %2173 = vmatprep.subr.mxu0 0.0
      %2174 = vmatpush1.msra.mxu0 %v2051
      %2175 = vmatprep.subr.mxu0 0.0
      %2176 = vmatpush1.msra.mxu0 %v2052
      %2177 = vmatprep.subr.mxu0 0.0
      %2178 = vmatpush1.msra.mxu0 %v2073
      %2179 = vmatprep.subr.mxu0 0.0
      %2180 = vmatpush1.msra.mxu0 %v2074
      %2181 = vmatprep.subr.mxu0 0.0
      %2182 = vmatpush1.msra.mxu0 %v2075
      %2183 = vmatprep.subr.mxu0 0.0
      %2184 = vmatpush1.msra.mxu0 %v2076
      %2185 = vmatprep.subr.mxu0 0.0
      %2186 = vmatpush1.msra.mxu0 %v2097
      %2187 = vmatprep.subr.mxu0 0.0
      %2188 = vmatpush1.msra.mxu0 %v2098
      %2189 = vmatprep.subr.mxu0 0.0
      %2190 = vmatpush1.msra.mxu0 %v2099
      %2191 = vmatprep.subr.mxu0 0.0
      %2192 = vmatpush1.msra.mxu0 %v2100
      %2193 = vmatprep.subr.mxu0 0.0
      %2194 = vmatpush1.msra.mxu0 %v2121
      %2195 = vmatprep.subr.mxu0 0.0
      %2196 = vmatpush1.msra.mxu0 %v2122
      %2197 = vmatprep.subr.mxu0 0.0
      %2198 = vmatpush1.msra.mxu0 %v2123
      %2199 = vmatprep.subr.mxu0 0.0
      %2200 = vmatpush1.msra.mxu0 %v2124
      %2201 = vmatprep.subr.mxu0 0.0
      %2202 = vmatpush1.msra.mxu0 0.0
      %2203 = vmatprep.subr.mxu0 0.0
      %2204 = vmatpush1.msra.mxu0 0.0
      %2205 = vmatprep.subr.mxu0 0.0
      %2206 = vmatpush1.msra.mxu0 0.0
      %2207 = vmatprep.subr.mxu0 0.0
      %2208 = vmatpush1.msra.mxu0 0.0
      %2209 = vmatprep.subr.mxu0 0.0
      %2210 = vmatpush1.msra.mxu0 0.0
      %2211 = vmatprep.subr.mxu0 0.0
      %2212 = vmatpush1.msra.mxu0 0.0
      %2213 = vmatprep.subr.mxu0 0.0
      %2214 = vmatpush1.msra.mxu0 0.0
      %2215 = vmatprep.subr.mxu0 0.0
      %2216 = vmatpush1.msra.mxu0 0.0
      %2217 = vmatprep.subr.mxu0 0.0
      %2218 = vmatpush1.msra.mxu0 0.0
      %2219 = vmatprep.subr.mxu0 0.0
      %2220 = vmatpush1.msra.mxu0 0.0
      %2221 = vmatprep.subr.mxu0 0.0
      %2222 = vmatpush1.msra.mxu0 0.0
      %2223 = vmatprep.subr.mxu0 0.0
      %2224 = vmatpush1.msra.mxu0 0.0
      %2225 = vmatprep.mubr.f32.mxu0 %v2150
      %2226 = vmatmul.mubr.f32.gmra.mrb[0].mxu0 %v2004
      %v2227 = vpop.f32.mrb[0].mxu0
      %v2228 = vadd.f32 %v2132, %v2227
      %v2229 = vpop.f32.mrb[0].mxu0
      %2230 = vmatprep.mubr.f32.mxu0 %v2153
      %2231 = vmatmul.mubr.f32.gmra.mrb[0].mxu0 %v2006
      %v2232 = vpop.f32.mrb[0].mxu0
      %v2233 = vadd.f32 %v2137, %v2232
      %v2234 = vpop.f32.mrb[0].mxu0
      %2235 = vmatprep.mubr.f32.mxu0 %v2156
      %2236 = vmatmul.mubr.f32.gmra.mrb[0].mxu0 %v2008
      %v2237 = vpop.f32.mrb[0].mxu0
      %v2238 = vadd.f32 %v2142, %v2237
      %v2239 = vpop.f32.mrb[0].mxu0
      %2240 = vmatprep.mubr.f32.mxu0 %v2159
      %2241 = vmatmul.mubr.f32.gmra.mrb[0].mxu0 %v2010
      %v2242 = vpop.f32.mrb[0].mxu0
      %v2243 = vadd.f32 %v2147, %v2242
      %v2244 = vpop.f32.mrb[0].mxu0
      %2245 = vdwg.mxu0
      %v2246 = vld [vmem:[#allocation2] sm:$0xff]
      %v2247 = vld [vmem:[#allocation2 + $0x8] sm:$0xff]
      %v2248 = vld [vmem:[#allocation2 + $0x10] sm:$0xff]
      %v2249 = vld [vmem:[#allocation2 + $0x18] sm:$0xff]
      %v2250 = vld [vmem:[#allocation2 + $0x20] sm:$0xff]
      %v2251 = vld [vmem:[#allocation2 + $0x28] sm:$0xff]
      %v2252 = vld [vmem:[#allocation2 + $0x30] sm:$0xff]
      %v2253 = vld [vmem:[#allocation2 + $0x38] sm:$0xff]
      %2262 = vrot.lane.b32.xlu0 %v2246, 126
      %v2263 = vpop.permute.xlu0 %2262
      %2264 = vrot.lane.b32.xlu0 %v2247, 126
      %v2265 = vpop.permute.xlu0 %2264
      %2266 = vrot.lane.b32.xlu0 %v2248, 126
      %v2267 = vpop.permute.xlu0 %2266
      %2268 = vrot.lane.b32.xlu0 %v2249, 126
      %v2269 = vpop.permute.xlu0 %2268
      %2270 = vrot.lane.b32.xlu0 %v2250, 126
      %v2271 = vpop.permute.xlu0 %2270
      %2272 = vrot.lane.b32.xlu0 %v2251, 126
      %v2273 = vpop.permute.xlu0 %2272
      %2274 = vrot.lane.b32.xlu0 %v2252, 126
      %v2275 = vpop.permute.xlu0 %2274
      %2276 = vrot.lane.b32.xlu0 %v2253, 126
      %v2277 = vpop.permute.xlu0 %2276
      %v2278 = vsel %vm374, %v2263, %v2265
      %v2279 = vsel %vm374, %v2267, %v2269
      %v2280 = vsel %vm374, %v2271, %v2273
      %v2281 = vsel %vm374, %v2275, %v2277
      %v2286 = vadd.f32 %v2228, %v2278
      %v2287 = vadd.f32 %v2233, %v2279
      %v2288 = vadd.f32 %v2238, %v2280
      %v2289 = vadd.f32 %v2243, %v2281
      %v2290 = vsel %vm494, %v2286, 0.0
      %v2291 = vsel %vm494, %v2287, 0.0
      %v2292 = vsel %vm494, %v2288, 0.0
      %v2293 = vsel %vm494, %v2289, 0.0
      %2298 = vrot.lane.b32.xlu0 %v2290, 2
      %v2299 = vpop.permute.xlu0 %2298
      %2300 = vrot.lane.b32.xlu0 %v2291, 2
      %v2301 = vpop.permute.xlu0 %2300
      %2302 = vrot.lane.b32.xlu0 %v2292, 2
      %v2303 = vpop.permute.xlu0 %2302
      %2304 = vrot.lane.b32.xlu0 %v2293, 2
      %v2305 = vpop.permute.xlu0 %2304
      %2310 = vst.msk [vmem:[#allocation2] sm:$0xff] %vm515, %v2299
      %2311 = vst.msk [vmem:[#allocation2 + $0x8] sm:$0xff] %vm517, %v2299
      %2312 = vst.msk [vmem:[#allocation2 + $0x10] sm:$0xff] %vm515, %v2301
      %2313 = vst.msk [vmem:[#allocation2 + $0x18] sm:$0xff] %vm517, %v2301
      %2314 = vst.msk [vmem:[#allocation2 + $0x20] sm:$0xff] %vm515, %v2303
      %2315 = vst.msk [vmem:[#allocation2 + $0x28] sm:$0xff] %vm517, %v2303
      %2316 = vst.msk [vmem:[#allocation2 + $0x30] sm:$0xff] %vm515, %v2305
      %2317 = vst.msk [vmem:[#allocation2 + $0x38] sm:$0xff] %vm517, %v2305
      %s2318 = scalar_lea.vmem %s2, 192
      %v2319 = vld [vmem:[%s2318] sm:$0xff]
      %v2320 = vld [vmem:[%s2318 + $0x8] sm:$0xff]
      %v2321 = vld [vmem:[%s2318 + $0x10] sm:$0xff]
      %v2322 = vld [vmem:[%s2318 + $0x18] sm:$0xff]
      %v2323 = vld [vmem:[%s2318 + $0x20] sm:$0xff]
      %v2324 = vld [vmem:[%s2318 + $0x28] sm:$0xff]
      %v2325 = vld [vmem:[%s2318 + $0x30] sm:$0xff]
      %v2326 = vld [vmem:[%s2318 + $0x38] sm:$0xff]
      %s2327 = scalar_lea.vmem %s3, 96
      %v2328 = vld [vmem:[%s2327] sm:$0xff]
      %v2329 = vld [vmem:[%s2327 + $0x8] sm:$0xff]
      %v2330 = vld [vmem:[%s2327 + $0x10] sm:$0xff]
      %v2331 = vld [vmem:[%s2327 + $0x18] sm:$0xff]
      %v2332 = vld [vmem:[#allocation2] sm:$0xff]
      %v2333 = vld [vmem:[#allocation2 + $0x10] sm:$0xff]
      %v2334 = vld [vmem:[#allocation2 + $0x20] sm:$0xff]
      %v2335 = vld [vmem:[#allocation2 + $0x30] sm:$0xff]
      %v2336 = vld [vmem:[#allocation2 + $0x8] sm:$0xff]
      %v2337 = vld [vmem:[#allocation2 + $0x18] sm:$0xff]
      %v2338 = vld [vmem:[#allocation2 + $0x28] sm:$0xff]
      %v2339 = vld [vmem:[#allocation2 + $0x38] sm:$0xff]
      %2348 = vrot.lane.b32.xlu0 %v2332, 127
      %v2349 = vpop.permute.xlu0 %2348
      %2350 = vrot.lane.b32.xlu0 %v2336, 127
      %v2351 = vpop.permute.xlu0 %2350
      %2352 = vrot.lane.b32.xlu0 %v2333, 127
      %v2353 = vpop.permute.xlu0 %2352
      %2354 = vrot.lane.b32.xlu0 %v2337, 127
      %v2355 = vpop.permute.xlu0 %2354
      %2356 = vrot.lane.b32.xlu0 %v2334, 127
      %v2357 = vpop.permute.xlu0 %2356
      %2358 = vrot.lane.b32.xlu0 %v2338, 127
      %v2359 = vpop.permute.xlu0 %2358
      %2360 = vrot.lane.b32.xlu0 %v2335, 127
      %v2361 = vpop.permute.xlu0 %2360
      %2362 = vrot.lane.b32.xlu0 %v2339, 127
      %v2363 = vpop.permute.xlu0 %2362
      %v2364 = vsel %vm345, %v2349, %v2351
      %v2365 = vsel %vm345, %v2353, %v2355
      %v2366 = vsel %vm345, %v2357, %v2359
      %v2367 = vsel %vm345, %v2361, %v2363
      %2372 = vrot.lane.b32.xlu0 %v2332, 126
      %v2373 = vpop.permute.xlu0 %2372
      %2374 = vrot.lane.b32.xlu0 %v2336, 126
      %v2375 = vpop.permute.xlu0 %2374
      %2376 = vrot.lane.b32.xlu0 %v2333, 126
      %v2377 = vpop.permute.xlu0 %2376
      %2378 = vrot.lane.b32.xlu0 %v2337, 126
      %v2379 = vpop.permute.xlu0 %2378
      %2380 = vrot.lane.b32.xlu0 %v2334, 126
      %v2381 = vpop.permute.xlu0 %2380
      %2382 = vrot.lane.b32.xlu0 %v2338, 126
      %v2383 = vpop.permute.xlu0 %2382
      %2384 = vrot.lane.b32.xlu0 %v2335, 126
      %v2385 = vpop.permute.xlu0 %2384
      %2386 = vrot.lane.b32.xlu0 %v2339, 126
      %v2387 = vpop.permute.xlu0 %2386
      %v2388 = vsel %vm374, %v2373, %v2375
      %v2389 = vsel %vm374, %v2377, %v2379
      %v2390 = vsel %vm374, %v2381, %v2383
      %v2391 = vsel %vm374, %v2385, %v2387
      %2396 = vrot.lane.b32.xlu0 %v2332, 125
      %v2397 = vpop.permute.xlu0 %2396
      %2398 = vrot.lane.b32.xlu0 %v2336, 125
      %v2399 = vpop.permute.xlu0 %2398
      %2400 = vrot.lane.b32.xlu0 %v2333, 125
      %v2401 = vpop.permute.xlu0 %2400
      %2402 = vrot.lane.b32.xlu0 %v2337, 125
      %v2403 = vpop.permute.xlu0 %2402
      %2404 = vrot.lane.b32.xlu0 %v2334, 125
      %v2405 = vpop.permute.xlu0 %2404
      %2406 = vrot.lane.b32.xlu0 %v2338, 125
      %v2407 = vpop.permute.xlu0 %2406
      %2408 = vrot.lane.b32.xlu0 %v2335, 125
      %v2409 = vpop.permute.xlu0 %2408
      %2410 = vrot.lane.b32.xlu0 %v2339, 125
      %v2411 = vpop.permute.xlu0 %2410
      %v2412 = vsel %vm617, %v2397, %v2399
      %v2413 = vsel %vm617, %v2401, %v2403
      %v2414 = vsel %vm617, %v2405, %v2407
      %v2415 = vsel %vm617, %v2409, %v2411
      %2420 = vrot.lane.b32.xlu0 %v2332, 124
      %v2421 = vpop.permute.xlu0 %2420
      %2422 = vrot.lane.b32.xlu0 %v2336, 124
      %v2423 = vpop.permute.xlu0 %2422
      %2424 = vrot.lane.b32.xlu0 %v2333, 124
      %v2425 = vpop.permute.xlu0 %2424
      %2426 = vrot.lane.b32.xlu0 %v2337, 124
      %v2427 = vpop.permute.xlu0 %2426
      %2428 = vrot.lane.b32.xlu0 %v2334, 124
      %v2429 = vpop.permute.xlu0 %2428
      %2430 = vrot.lane.b32.xlu0 %v2338, 124
      %v2431 = vpop.permute.xlu0 %2430
      %2432 = vrot.lane.b32.xlu0 %v2335, 124
      %v2433 = vpop.permute.xlu0 %2432
      %2434 = vrot.lane.b32.xlu0 %v2339, 124
      %v2435 = vpop.permute.xlu0 %2434
      %v2436 = vsel %vm642, %v2421, %v2423
      %v2437 = vsel %vm642, %v2425, %v2427
      %v2438 = vsel %vm642, %v2429, %v2431
      %v2439 = vsel %vm642, %v2433, %v2435
      %2445 = vset.pattern.permute.xlu0 0
      %2446 = vperm.xlu0 %2445, %v2328
      %v2447 = vpop.permute.xlu0 %2446
      %2450 = vset.pattern.permute.xlu0 0
      %2451 = vperm.xlu0 %2450, %v2329
      %v2452 = vpop.permute.xlu0 %2451
      %2455 = vset.pattern.permute.xlu0 0
      %2456 = vperm.xlu0 %2455, %v2330
      %v2457 = vpop.permute.xlu0 %2456
      %2460 = vset.pattern.permute.xlu0 0
      %2461 = vperm.xlu0 %2460, %v2331
      %v2462 = vpop.permute.xlu0 %2461
      %v2465 = vsel %vm671, %v2320, 0
      %v2468 = vsel %vm671, %v2322, 0
      %v2471 = vsel %vm671, %v2324, 0
      %v2474 = vsel %vm671, %v2326, 0
      %2476 = vmatprep.subr.mxu0 0.0
      %2477 = vmatpush1.msra.mxu0 %v2332
      %2478 = vmatprep.subr.mxu0 0.0
      %2479 = vmatpush1.msra.mxu0 %v2333
      %2480 = vmatprep.subr.mxu0 0.0
      %2481 = vmatpush1.msra.mxu0 %v2334
      %2482 = vmatprep.subr.mxu0 0.0
      %2483 = vmatpush1.msra.mxu0 %v2335
      %2484 = vmatprep.subr.mxu0 0.0
      %2485 = vmatpush1.msra.mxu0 %v2364
      %2486 = vmatprep.subr.mxu0 0.0
      %2487 = vmatpush1.msra.mxu0 %v2365
      %2488 = vmatprep.subr.mxu0 0.0
      %2489 = vmatpush1.msra.mxu0 %v2366
      %2490 = vmatprep.subr.mxu0 0.0
      %2491 = vmatpush1.msra.mxu0 %v2367
      %2492 = vmatprep.subr.mxu0 0.0
      %2493 = vmatpush1.msra.mxu0 %v2388
      %2494 = vmatprep.subr.mxu0 0.0
      %2495 = vmatpush1.msra.mxu0 %v2389
      %2496 = vmatprep.subr.mxu0 0.0
      %2497 = vmatpush1.msra.mxu0 %v2390
      %2498 = vmatprep.subr.mxu0 0.0
      %2499 = vmatpush1.msra.mxu0 %v2391
      %2500 = vmatprep.subr.mxu0 0.0
      %2501 = vmatpush1.msra.mxu0 %v2412
      %2502 = vmatprep.subr.mxu0 0.0
      %2503 = vmatpush1.msra.mxu0 %v2413
      %2504 = vmatprep.subr.mxu0 0.0
      %2505 = vmatpush1.msra.mxu0 %v2414
      %2506 = vmatprep.subr.mxu0 0.0
      %2507 = vmatpush1.msra.mxu0 %v2415
      %2508 = vmatprep.subr.mxu0 0.0
      %2509 = vmatpush1.msra.mxu0 %v2436
      %2510 = vmatprep.subr.mxu0 0.0
      %2511 = vmatpush1.msra.mxu0 %v2437
      %2512 = vmatprep.subr.mxu0 0.0
      %2513 = vmatpush1.msra.mxu0 %v2438
      %2514 = vmatprep.subr.mxu0 0.0
      %2515 = vmatpush1.msra.mxu0 %v2439
      %2516 = vmatprep.subr.mxu0 0.0
      %2517 = vmatpush1.msra.mxu0 0.0
      %2518 = vmatprep.subr.mxu0 0.0
      %2519 = vmatpush1.msra.mxu0 0.0
      %2520 = vmatprep.subr.mxu0 0.0
      %2521 = vmatpush1.msra.mxu0 0.0
      %2522 = vmatprep.subr.mxu0 0.0
      %2523 = vmatpush1.msra.mxu0 0.0
      %2524 = vmatprep.subr.mxu0 0.0
      %2525 = vmatpush1.msra.mxu0 0.0
      %2526 = vmatprep.subr.mxu0 0.0
      %2527 = vmatpush1.msra.mxu0 0.0
      %2528 = vmatprep.subr.mxu0 0.0
      %2529 = vmatpush1.msra.mxu0 0.0
      %2530 = vmatprep.subr.mxu0 0.0
      %2531 = vmatpush1.msra.mxu0 0.0
      %2532 = vmatprep.subr.mxu0 0.0
      %2533 = vmatpush1.msra.mxu0 0.0
      %2534 = vmatprep.subr.mxu0 0.0
      %2535 = vmatpush1.msra.mxu0 0.0
      %2536 = vmatprep.subr.mxu0 0.0
      %2537 = vmatpush1.msra.mxu0 0.0
      %2538 = vmatprep.subr.mxu0 0.0
      %2539 = vmatpush1.msra.mxu0 0.0
      %2540 = vmatprep.mubr.f32.mxu0 %v2465
      %2541 = vmatmul.mubr.f32.gmra.mrb[0].mxu0 %v2319
      %v2542 = vpop.f32.mrb[0].mxu0
      %v2543 = vadd.f32 %v2447, %v2542
      %v2544 = vpop.f32.mrb[0].mxu0
      %2545 = vmatprep.mubr.f32.mxu0 %v2468
      %2546 = vmatmul.mubr.f32.gmra.mrb[0].mxu0 %v2321
      %v2547 = vpop.f32.mrb[0].mxu0
      %v2548 = vadd.f32 %v2452, %v2547
      %v2549 = vpop.f32.mrb[0].mxu0
      %2550 = vmatprep.mubr.f32.mxu0 %v2471
      %2551 = vmatmul.mubr.f32.gmra.mrb[0].mxu0 %v2323
      %v2552 = vpop.f32.mrb[0].mxu0
      %v2553 = vadd.f32 %v2457, %v2552
      %v2554 = vpop.f32.mrb[0].mxu0
      %2555 = vmatprep.mubr.f32.mxu0 %v2474
      %2556 = vmatmul.mubr.f32.gmra.mrb[0].mxu0 %v2325
      %v2557 = vpop.f32.mrb[0].mxu0
      %v2558 = vadd.f32 %v2462, %v2557
      %v2559 = vpop.f32.mrb[0].mxu0
      %2560 = vdwg.mxu0
      %vm2561 = vcmp.ge.f32.partialorder %v2543, 0.0
      %vm2562 = vcmp.ge.f32.partialorder %v2548, 0.0
      %vm2563 = vcmp.ge.f32.partialorder %v2553, 0.0
      %vm2564 = vcmp.ge.f32.partialorder %v2558, 0.0
      %v2565 = vmul.f32 %v2543, 32.0
      %v2566 = vmul.f32 %v2548, 32.0
      %v2567 = vmul.f32 %v2553, 32.0
      %v2568 = vmul.f32 %v2558, 32.0
      %v2569 = vsel %vm2561, %v2543, %v2565
      %v2570 = vsel %vm2562, %v2548, %v2566
      %v2571 = vsel %vm2563, %v2553, %v2567
      %v2572 = vsel %vm2564, %v2558, %v2568
      %v2573 = vsel %vm494, %v2569, 0.0
      %v2574 = vsel %vm494, %v2570, 0.0
      %v2575 = vsel %vm494, %v2571, 0.0
      %v2576 = vsel %vm494, %v2572, 0.0
      %2581 = vrot.lane.b32.xlu0 %v2573, 2
      %v2582 = vpop.permute.xlu0 %2581
      %2583 = vrot.lane.b32.xlu0 %v2574, 2
      %v2584 = vpop.permute.xlu0 %2583
      %2585 = vrot.lane.b32.xlu0 %v2575, 2
      %v2586 = vpop.permute.xlu0 %2585
      %2587 = vrot.lane.b32.xlu0 %v2576, 2
      %v2588 = vpop.permute.xlu0 %2587
      %2593 = vst.msk [vmem:[#allocation3] sm:$0xff] %vm515, %v2582
      %2594 = vst.msk [vmem:[#allocation3 + $0x8] sm:$0xff] %vm517, %v2582
      %2595 = vst.msk [vmem:[#allocation3 + $0x10] sm:$0xff] %vm515, %v2584
      %2596 = vst.msk [vmem:[#allocation3 + $0x18] sm:$0xff] %vm517, %v2584
      %2597 = vst.msk [vmem:[#allocation3 + $0x20] sm:$0xff] %vm515, %v2586
      %2598 = vst.msk [vmem:[#allocation3 + $0x28] sm:$0xff] %vm517, %v2586
      %2599 = vst.msk [vmem:[#allocation3 + $0x30] sm:$0xff] %vm515, %v2588
      %2600 = vst.msk [vmem:[#allocation3 + $0x38] sm:$0xff] %vm517, %v2588
      %s2601 = scalar_lea.vmem %s4, 192
      %v2602 = vld [vmem:[%s2601] sm:$0xff]
      %v2603 = vld [vmem:[%s2601 + $0x8] sm:$0xff]
      %v2604 = vld [vmem:[%s2601 + $0x10] sm:$0xff]
      %v2605 = vld [vmem:[%s2601 + $0x18] sm:$0xff]
      %v2606 = vld [vmem:[%s2601 + $0x20] sm:$0xff]
      %v2607 = vld [vmem:[%s2601 + $0x28] sm:$0xff]
      %v2608 = vld [vmem:[%s2601 + $0x30] sm:$0xff]
      %v2609 = vld [vmem:[%s2601 + $0x38] sm:$0xff]
      %s2610 = scalar_lea.vmem %s5, 96
      %v2611 = vld [vmem:[%s2610] sm:$0xff]
      %v2612 = vld [vmem:[%s2610 + $0x8] sm:$0xff]
      %v2613 = vld [vmem:[%s2610 + $0x10] sm:$0xff]
      %v2614 = vld [vmem:[%s2610 + $0x18] sm:$0xff]
      %v2615 = vld [vmem:[#allocation3] sm:$0xff]
      %v2616 = vld [vmem:[#allocation3 + $0x10] sm:$0xff]
      %v2617 = vld [vmem:[#allocation3 + $0x20] sm:$0xff]
      %v2618 = vld [vmem:[#allocation3 + $0x30] sm:$0xff]
      %v2619 = vld [vmem:[#allocation3 + $0x8] sm:$0xff]
      %v2620 = vld [vmem:[#allocation3 + $0x18] sm:$0xff]
      %v2621 = vld [vmem:[#allocation3 + $0x28] sm:$0xff]
      %v2622 = vld [vmem:[#allocation3 + $0x38] sm:$0xff]
      %2631 = vrot.lane.b32.xlu0 %v2615, 127
      %v2632 = vpop.permute.xlu0 %2631
      %2633 = vrot.lane.b32.xlu0 %v2619, 127
      %v2634 = vpop.permute.xlu0 %2633
      %2635 = vrot.lane.b32.xlu0 %v2616, 127
      %v2636 = vpop.permute.xlu0 %2635
      %2637 = vrot.lane.b32.xlu0 %v2620, 127
      %v2638 = vpop.permute.xlu0 %2637
      %2639 = vrot.lane.b32.xlu0 %v2617, 127
      %v2640 = vpop.permute.xlu0 %2639
      %2641 = vrot.lane.b32.xlu0 %v2621, 127
      %v2642 = vpop.permute.xlu0 %2641
      %2643 = vrot.lane.b32.xlu0 %v2618, 127
      %v2644 = vpop.permute.xlu0 %2643
      %2645 = vrot.lane.b32.xlu0 %v2622, 127
      %v2646 = vpop.permute.xlu0 %2645
      %v2647 = vsel %vm345, %v2632, %v2634
      %v2648 = vsel %vm345, %v2636, %v2638
      %v2649 = vsel %vm345, %v2640, %v2642
      %v2650 = vsel %vm345, %v2644, %v2646
      %2655 = vrot.lane.b32.xlu0 %v2615, 126
      %v2656 = vpop.permute.xlu0 %2655
      %2657 = vrot.lane.b32.xlu0 %v2619, 126
      %v2658 = vpop.permute.xlu0 %2657
      %2659 = vrot.lane.b32.xlu0 %v2616, 126
      %v2660 = vpop.permute.xlu0 %2659
      %2661 = vrot.lane.b32.xlu0 %v2620, 126
      %v2662 = vpop.permute.xlu0 %2661
      %2663 = vrot.lane.b32.xlu0 %v2617, 126
      %v2664 = vpop.permute.xlu0 %2663
      %2665 = vrot.lane.b32.xlu0 %v2621, 126
      %v2666 = vpop.permute.xlu0 %2665
      %2667 = vrot.lane.b32.xlu0 %v2618, 126
      %v2668 = vpop.permute.xlu0 %2667
      %2669 = vrot.lane.b32.xlu0 %v2622, 126
      %v2670 = vpop.permute.xlu0 %2669
      %v2671 = vsel %vm374, %v2656, %v2658
      %v2672 = vsel %vm374, %v2660, %v2662
      %v2673 = vsel %vm374, %v2664, %v2666
      %v2674 = vsel %vm374, %v2668, %v2670
      %2679 = vrot.lane.b32.xlu0 %v2615, 125
      %v2680 = vpop.permute.xlu0 %2679
      %2681 = vrot.lane.b32.xlu0 %v2619, 125
      %v2682 = vpop.permute.xlu0 %2681
      %2683 = vrot.lane.b32.xlu0 %v2616, 125
      %v2684 = vpop.permute.xlu0 %2683
      %2685 = vrot.lane.b32.xlu0 %v2620, 125
      %v2686 = vpop.permute.xlu0 %2685
      %2687 = vrot.lane.b32.xlu0 %v2617, 125
      %v2688 = vpop.permute.xlu0 %2687
      %2689 = vrot.lane.b32.xlu0 %v2621, 125
      %v2690 = vpop.permute.xlu0 %2689
      %2691 = vrot.lane.b32.xlu0 %v2618, 125
      %v2692 = vpop.permute.xlu0 %2691
      %2693 = vrot.lane.b32.xlu0 %v2622, 125
      %v2694 = vpop.permute.xlu0 %2693
      %v2695 = vsel %vm617, %v2680, %v2682
      %v2696 = vsel %vm617, %v2684, %v2686
      %v2697 = vsel %vm617, %v2688, %v2690
      %v2698 = vsel %vm617, %v2692, %v2694
      %2703 = vrot.lane.b32.xlu0 %v2615, 124
      %v2704 = vpop.permute.xlu0 %2703
      %2705 = vrot.lane.b32.xlu0 %v2619, 124
      %v2706 = vpop.permute.xlu0 %2705
      %2707 = vrot.lane.b32.xlu0 %v2616, 124
      %v2708 = vpop.permute.xlu0 %2707
      %2709 = vrot.lane.b32.xlu0 %v2620, 124
      %v2710 = vpop.permute.xlu0 %2709
      %2711 = vrot.lane.b32.xlu0 %v2617, 124
      %v2712 = vpop.permute.xlu0 %2711
      %2713 = vrot.lane.b32.xlu0 %v2621, 124
      %v2714 = vpop.permute.xlu0 %2713
      %2715 = vrot.lane.b32.xlu0 %v2618, 124
      %v2716 = vpop.permute.xlu0 %2715
      %2717 = vrot.lane.b32.xlu0 %v2622, 124
      %v2718 = vpop.permute.xlu0 %2717
      %v2719 = vsel %vm642, %v2704, %v2706
      %v2720 = vsel %vm642, %v2708, %v2710
      %v2721 = vsel %vm642, %v2712, %v2714
      %v2722 = vsel %vm642, %v2716, %v2718
      %2728 = vset.pattern.permute.xlu0 0
      %2729 = vperm.xlu0 %2728, %v2611
      %v2730 = vpop.permute.xlu0 %2729
      %2733 = vset.pattern.permute.xlu0 0
      %2734 = vperm.xlu0 %2733, %v2612
      %v2735 = vpop.permute.xlu0 %2734
      %2738 = vset.pattern.permute.xlu0 0
      %2739 = vperm.xlu0 %2738, %v2613
      %v2740 = vpop.permute.xlu0 %2739
      %2743 = vset.pattern.permute.xlu0 0
      %2744 = vperm.xlu0 %2743, %v2614
      %v2745 = vpop.permute.xlu0 %2744
      %v2748 = vsel %vm671, %v2603, 0
      %v2751 = vsel %vm671, %v2605, 0
      %v2754 = vsel %vm671, %v2607, 0
      %v2757 = vsel %vm671, %v2609, 0
      %2759 = vmatprep.subr.mxu0 0.0
      %2760 = vmatpush1.msra.mxu0 %v2615
      %2761 = vmatprep.subr.mxu0 0.0
      %2762 = vmatpush1.msra.mxu0 %v2616
      %2763 = vmatprep.subr.mxu0 0.0
      %2764 = vmatpush1.msra.mxu0 %v2617
      %2765 = vmatprep.subr.mxu0 0.0
      %2766 = vmatpush1.msra.mxu0 %v2618
      %2767 = vmatprep.subr.mxu0 0.0
      %2768 = vmatpush1.msra.mxu0 %v2647
      %2769 = vmatprep.subr.mxu0 0.0
      %2770 = vmatpush1.msra.mxu0 %v2648
      %2771 = vmatprep.subr.mxu0 0.0
      %2772 = vmatpush1.msra.mxu0 %v2649
      %2773 = vmatprep.subr.mxu0 0.0
      %2774 = vmatpush1.msra.mxu0 %v2650
      %2775 = vmatprep.subr.mxu0 0.0
      %2776 = vmatpush1.msra.mxu0 %v2671
      %2777 = vmatprep.subr.mxu0 0.0
      %2778 = vmatpush1.msra.mxu0 %v2672
      %2779 = vmatprep.subr.mxu0 0.0
      %2780 = vmatpush1.msra.mxu0 %v2673
      %2781 = vmatprep.subr.mxu0 0.0
      %2782 = vmatpush1.msra.mxu0 %v2674
      %2783 = vmatprep.subr.mxu0 0.0
      %2784 = vmatpush1.msra.mxu0 %v2695
      %2785 = vmatprep.subr.mxu0 0.0
      %2786 = vmatpush1.msra.mxu0 %v2696
      %2787 = vmatprep.subr.mxu0 0.0
      %2788 = vmatpush1.msra.mxu0 %v2697
      %2789 = vmatprep.subr.mxu0 0.0
      %2790 = vmatpush1.msra.mxu0 %v2698
      %2791 = vmatprep.subr.mxu0 0.0
      %2792 = vmatpush1.msra.mxu0 %v2719
      %2793 = vmatprep.subr.mxu0 0.0
      %2794 = vmatpush1.msra.mxu0 %v2720
      %2795 = vmatprep.subr.mxu0 0.0
      %2796 = vmatpush1.msra.mxu0 %v2721
      %2797 = vmatprep.subr.mxu0 0.0
      %2798 = vmatpush1.msra.mxu0 %v2722
      %2799 = vmatprep.subr.mxu0 0.0
      %2800 = vmatpush1.msra.mxu0 0.0
      %2801 = vmatprep.subr.mxu0 0.0
      %2802 = vmatpush1.msra.mxu0 0.0
      %2803 = vmatprep.subr.mxu0 0.0
      %2804 = vmatpush1.msra.mxu0 0.0
      %2805 = vmatprep.subr.mxu0 0.0
      %2806 = vmatpush1.msra.mxu0 0.0
      %2807 = vmatprep.subr.mxu0 0.0
      %2808 = vmatpush1.msra.mxu0 0.0
      %2809 = vmatprep.subr.mxu0 0.0
      %2810 = vmatpush1.msra.mxu0 0.0
      %2811 = vmatprep.subr.mxu0 0.0
      %2812 = vmatpush1.msra.mxu0 0.0
      %2813 = vmatprep.subr.mxu0 0.0
      %2814 = vmatpush1.msra.mxu0 0.0
      %2815 = vmatprep.subr.mxu0 0.0
      %2816 = vmatpush1.msra.mxu0 0.0
      %2817 = vmatprep.subr.mxu0 0.0
      %2818 = vmatpush1.msra.mxu0 0.0
      %2819 = vmatprep.subr.mxu0 0.0
      %2820 = vmatpush1.msra.mxu0 0.0
      %2821 = vmatprep.subr.mxu0 0.0
      %2822 = vmatpush1.msra.mxu0 0.0
      %2823 = vmatprep.mubr.f32.mxu0 %v2748
      %2824 = vmatmul.mubr.f32.gmra.mrb[0].mxu0 %v2602
      %v2825 = vpop.f32.mrb[0].mxu0
      %v2826 = vadd.f32 %v2730, %v2825
      %v2827 = vpop.f32.mrb[0].mxu0
      %2828 = vmatprep.mubr.f32.mxu0 %v2751
      %2829 = vmatmul.mubr.f32.gmra.mrb[0].mxu0 %v2604
      %v2830 = vpop.f32.mrb[0].mxu0
      %v2831 = vadd.f32 %v2735, %v2830
      %v2832 = vpop.f32.mrb[0].mxu0
      %2833 = vmatprep.mubr.f32.mxu0 %v2754
      %2834 = vmatmul.mubr.f32.gmra.mrb[0].mxu0 %v2606
      %v2835 = vpop.f32.mrb[0].mxu0
      %v2836 = vadd.f32 %v2740, %v2835
      %v2837 = vpop.f32.mrb[0].mxu0
      %2838 = vmatprep.mubr.f32.mxu0 %v2757
      %2839 = vmatmul.mubr.f32.gmra.mrb[0].mxu0 %v2608
      %v2840 = vpop.f32.mrb[0].mxu0
      %v2841 = vadd.f32 %v2745, %v2840
      %v2842 = vpop.f32.mrb[0].mxu0
      %2843 = vdwg.mxu0
      %v2844 = vld [vmem:[#allocation2] sm:$0xff]
      %v2845 = vld [vmem:[#allocation2 + $0x8] sm:$0xff]
      %v2846 = vld [vmem:[#allocation2 + $0x10] sm:$0xff]
      %v2847 = vld [vmem:[#allocation2 + $0x18] sm:$0xff]
      %v2848 = vld [vmem:[#allocation2 + $0x20] sm:$0xff]
      %v2849 = vld [vmem:[#allocation2 + $0x28] sm:$0xff]
      %v2850 = vld [vmem:[#allocation2 + $0x30] sm:$0xff]
      %v2851 = vld [vmem:[#allocation2 + $0x38] sm:$0xff]
      %2860 = vrot.lane.b32.xlu0 %v2844, 126
      %v2861 = vpop.permute.xlu0 %2860
      %2862 = vrot.lane.b32.xlu0 %v2845, 126
      %v2863 = vpop.permute.xlu0 %2862
      %2864 = vrot.lane.b32.xlu0 %v2846, 126
      %v2865 = vpop.permute.xlu0 %2864
      %2866 = vrot.lane.b32.xlu0 %v2847, 126
      %v2867 = vpop.permute.xlu0 %2866
      %2868 = vrot.lane.b32.xlu0 %v2848, 126
      %v2869 = vpop.permute.xlu0 %2868
      %2870 = vrot.lane.b32.xlu0 %v2849, 126
      %v2871 = vpop.permute.xlu0 %2870
      %2872 = vrot.lane.b32.xlu0 %v2850, 126
      %v2873 = vpop.permute.xlu0 %2872
      %2874 = vrot.lane.b32.xlu0 %v2851, 126
      %v2875 = vpop.permute.xlu0 %2874
      %v2876 = vsel %vm374, %v2861, %v2863
      %v2877 = vsel %vm374, %v2865, %v2867
      %v2878 = vsel %vm374, %v2869, %v2871
      %v2879 = vsel %vm374, %v2873, %v2875
      %v2884 = vadd.f32 %v2826, %v2876
      %v2885 = vadd.f32 %v2831, %v2877
      %v2886 = vadd.f32 %v2836, %v2878
      %v2887 = vadd.f32 %v2841, %v2879
      %v2888 = vsel %vm494, %v2884, 0.0
      %v2889 = vsel %vm494, %v2885, 0.0
      %v2890 = vsel %vm494, %v2886, 0.0
      %v2891 = vsel %vm494, %v2887, 0.0
      %2896 = vrot.lane.b32.xlu0 %v2888, 2
      %v2897 = vpop.permute.xlu0 %2896
      %2898 = vrot.lane.b32.xlu0 %v2889, 2
      %v2899 = vpop.permute.xlu0 %2898
      %2900 = vrot.lane.b32.xlu0 %v2890, 2
      %v2901 = vpop.permute.xlu0 %2900
      %2902 = vrot.lane.b32.xlu0 %v2891, 2
      %v2903 = vpop.permute.xlu0 %2902
      %2908 = vst.msk [vmem:[#allocation2] sm:$0xff] %vm515, %v2897
      %2909 = vst.msk [vmem:[#allocation2 + $0x8] sm:$0xff] %vm517, %v2897
      %2910 = vst.msk [vmem:[#allocation2 + $0x10] sm:$0xff] %vm515, %v2899
      %2911 = vst.msk [vmem:[#allocation2 + $0x18] sm:$0xff] %vm517, %v2899
      %2912 = vst.msk [vmem:[#allocation2 + $0x20] sm:$0xff] %vm515, %v2901
      %2913 = vst.msk [vmem:[#allocation2 + $0x28] sm:$0xff] %vm517, %v2901
      %2914 = vst.msk [vmem:[#allocation2 + $0x30] sm:$0xff] %vm515, %v2903
      %2915 = vst.msk [vmem:[#allocation2 + $0x38] sm:$0xff] %vm517, %v2903
      %v2916 = vld [vmem:[#allocation2] sm:$0xff]
      %v2917 = vld [vmem:[#allocation2 + $0x8] sm:$0xff]
      %v2918 = vld [vmem:[#allocation2 + $0x10] sm:$0xff]
      %v2919 = vld [vmem:[#allocation2 + $0x18] sm:$0xff]
      %v2920 = vld [vmem:[#allocation2 + $0x20] sm:$0xff]
      %v2921 = vld [vmem:[#allocation2 + $0x28] sm:$0xff]
      %v2922 = vld [vmem:[#allocation2 + $0x30] sm:$0xff]
      %v2923 = vld [vmem:[#allocation2 + $0x38] sm:$0xff]
      %v2924 = vld [vmem:[%s6] sm:$0xff]
      %v2925 = vld [vmem:[%s7] sm:$0xff]
      %2927 = vset.pattern.permute.xlu0 0
      %2928 = vperm.xlu0 %2927, %v2925
      %v2929 = vpop.permute.xlu0 %2928
      %2939 = vrot.lane.b32.xlu0 %v2916, 126
      %v2940 = vpop.permute.xlu0 %2939
      %2941 = vrot.lane.b32.xlu0 %v2917, 126
      %v2942 = vpop.permute.xlu0 %2941
      %2943 = vrot.lane.b32.xlu0 %v2918, 126
      %v2944 = vpop.permute.xlu0 %2943
      %2945 = vrot.lane.b32.xlu0 %v2919, 126
      %v2946 = vpop.permute.xlu0 %2945
      %2947 = vrot.lane.b32.xlu0 %v2920, 126
      %v2948 = vpop.permute.xlu0 %2947
      %2949 = vrot.lane.b32.xlu0 %v2921, 126
      %v2950 = vpop.permute.xlu0 %2949
      %2951 = vrot.lane.b32.xlu0 %v2922, 126
      %v2952 = vpop.permute.xlu0 %2951
      %2953 = vrot.lane.b32.xlu0 %v2923, 126
      %v2954 = vpop.permute.xlu0 %2953
      %v2955 = vsel %vm374, %v2940, %v2942
      %v2956 = vsel %vm374, %v2944, %v2946
      %v2957 = vsel %vm374, %v2948, %v2950
      %v2958 = vsel %vm374, %v2952, %v2954
      %v2964 = vsel %vm671, %v2924, 0
      %2966 = vmatprep.subr.mxu0 0.0
      %2967 = vmatpush1.msra.mxu0 %v2955
      %2968 = vmatprep.subr.mxu0 0.0
      %2969 = vmatpush1.msra.mxu0 %v2956
      %2970 = vmatprep.subr.mxu0 0.0
      %2971 = vmatpush1.msra.mxu0 %v2957
      %2972 = vmatprep.subr.mxu0 0.0
      %2973 = vmatpush1.msra.mxu0 %v2958
      %2974 = vmatprep.subr.mxu0 0.0
      %2975 = vmatpush1.msra.mxu0 0.0
      %2976 = vmatprep.subr.mxu0 0.0
      %2977 = vmatpush1.msra.mxu0 0.0
      %2978 = vmatprep.subr.mxu0 0.0
      %2979 = vmatpush1.msra.mxu0 0.0
      %2980 = vmatprep.subr.mxu0 0.0
      %2981 = vmatpush1.msra.mxu0 0.0
      %2982 = vmatprep.subr.mxu0 0.0
      %2983 = vmatpush1.msra.mxu0 0.0
      %2984 = vmatprep.subr.mxu0 0.0
      %2985 = vmatpush1.msra.mxu0 0.0
      %2986 = vmatprep.subr.mxu0 0.0
      %2987 = vmatpush1.msra.mxu0 0.0
      %2988 = vmatprep.subr.mxu0 0.0
      %2989 = vmatpush1.msra.mxu0 0.0
      %2990 = vmatprep.subr.mxu0 0.0
      %2991 = vmatpush1.msra.mxu0 0.0
      %2992 = vmatprep.subr.mxu0 0.0
      %2993 = vmatpush1.msra.mxu0 0.0
      %2994 = vmatprep.subr.mxu0 0.0
      %2995 = vmatpush1.msra.mxu0 0.0
      %2996 = vmatprep.subr.mxu0 0.0
      %2997 = vmatpush1.msra.mxu0 0.0
      %2998 = vmatprep.subr.mxu0 0.0
      %2999 = vmatpush1.msra.mxu0 0.0
      %3000 = vmatprep.subr.mxu0 0.0
      %3001 = vmatpush1.msra.mxu0 0.0
      %3002 = vmatprep.subr.mxu0 0.0
      %3003 = vmatpush1.msra.mxu0 0.0
      %3004 = vmatprep.subr.mxu0 0.0
      %3005 = vmatpush1.msra.mxu0 0.0
      %3006 = vmatprep.subr.mxu0 0.0
      %3007 = vmatpush1.msra.mxu0 0.0
      %3008 = vmatprep.subr.mxu0 0.0
      %3009 = vmatpush1.msra.mxu0 0.0
      %3010 = vmatprep.subr.mxu0 0.0
      %3011 = vmatpush1.msra.mxu0 0.0
      %3012 = vmatprep.subr.mxu0 0.0
      %3013 = vmatpush1.msra.mxu0 0.0
      %3014 = vmatprep.subr.mxu0 0.0
      %3015 = vmatpush1.msra.mxu0 0.0
      %3016 = vmatprep.subr.mxu0 0.0
      %3017 = vmatpush1.msra.mxu0 0.0
      %3018 = vmatprep.subr.mxu0 0.0
      %3019 = vmatpush1.msra.mxu0 0.0
      %3020 = vmatprep.subr.mxu0 0.0
      %3021 = vmatpush1.msra.mxu0 0.0
      %3022 = vmatprep.subr.mxu0 0.0
      %3023 = vmatpush1.msra.mxu0 0.0
      %3024 = vmatprep.subr.mxu0 0.0
      %3025 = vmatpush1.msra.mxu0 0.0
      %3026 = vmatprep.subr.mxu0 0.0
      %3027 = vmatpush1.msra.mxu0 0.0
      %3028 = vmatprep.subr.mxu0 0.0
      %3029 = vmatpush1.msra.mxu0 0.0
      %3030 = vmatprep.mubr.f32.mxu0 0.0
      %3031 = vmatmul.mubr.f32.gmra.mrb[0].mxu0 %v2964
      %v3032 = vpop.f32.mrb[0].mxu0
      %v3033 = vadd.f32 %v2929, %v3032
      %v3034 = vpop.f32.mrb[0].mxu0
      %3035 = vdwg.mxu0
      %v3036 = vrot.slane %v3033, 4
      %v3037 = vmax.f32 %v3033, %v3036
      %v3038 = vrot.slane %v3037, 2
      %v3039 = vmax.f32 %v3037, %v3038
      %v3040 = vrot.slane %v3039, 1
      %v3041 = vmax.f32 %v3039, %v3040
      %v3042 = vsub.f32 %v3033, %v3041
      %v3043 = vmul.f32 %v3042, 1.442695
      %v3044 = vpow.pop %v3043
      %v3045 = vrot.slane %v3044, 4
      %v3046 = vadd.f32 %v3044, %v3045
      %v3047 = vrot.slane %v3046, 2
      %v3048 = vadd.f32 %v3046, %v3047
      %v3049 = vrot.slane %v3048, 1
      %v3050 = vadd.f32 %v3048, %v3049
      %v3051 = vrcp.pop %v3050
      %v3052 = vmul.f32 %v3044, %v3051
      %3053 = vst [vmem:[%s303] sm:$0xff] %v3052
      %p3054 = scmp.lt.s32.totalorder %s19, 1
      %s3055 = scalar_select %p3054, %s19, 1
      %s3056 = smul.addr %s3055, 8
      %s3057 = scalar_lea.vmem %s8, %s3056
      // Predicated region
      $region53: #{residual_cnn4block_forward.1} parent=51 // pred_check
        %p3058 = pneg %p210
      $region54: #{residual_cnn4block_forward.1} parent=51 // pred_check_branch
        %3060 = sbr.rel (%p3058) target = $region56
      $region55: #{residual_cnn4block_forward.1} parent=51 // pred_region
        _
      $region56: #{residual_cnn4block_forward.1} parent=51 // pred_fallthru
        _
    $region52: #{residual_cnn4block_forward.1} parent=5 // pred_fallthru
      _
    %p3061 = scmp.le.s32.totalorder 2, %s14
    // Predicated region
    $region57: #{residual_cnn4block_forward.1} parent=5 // pred_check
      %p3062 = pneg %p3061
    $region58: #{residual_cnn4block_forward.1} parent=5 // pred_check_branch
      %3064 = sbr.rel (%p3062) target = $region60
    $region59: #{residual_cnn4block_forward.1} parent=5 // pred_region
      %s3065 = ssub.s32 %s14, 2
      // Predicated region
      $region61: #{residual_cnn4block_forward.1} parent=59 // pred_check
        %p3066 = pneg %p216
      $region62: #{residual_cnn4block_forward.1} parent=59 // pred_check_branch
        %3068 = sbr.rel (%p3066) target = $region64
      $region63: #{residual_cnn4block_forward.1} parent=59 // pred_region
        %p3069 = scmp.lt.s32.totalorder %s20, 1
        %s3070 = scalar_select %p3069, %s20, 1
        %s3071 = smul.addr %s3070, 8
        %s3072 = scalar_lea.vmem %s8, %s3071
      $region64: #{residual_cnn4block_forward.1} parent=59 // pred_fallthru
        _
    $region60: #{residual_cnn4block_forward.1} parent=5 // pred_fallthru
      _
  $region6: #{residual_cnn4block_forward.1} parent=0 // loop_footer
    %s18 = sadd.s32 1, %s14
  $region7: #{residual_cnn4block_forward.1} parent=0 // loop_footer_branch
    %13 = sbr.rel target = $region3
  $region8: #{residual_cnn4block_forward.1} parent=0 // loop_exit
    _

</llo_original>
